<compile_context>
chip_gen: v7x
topology: tpu7x:2x2x1
jax: 0.10.0
libtpu: 0.0.40
codegen_flags: <defaults>
</compile_context>

<pallas_src>
import math

import jax
import jax.numpy as jnp
from jax.experimental import pallas as pl
from jax.experimental.pallas import tpu as pltpu  # noqa: F401 (TPU backend)

# ----------------------------- configuration -------------------------------
NUM_ITEM = 100
HIDDEN = 32
NUM_HEADS = 4
HEAD_DIM = HIDDEN // NUM_HEADS
NUM_LAYERS = 2
MAX_LEN = 8            # sequence length used end-to-end
BATCH = 2
VOCAB = NUM_ITEM + 2   # item_emb rows (padding_idx = 0)
OUT_DIM = NUM_ITEM + 1 # final linear output dim (101)
OUT_PAD = 128          # lane-dense padded logit width (sliced back to 101)
FFN_DIM = 4 * HIDDEN
LN_EPS = 1e-6
ATTN_SCALE = 1.0 / math.sqrt(HIDDEN)


# ------------------------------ shared helpers ------------------------------
def _layernorm(x, gamma, beta):
    mu = jnp.mean(x, axis=-1, keepdims=True)
    var = jnp.mean((x - mu) ** 2, axis=-1, keepdims=True)
    return (x - mu) * jax.lax.rsqrt(var + LN_EPS) * gamma + beta


def _gelu(x):
    return jax.nn.gelu(x, approximate=True)


# ------------------------- fused forward kernel -----------------------------
def fused_forward_kernel(x_ref, pos_ref, kmask_ref,
                         emb_g_ref, emb_b_ref,
                         wqkv_ref, bqkv_ref, wo_ref, bo_ref, g1_ref, be1_ref,
                         w1_ref, b1_ref, w2_ref, b2_ref, g2_ref, be2_ref,
                         wout_ref, bout_ref,
                         o_ref):
    B, L, H = x_ref.shape

    # --- (item_emb + pos_emb) -> LayerNorm (dropout = identity) ---
    x = x_ref[...] + pos_ref[...][None, :, :]
    x = _layernorm(x, emb_g_ref[...], emb_b_ref[...])
    x2 = x.reshape(B * L, H)                 # batch folded into rows

    # key-validity predicate hoisted out of the layer/head loops:
    # (B, 1, L), True for valid keys; broadcasts over the query axis.
    kvalid = kmask_ref[...] > 0.0
    neg_fill = jnp.float32(-1e9)

    # --- transformer blocks (weights stacked along a leading layer axis) ---
    for layer in range(NUM_LAYERS):
        # fused Q|K|V projection: one (B*L, H) x (H, 3H) matmul
        qkv = jnp.dot(x2, wqkv_ref[layer],
                      preferred_element_type=jnp.float32) + bqkv_ref[layer]
        qkv3 = qkv.reshape(B, L, 3 * H)

        heads = []
        for h in range(NUM_HEADS):
            q = qkv3[:, :, h * HEAD_DIM:(h + 1) * HEAD_DIM]
            k = qkv3[:, :, H + h * HEAD_DIM:H + (h + 1) * HEAD_DIM]
            v = qkv3[:, :, 2 * H + h * HEAD_DIM:2 * H + (h + 1) * HEAD_DIM]
            s = jnp.einsum('bqd,bkd->bqk', q, k,
                           preferred_element_type=jnp.float32) * ATTN_SCALE
            s = jnp.where(kvalid, s, neg_fill)            # masked_fill semantics
            m = jnp.max(s, axis=-1, keepdims=True)
            e = jnp.exp(s - m)
            p = e * pl.reciprocal(jnp.sum(e, axis=-1, keepdims=True),
                                  approx=True)
            heads.append(jnp.einsum('bqk,bkd->bqd', p, v,
                                    preferred_element_type=jnp.float32))
        attn = jnp.concatenate(heads, axis=-1).reshape(B * L, H)
        attn = jnp.dot(attn, wo_ref[layer],
                       preferred_element_type=jnp.float32) + bo_ref[layer]

        h1 = _layernorm(attn + x2, g1_ref[layer], be1_ref[layer])

        ff = jnp.dot(h1, w1_ref[layer],
                     preferred_element_type=jnp.float32) + b1_ref[layer]
        ff = _gelu(ff)
        ff = jnp.dot(ff, w2_ref[layer],
                     preferred_element_type=jnp.float32) + b2_ref[layer]
        x2 = _layernorm(ff + h1, g2_ref[layer], be2_ref[layer])

    # --- final projection: lane-dense (B*L, 128) store ---
    o_ref[...] = jnp.dot(x2, wout_ref[...],
                         preferred_element_type=jnp.float32) + bout_ref[...]


# ------------------------------ full forward --------------------------------
@jax.jit
def bert4rec_forward(log_seqs, params):
    B, L = log_seqs.shape

    # embedding gather (glue, plain JAX); padding_idx=0 row is zeros
    seqs = params["item_emb"][log_seqs]                       # (B, L, H)

    # attn_mask returned by the module: (B, 1, L, L), [b,0,i,j] = seq[b,j] > 0
    attn_mask = jnp.broadcast_to((log_seqs > 0)[:, None, None, :],
                                 (B, 1, L, L))

    pos_tab = params["pos_emb"][:L]                           # (L, H)
    key_mask = (log_seqs > 0).astype(jnp.float32)[:, None, :] # (B, 1, L)

    out_pad = pl.pallas_call(
        fused_forward_kernel,
        out_shape=jax.ShapeDtypeStruct((B * L, OUT_PAD), jnp.float32),
    )(seqs, pos_tab, key_mask,
      params["emb_ln_g"], params["emb_ln_b"],
      params["wqkv"], params["bqkv"], params["wo"], params["bo"],
      params["g1"], params["be1"],
      params["w1"], params["b1"], params["w2"], params["b2"],
      params["g2"], params["be2"],
      params["out_w_pad"], params["out_b_pad"])

    out = out_pad[:, :OUT_DIM].reshape(B, L, OUT_DIM)
    return out, attn_mask


# ------------------------- pure-JAX reference (check) ------------------------
def reference_forward(log_seqs, params):
    B, L = log_seqs.shape
    x = params["item_emb"][log_seqs] + params["pos_emb"][:L][None, :, :]
    x = _layernorm(x, params["emb_ln_g"], params["emb_ln_b"])
    x2 = x.reshape(B * L, HIDDEN)
    kmask = (log_seqs > 0).astype(jnp.float32)[:, None, :]
    for layer in range(NUM_LAYERS):
        qkv = x2 @ params["wqkv"][layer] + params["bqkv"][layer]
        qkv3 = qkv.reshape(B, L, 3 * HIDDEN)
        heads = []
        for h in range(NUM_HEADS):
            q = qkv3[:, :, h * HEAD_DIM:(h + 1) * HEAD_DIM]
            k = qkv3[:, :, HIDDEN + h * HEAD_DIM:HIDDEN + (h + 1) * HEAD_DIM]
            v = qkv3[:, :, 2 * HIDDEN + h * HEAD_DIM:2 * HIDDEN + (h + 1) * HEAD_DIM]
            s = jnp.einsum('bqd,bkd->bqk', q, k) * ATTN_SCALE
            s = jnp.where(kmask > 0, s, -1e9)
            p = jax.nn.softmax(s, axis=-1)
            heads.append(jnp.einsum('bqk,bkd->bqd', p, v))
        attn = jnp.concatenate(heads, axis=-1).reshape(B * L, HIDDEN)
        attn = attn @ params["wo"][layer] + params["bo"][layer]
        h1 = _layernorm(attn + x2, params["g1"][layer], params["be1"][layer])
        ff = _gelu(h1 @ params["w1"][layer] + params["b1"][layer])
        ff = ff @ params["w2"][layer] + params["b2"][layer]
        x2 = _layernorm(ff + h1, params["g2"][layer], params["be2"][layer])
    out = x2 @ params["out_w_pad"][:, :OUT_DIM] + params["out_b_pad"][:, :OUT_DIM]
    return out.reshape(B, L, OUT_DIM)


# ------------------------------ parameter init ------------------------------
def init_params(key):
    keys = iter(jax.random.split(key, 64))

    def nrm(shape, scale=0.02):
        return scale * jax.random.normal(next(keys), shape, jnp.float32)

    params = {}
    item_emb = nrm((VOCAB, HIDDEN))
    params["item_emb"] = item_emb.at[0].set(0.0)           # padding_idx = 0
    params["pos_emb"] = nrm((MAX_LEN, HIDDEN))
    params["emb_ln_g"] = jnp.ones((1, HIDDEN), jnp.float32)
    params["emb_ln_b"] = jnp.zeros((1, HIDDEN), jnp.float32)

    wqkv, bqkv, wo, bo = [], [], [], []
    g1, be1, w1, b1, w2, b2, g2, be2 = [], [], [], [], [], [], [], []
    for _ in range(NUM_LAYERS):
        wq_, wk_, wv_ = nrm((HIDDEN, HIDDEN)), nrm((HIDDEN, HIDDEN)), nrm((HIDDEN, HIDDEN))
        bq_, bk_, bv_ = nrm((1, HIDDEN)), nrm((1, HIDDEN)), nrm((1, HIDDEN))
        wqkv.append(jnp.concatenate([wq_, wk_, wv_], axis=1))   # (H, 3H) fused
        bqkv.append(jnp.concatenate([bq_, bk_, bv_], axis=1))   # (1, 3H)
        wo.append(nrm((HIDDEN, HIDDEN))); bo.append(nrm((1, HIDDEN)))
        g1.append(jnp.ones((1, HIDDEN), jnp.float32))
        be1.append(jnp.zeros((1, HIDDEN), jnp.float32))
        w1.append(nrm((HIDDEN, FFN_DIM))); b1.append(nrm((1, FFN_DIM)))
        w2.append(nrm((FFN_DIM, HIDDEN))); b2.append(nrm((1, HIDDEN)))
        g2.append(jnp.ones((1, HIDDEN), jnp.float32))
        be2.append(jnp.zeros((1, HIDDEN), jnp.float32))

    stack = lambda xs: jnp.stack(xs, axis=0).astype(jnp.float32)
    params.update(
        wqkv=stack(wqkv), bqkv=stack(bqkv), wo=stack(wo), bo=stack(bo),
        g1=stack(g1), be1=stack(be1), w1=stack(w1), b1=stack(b1),
        w2=stack(w2), b2=stack(b2), g2=stack(g2), be2=stack(be2))

    # final projection, zero-padded to a lane-dense width of 128
    out_w = nrm((HIDDEN, OUT_DIM))
    out_b = nrm((1, OUT_DIM))
    params["out_w_pad"] = jnp.zeros((HIDDEN, OUT_PAD), jnp.float32).at[:, :OUT_DIM].set(out_w)
    params["out_b_pad"] = jnp.zeros((1, OUT_PAD), jnp.float32).at[:, :OUT_DIM].set(out_b)
    return params


# --------------------------------- main --------------------------------------
if __name__ == "__main__":
    key = jax.random.PRNGKey(0)
    pkey, dkey = jax.random.split(key)

    params = init_params(pkey)

    log_seqs = jax.random.randint(dkey, (BATCH, MAX_LEN), 1, NUM_ITEM + 1,
                                  dtype=jnp.int32)
    log_seqs = log_seqs.at[0, :2].set(0)   # some padding to exercise the mask

    out, attn_mask = bert4rec_forward(log_seqs, params)
    out = jax.block_until_ready(out)
    attn_mask = jax.block_until_ready(attn_mask)

    assert out.shape == (BATCH, MAX_LEN, OUT_DIM)
    assert attn_mask.shape == (BATCH, 1, MAX_LEN, MAX_LEN)
    assert bool(jnp.all(jnp.isfinite(out)))

    ref = reference_forward(log_seqs, params)
    assert bool(jnp.allclose(out, ref, rtol=2e-2, atol=2e-3)), \
        "Pallas output does not match JAX reference"

    print("KERNEL_OK")
</pallas_src>

<mosaic_0001>
module attributes {stable_mosaic.version = 11 : i64} {
  func.func @fused_forward_kernel(%arg0: memref<2x8x32xf32, #tpu.memory_space<vmem>>, %arg1: memref<8x32xf32, #tpu.memory_space<vmem>>, %arg2: memref<2x1x8xf32, #tpu.memory_space<vmem>>, %arg3: memref<1x32xf32, #tpu.memory_space<vmem>>, %arg4: memref<1x32xf32, #tpu.memory_space<vmem>>, %arg5: memref<2x32x96xf32, #tpu.memory_space<vmem>>, %arg6: memref<2x1x96xf32, #tpu.memory_space<vmem>>, %arg7: memref<2x32x32xf32, #tpu.memory_space<vmem>>, %arg8: memref<2x1x32xf32, #tpu.memory_space<vmem>>, %arg9: memref<2x1x32xf32, #tpu.memory_space<vmem>>, %arg10: memref<2x1x32xf32, #tpu.memory_space<vmem>>, %arg11: memref<2x32x128xf32, #tpu.memory_space<vmem>>, %arg12: memref<2x1x128xf32, #tpu.memory_space<vmem>>, %arg13: memref<2x128x32xf32, #tpu.memory_space<vmem>>, %arg14: memref<2x1x32xf32, #tpu.memory_space<vmem>>, %arg15: memref<2x1x32xf32, #tpu.memory_space<vmem>>, %arg16: memref<2x1x32xf32, #tpu.memory_space<vmem>>, %arg17: memref<32x128xf32, #tpu.memory_space<vmem>>, %arg18: memref<1x128xf32, #tpu.memory_space<vmem>>, %arg19: memref<16x128xf32, #tpu.memory_space<vmem>>) attributes {dimension_semantics = [], scalar_prefetch = 0 : i64, scratch_operands = 0 : i64, tpu.core_type = #tpu.core_type<tc>} {
    %c0 = arith.constant 0 : index
    %c0_0 = arith.constant 0 : index
    %c0_1 = arith.constant 0 : index
    %0 = vector.load %arg0[%c0, %c0_0, %c0_1] : memref<2x8x32xf32, #tpu.memory_space<vmem>>, vector<2x8x32xf32>
    %c0_2 = arith.constant 0 : index
    %c0_3 = arith.constant 0 : index
    %1 = vector.load %arg1[%c0_2, %c0_3] : memref<8x32xf32, #tpu.memory_space<vmem>>, vector<8x32xf32>
    %2 = vector.shape_cast %1 : vector<8x32xf32> to vector<1x8x32xf32>
    %3 = vector.broadcast %2 : vector<1x8x32xf32> to vector<2x8x32xf32>
    %4 = arith.addf %0, %3 : vector<2x8x32xf32>
    %c0_4 = arith.constant 0 : index
    %c0_5 = arith.constant 0 : index
    %5 = vector.load %arg3[%c0_4, %c0_5] : memref<1x32xf32, #tpu.memory_space<vmem>>, vector<1x32xf32>
    %c0_6 = arith.constant 0 : index
    %c0_7 = arith.constant 0 : index
    %6 = vector.load %arg4[%c0_6, %c0_7] : memref<1x32xf32, #tpu.memory_space<vmem>>, vector<1x32xf32>
    %cst = arith.constant dense<0.000000e+00> : vector<2x8xf32>
    %7 = vector.multi_reduction <add>, %4, %cst [2] : vector<2x8x32xf32> to vector<2x8xf32>
    %8 = vector.shape_cast %7 : vector<2x8xf32> to vector<2x8x1xf32>
    %cst_8 = arith.constant 3.200000e+01 : f32
    %9 = vector.broadcast %cst_8 : f32 to vector<2x8x1xf32>
    %10 = arith.divf %8, %9 : vector<2x8x1xf32>
    %11 = vector.broadcast %10 : vector<2x8x1xf32> to vector<2x8x32xf32>
    %12 = arith.subf %4, %11 : vector<2x8x32xf32>
    %13 = arith.mulf %12, %12 : vector<2x8x32xf32>
    %cst_9 = arith.constant dense<0.000000e+00> : vector<2x8xf32>
    %14 = vector.multi_reduction <add>, %13, %cst_9 [2] : vector<2x8x32xf32> to vector<2x8xf32>
    %15 = vector.shape_cast %14 : vector<2x8xf32> to vector<2x8x1xf32>
    %cst_10 = arith.constant 3.200000e+01 : f32
    %16 = vector.broadcast %cst_10 : f32 to vector<2x8x1xf32>
    %17 = arith.divf %15, %16 : vector<2x8x1xf32>
    %18 = vector.broadcast %10 : vector<2x8x1xf32> to vector<2x8x32xf32>
    %19 = arith.subf %4, %18 : vector<2x8x32xf32>
    %cst_11 = arith.constant 9.99999997E-7 : f32
    %20 = vector.broadcast %cst_11 : f32 to vector<2x8x1xf32>
    %21 = arith.addf %17, %20 : vector<2x8x1xf32>
    %22 = math.rsqrt %21 : vector<2x8x1xf32>
    %23 = vector.broadcast %22 : vector<2x8x1xf32> to vector<2x8x32xf32>
    %24 = arith.mulf %19, %23 : vector<2x8x32xf32>
    %25 = vector.shape_cast %5 : vector<1x32xf32> to vector<1x1x32xf32>
    %26 = vector.broadcast %25 : vector<1x1x32xf32> to vector<2x8x32xf32>
    %27 = arith.mulf %24, %26 : vector<2x8x32xf32>
    %28 = vector.shape_cast %6 : vector<1x32xf32> to vector<1x1x32xf32>
    %29 = vector.broadcast %28 : vector<1x1x32xf32> to vector<2x8x32xf32>
    %30 = arith.addf %27, %29 : vector<2x8x32xf32>
    %31 = vector.shape_cast %30 : vector<2x8x32xf32> to vector<16x32xf32>
    %c0_12 = arith.constant 0 : index
    %c0_13 = arith.constant 0 : index
    %c0_14 = arith.constant 0 : index
    %32 = vector.load %arg2[%c0_12, %c0_13, %c0_14] : memref<2x1x8xf32, #tpu.memory_space<vmem>>, vector<2x1x8xf32>
    %cst_15 = arith.constant 0.000000e+00 : f32
    %33 = vector.broadcast %cst_15 : f32 to vector<2x1x8xf32>
    %34 = arith.cmpf ogt, %32, %33 : vector<2x1x8xf32>
    %c0_16 = arith.constant 0 : index
    %c0_17 = arith.constant 0 : index
    %c0_18 = arith.constant 0 : index
    %35 = vector.load %arg5[%c0_16, %c0_17, %c0_18] : memref<2x32x96xf32, #tpu.memory_space<vmem>>, vector<1x32x96xf32>
    %36 = vector.shape_cast %35 : vector<1x32x96xf32> to vector<32x96xf32>
    %cst_19 = arith.constant dense<0.000000e+00> : vector<16x96xf32>
    %37 = tpu.matmul %31, %36, %cst_19 {dimension_numbers = #tpu.dot_dimension_numbers<[1], [0], [0], [1], [0, 0, 1, 1], [], []>} : vector<16x32xf32>, vector<32x96xf32>, vector<16x96xf32> -> vector<16x96xf32>
    %c0_20 = arith.constant 0 : index
    %c0_21 = arith.constant 0 : index
    %c0_22 = arith.constant 0 : index
    %38 = vector.load %arg6[%c0_20, %c0_21, %c0_22] : memref<2x1x96xf32, #tpu.memory_space<vmem>>, vector<1x1x96xf32>
    %39 = vector.shape_cast %38 : vector<1x1x96xf32> to vector<1x96xf32>
    %40 = vector.broadcast %39 : vector<1x96xf32> to vector<16x96xf32>
    %41 = arith.addf %37, %40 : vector<16x96xf32>
    %42 = vector.shape_cast %41 : vector<16x96xf32> to vector<2x8x96xf32>
    %43 = vector.extract_strided_slice %42 {offsets = [0, 0, 0], sizes = [2, 8, 8], strides = [1, 1, 1]} : vector<2x8x96xf32> to vector<2x8x8xf32>
    %44 = vector.extract_strided_slice %42 {offsets = [0, 0, 32], sizes = [2, 8, 8], strides = [1, 1, 1]} : vector<2x8x96xf32> to vector<2x8x8xf32>
    %45 = vector.extract_strided_slice %42 {offsets = [0, 0, 64], sizes = [2, 8, 8], strides = [1, 1, 1]} : vector<2x8x96xf32> to vector<2x8x8xf32>
    "tpu.trace_start"() <{level = 10 : i32, message = "bqd,bkd->bqk"}> : () -> ()
    %cst_23 = arith.constant dense<0.000000e+00> : vector<2x8x8xf32>
    %46 = tpu.matmul %43, %44, %cst_23 {dimension_numbers = #tpu.dot_dimension_numbers<[2], [2], [1], [1], [0, 0, 0, 1, 1, 1], [0], [0]>} : vector<2x8x8xf32>, vector<2x8x8xf32>, vector<2x8x8xf32> -> vector<2x8x8xf32>
    "tpu.trace_stop"() : () -> ()
    %cst_24 = arith.constant 0.176776692 : f32
    %47 = vector.broadcast %cst_24 : f32 to vector<2x8x8xf32>
    %48 = arith.mulf %46, %47 : vector<2x8x8xf32>
    %cst_25 = arith.constant -1.000000e+09 : f32
    %49 = vector.shape_cast %34 : vector<2x1x8xi1> to vector<2x1x8xi1>
    %50 = vector.broadcast %49 : vector<2x1x8xi1> to vector<2x8x8xi1>
    %51 = vector.broadcast %cst_25 : f32 to vector<2x8x8xf32>
    %52 = arith.select %50, %48, %51 : vector<2x8x8xi1>, vector<2x8x8xf32>
    %cst_26 = arith.constant dense<0xFF800000> : vector<2x8xf32>
    %53 = vector.multi_reduction <maximumf>, %52, %cst_26 [2] : vector<2x8x8xf32> to vector<2x8xf32>
    %54 = vector.shape_cast %53 : vector<2x8xf32> to vector<2x8x1xf32>
    %55 = vector.broadcast %54 : vector<2x8x1xf32> to vector<2x8x8xf32>
    %56 = arith.subf %52, %55 : vector<2x8x8xf32>
    %57 = math.exp %56 : vector<2x8x8xf32>
    %cst_27 = arith.constant dense<0.000000e+00> : vector<2x8xf32>
    %58 = vector.multi_reduction <add>, %57, %cst_27 [2] : vector<2x8x8xf32> to vector<2x8xf32>
    %59 = vector.shape_cast %58 : vector<2x8xf32> to vector<2x8x1xf32>
    %60 = tpu.reciprocal %59 {approx = true} : vector<2x8x1xf32> -> vector<2x8x1xf32>
    %61 = vector.broadcast %60 : vector<2x8x1xf32> to vector<2x8x8xf32>
    %62 = arith.mulf %57, %61 : vector<2x8x8xf32>
    "tpu.trace_start"() <{level = 10 : i32, message = "bqk,bkd->bqd"}> : () -> ()
    %cst_28 = arith.constant dense<0.000000e+00> : vector<2x8x8xf32>
    %63 = tpu.matmul %62, %45, %cst_28 {dimension_numbers = #tpu.dot_dimension_numbers<[2], [1], [1], [2], [0, 0, 0, 1, 1, 2], [0], [0]>} : vector<2x8x8xf32>, vector<2x8x8xf32>, vector<2x8x8xf32> -> vector<2x8x8xf32>
    "tpu.trace_stop"() : () -> ()
    %64 = vector.extract_strided_slice %42 {offsets = [0, 0, 8], sizes = [2, 8, 8], strides = [1, 1, 1]} : vector<2x8x96xf32> to vector<2x8x8xf32>
    %65 = vector.extract_strided_slice %42 {offsets = [0, 0, 40], sizes = [2, 8, 8], strides = [1, 1, 1]} : vector<2x8x96xf32> to vector<2x8x8xf32>
    %66 = vector.extract_strided_slice %42 {offsets = [0, 0, 72], sizes = [2, 8, 8], strides = [1, 1, 1]} : vector<2x8x96xf32> to vector<2x8x8xf32>
    "tpu.trace_start"() <{level = 10 : i32, message = "bqd,bkd->bqk"}> : () -> ()
    %cst_29 = arith.constant dense<0.000000e+00> : vector<2x8x8xf32>
    %67 = tpu.matmul %64, %65, %cst_29 {dimension_numbers = #tpu.dot_dimension_numbers<[2], [2], [1], [1], [0, 0, 0, 1, 1, 1], [0], [0]>} : vector<2x8x8xf32>, vector<2x8x8xf32>, vector<2x8x8xf32> -> vector<2x8x8xf32>
    "tpu.trace_stop"() : () -> ()
    %cst_30 = arith.constant 0.176776692 : f32
    %68 = vector.broadcast %cst_30 : f32 to vector<2x8x8xf32>
    %69 = arith.mulf %67, %68 : vector<2x8x8xf32>
    %cst_31 = arith.constant -1.000000e+09 : f32
    %70 = vector.shape_cast %34 : vector<2x1x8xi1> to vector<2x1x8xi1>
    %71 = vector.broadcast %70 : vector<2x1x8xi1> to vector<2x8x8xi1>
    %72 = vector.broadcast %cst_31 : f32 to vector<2x8x8xf32>
    %73 = arith.select %71, %69, %72 : vector<2x8x8xi1>, vector<2x8x8xf32>
    %cst_32 = arith.constant dense<0xFF800000> : vector<2x8xf32>
    %74 = vector.multi_reduction <maximumf>, %73, %cst_32 [2] : vector<2x8x8xf32> to vector<2x8xf32>
    %75 = vector.shape_cast %74 : vector<2x8xf32> to vector<2x8x1xf32>
    %76 = vector.broadcast %75 : vector<2x8x1xf32> to vector<2x8x8xf32>
    %77 = arith.subf %73, %76 : vector<2x8x8xf32>
    %78 = math.exp %77 : vector<2x8x8xf32>
    %cst_33 = arith.constant dense<0.000000e+00> : vector<2x8xf32>
    %79 = vector.multi_reduction <add>, %78, %cst_33 [2] : vector<2x8x8xf32> to vector<2x8xf32>
    %80 = vector.shape_cast %79 : vector<2x8xf32> to vector<2x8x1xf32>
    %81 = tpu.reciprocal %80 {approx = true} : vector<2x8x1xf32> -> vector<2x8x1xf32>
    %82 = vector.broadcast %81 : vector<2x8x1xf32> to vector<2x8x8xf32>
    %83 = arith.mulf %78, %82 : vector<2x8x8xf32>
    "tpu.trace_start"() <{level = 10 : i32, message = "bqk,bkd->bqd"}> : () -> ()
    %cst_34 = arith.constant dense<0.000000e+00> : vector<2x8x8xf32>
    %84 = tpu.matmul %83, %66, %cst_34 {dimension_numbers = #tpu.dot_dimension_numbers<[2], [1], [1], [2], [0, 0, 0, 1, 1, 2], [0], [0]>} : vector<2x8x8xf32>, vector<2x8x8xf32>, vector<2x8x8xf32> -> vector<2x8x8xf32>
    "tpu.trace_stop"() : () -> ()
    %85 = vector.extract_strided_slice %42 {offsets = [0, 0, 16], sizes = [2, 8, 8], strides = [1, 1, 1]} : vector<2x8x96xf32> to vector<2x8x8xf32>
    %86 = vector.extract_strided_slice %42 {offsets = [0, 0, 48], sizes = [2, 8, 8], strides = [1, 1, 1]} : vector<2x8x96xf32> to vector<2x8x8xf32>
    %87 = vector.extract_strided_slice %42 {offsets = [0, 0, 80], sizes = [2, 8, 8], strides = [1, 1, 1]} : vector<2x8x96xf32> to vector<2x8x8xf32>
    "tpu.trace_start"() <{level = 10 : i32, message = "bqd,bkd->bqk"}> : () -> ()
    %cst_35 = arith.constant dense<0.000000e+00> : vector<2x8x8xf32>
    %88 = tpu.matmul %85, %86, %cst_35 {dimension_numbers = #tpu.dot_dimension_numbers<[2], [2], [1], [1], [0, 0, 0, 1, 1, 1], [0], [0]>} : vector<2x8x8xf32>, vector<2x8x8xf32>, vector<2x8x8xf32> -> vector<2x8x8xf32>
    "tpu.trace_stop"() : () -> ()
    %cst_36 = arith.constant 0.176776692 : f32
    %89 = vector.broadcast %cst_36 : f32 to vector<2x8x8xf32>
    %90 = arith.mulf %88, %89 : vector<2x8x8xf32>
    %cst_37 = arith.constant -1.000000e+09 : f32
    %91 = vector.shape_cast %34 : vector<2x1x8xi1> to vector<2x1x8xi1>
    %92 = vector.broadcast %91 : vector<2x1x8xi1> to vector<2x8x8xi1>
    %93 = vector.broadcast %cst_37 : f32 to vector<2x8x8xf32>
    %94 = arith.select %92, %90, %93 : vector<2x8x8xi1>, vector<2x8x8xf32>
    %cst_38 = arith.constant dense<0xFF800000> : vector<2x8xf32>
    %95 = vector.multi_reduction <maximumf>, %94, %cst_38 [2] : vector<2x8x8xf32> to vector<2x8xf32>
    %96 = vector.shape_cast %95 : vector<2x8xf32> to vector<2x8x1xf32>
    %97 = vector.broadcast %96 : vector<2x8x1xf32> to vector<2x8x8xf32>
    %98 = arith.subf %94, %97 : vector<2x8x8xf32>
    %99 = math.exp %98 : vector<2x8x8xf32>
    %cst_39 = arith.constant dense<0.000000e+00> : vector<2x8xf32>
    %100 = vector.multi_reduction <add>, %99, %cst_39 [2] : vector<2x8x8xf32> to vector<2x8xf32>
    %101 = vector.shape_cast %100 : vector<2x8xf32> to vector<2x8x1xf32>
    %102 = tpu.reciprocal %101 {approx = true} : vector<2x8x1xf32> -> vector<2x8x1xf32>
    %103 = vector.broadcast %102 : vector<2x8x1xf32> to vector<2x8x8xf32>
    %104 = arith.mulf %99, %103 : vector<2x8x8xf32>
    "tpu.trace_start"() <{level = 10 : i32, message = "bqk,bkd->bqd"}> : () -> ()
    %cst_40 = arith.constant dense<0.000000e+00> : vector<2x8x8xf32>
    %105 = tpu.matmul %104, %87, %cst_40 {dimension_numbers = #tpu.dot_dimension_numbers<[2], [1], [1], [2], [0, 0, 0, 1, 1, 2], [0], [0]>} : vector<2x8x8xf32>, vector<2x8x8xf32>, vector<2x8x8xf32> -> vector<2x8x8xf32>
    "tpu.trace_stop"() : () -> ()
    %106 = vector.extract_strided_slice %42 {offsets = [0, 0, 24], sizes = [2, 8, 8], strides = [1, 1, 1]} : vector<2x8x96xf32> to vector<2x8x8xf32>
    %107 = vector.extract_strided_slice %42 {offsets = [0, 0, 56], sizes = [2, 8, 8], strides = [1, 1, 1]} : vector<2x8x96xf32> to vector<2x8x8xf32>
    %108 = vector.extract_strided_slice %42 {offsets = [0, 0, 88], sizes = [2, 8, 8], strides = [1, 1, 1]} : vector<2x8x96xf32> to vector<2x8x8xf32>
    "tpu.trace_start"() <{level = 10 : i32, message = "bqd,bkd->bqk"}> : () -> ()
    %cst_41 = arith.constant dense<0.000000e+00> : vector<2x8x8xf32>
    %109 = tpu.matmul %106, %107, %cst_41 {dimension_numbers = #tpu.dot_dimension_numbers<[2], [2], [1], [1], [0, 0, 0, 1, 1, 1], [0], [0]>} : vector<2x8x8xf32>, vector<2x8x8xf32>, vector<2x8x8xf32> -> vector<2x8x8xf32>
    "tpu.trace_stop"() : () -> ()
    %cst_42 = arith.constant 0.176776692 : f32
    %110 = vector.broadcast %cst_42 : f32 to vector<2x8x8xf32>
    %111 = arith.mulf %109, %110 : vector<2x8x8xf32>
    %cst_43 = arith.constant -1.000000e+09 : f32
    %112 = vector.shape_cast %34 : vector<2x1x8xi1> to vector<2x1x8xi1>
    %113 = vector.broadcast %112 : vector<2x1x8xi1> to vector<2x8x8xi1>
    %114 = vector.broadcast %cst_43 : f32 to vector<2x8x8xf32>
    %115 = arith.select %113, %111, %114 : vector<2x8x8xi1>, vector<2x8x8xf32>
    %cst_44 = arith.constant dense<0xFF800000> : vector<2x8xf32>
    %116 = vector.multi_reduction <maximumf>, %115, %cst_44 [2] : vector<2x8x8xf32> to vector<2x8xf32>
    %117 = vector.shape_cast %116 : vector<2x8xf32> to vector<2x8x1xf32>
    %118 = vector.broadcast %117 : vector<2x8x1xf32> to vector<2x8x8xf32>
    %119 = arith.subf %115, %118 : vector<2x8x8xf32>
    %120 = math.exp %119 : vector<2x8x8xf32>
    %cst_45 = arith.constant dense<0.000000e+00> : vector<2x8xf32>
    %121 = vector.multi_reduction <add>, %120, %cst_45 [2] : vector<2x8x8xf32> to vector<2x8xf32>
    %122 = vector.shape_cast %121 : vector<2x8xf32> to vector<2x8x1xf32>
    %123 = tpu.reciprocal %122 {approx = true} : vector<2x8x1xf32> -> vector<2x8x1xf32>
    %124 = vector.broadcast %123 : vector<2x8x1xf32> to vector<2x8x8xf32>
    %125 = arith.mulf %120, %124 : vector<2x8x8xf32>
    "tpu.trace_start"() <{level = 10 : i32, message = "bqk,bkd->bqd"}> : () -> ()
    %cst_46 = arith.constant dense<0.000000e+00> : vector<2x8x8xf32>
    %126 = tpu.matmul %125, %108, %cst_46 {dimension_numbers = #tpu.dot_dimension_numbers<[2], [1], [1], [2], [0, 0, 0, 1, 1, 2], [0], [0]>} : vector<2x8x8xf32>, vector<2x8x8xf32>, vector<2x8x8xf32> -> vector<2x8x8xf32>
    "tpu.trace_stop"() : () -> ()
    %127 = tpu.concatenate %63, %84, %105, %126 in 2 : vector<2x8x8xf32>, vector<2x8x8xf32>, vector<2x8x8xf32>, vector<2x8x8xf32> -> vector<2x8x32xf32>
    %128 = vector.shape_cast %127 : vector<2x8x32xf32> to vector<16x32xf32>
    %c0_47 = arith.constant 0 : index
    %c0_48 = arith.constant 0 : index
    %c0_49 = arith.constant 0 : index
    %129 = vector.load %arg7[%c0_47, %c0_48, %c0_49] : memref<2x32x32xf32, #tpu.memory_space<vmem>>, vector<1x32x32xf32>
    %130 = vector.shape_cast %129 : vector<1x32x32xf32> to vector<32x32xf32>
    %cst_50 = arith.constant dense<0.000000e+00> : vector<16x32xf32>
    %131 = tpu.matmul %128, %130, %cst_50 {dimension_numbers = #tpu.dot_dimension_numbers<[1], [0], [0], [1], [0, 0, 1, 1], [], []>} : vector<16x32xf32>, vector<32x32xf32>, vector<16x32xf32> -> vector<16x32xf32>
    %c0_51 = arith.constant 0 : index
    %c0_52 = arith.constant 0 : index
    %c0_53 = arith.constant 0 : index
    %132 = vector.load %arg8[%c0_51, %c0_52, %c0_53] : memref<2x1x32xf32, #tpu.memory_space<vmem>>, vector<1x1x32xf32>
    %133 = vector.shape_cast %132 : vector<1x1x32xf32> to vector<1x32xf32>
    %134 = vector.broadcast %133 : vector<1x32xf32> to vector<16x32xf32>
    %135 = arith.addf %131, %134 : vector<16x32xf32>
    %136 = arith.addf %135, %31 : vector<16x32xf32>
    %c0_54 = arith.constant 0 : index
    %c0_55 = arith.constant 0 : index
    %c0_56 = arith.constant 0 : index
    %137 = vector.load %arg9[%c0_54, %c0_55, %c0_56] : memref<2x1x32xf32, #tpu.memory_space<vmem>>, vector<1x1x32xf32>
    %138 = vector.shape_cast %137 : vector<1x1x32xf32> to vector<1x32xf32>
    %c0_57 = arith.constant 0 : index
    %c0_58 = arith.constant 0 : index
    %c0_59 = arith.constant 0 : index
    %139 = vector.load %arg10[%c0_57, %c0_58, %c0_59] : memref<2x1x32xf32, #tpu.memory_space<vmem>>, vector<1x1x32xf32>
    %140 = vector.shape_cast %139 : vector<1x1x32xf32> to vector<1x32xf32>
    %cst_60 = arith.constant dense<0.000000e+00> : vector<16xf32>
    %141 = vector.multi_reduction <add>, %136, %cst_60 [1] : vector<16x32xf32> to vector<16xf32>
    %142 = vector.shape_cast %141 : vector<16xf32> to vector<16x1xf32>
    %cst_61 = arith.constant 3.200000e+01 : f32
    %143 = vector.broadcast %cst_61 : f32 to vector<16x1xf32>
    %144 = arith.divf %142, %143 : vector<16x1xf32>
    %145 = vector.broadcast %144 : vector<16x1xf32> to vector<16x32xf32>
    %146 = arith.subf %136, %145 : vector<16x32xf32>
    %147 = arith.mulf %146, %146 : vector<16x32xf32>
    %cst_62 = arith.constant dense<0.000000e+00> : vector<16xf32>
    %148 = vector.multi_reduction <add>, %147, %cst_62 [1] : vector<16x32xf32> to vector<16xf32>
    %149 = vector.shape_cast %148 : vector<16xf32> to vector<16x1xf32>
    %cst_63 = arith.constant 3.200000e+01 : f32
    %150 = vector.broadcast %cst_63 : f32 to vector<16x1xf32>
    %151 = arith.divf %149, %150 : vector<16x1xf32>
    %152 = vector.broadcast %144 : vector<16x1xf32> to vector<16x32xf32>
    %153 = arith.subf %136, %152 : vector<16x32xf32>
    %cst_64 = arith.constant 9.99999997E-7 : f32
    %154 = vector.broadcast %cst_64 : f32 to vector<16x1xf32>
    %155 = arith.addf %151, %154 : vector<16x1xf32>
    %156 = math.rsqrt %155 : vector<16x1xf32>
    %157 = vector.broadcast %156 : vector<16x1xf32> to vector<16x32xf32>
    %158 = arith.mulf %153, %157 : vector<16x32xf32>
    %159 = vector.broadcast %138 : vector<1x32xf32> to vector<16x32xf32>
    %160 = arith.mulf %158, %159 : vector<16x32xf32>
    %161 = vector.broadcast %140 : vector<1x32xf32> to vector<16x32xf32>
    %162 = arith.addf %160, %161 : vector<16x32xf32>
    %c0_65 = arith.constant 0 : index
    %c0_66 = arith.constant 0 : index
    %c0_67 = arith.constant 0 : index
    %163 = vector.load %arg11[%c0_65, %c0_66, %c0_67] : memref<2x32x128xf32, #tpu.memory_space<vmem>>, vector<1x32x128xf32>
    %164 = vector.shape_cast %163 : vector<1x32x128xf32> to vector<32x128xf32>
    %cst_68 = arith.constant dense<0.000000e+00> : vector<16x128xf32>
    %165 = tpu.matmul %162, %164, %cst_68 {dimension_numbers = #tpu.dot_dimension_numbers<[1], [0], [0], [1], [0, 0, 1, 1], [], []>} : vector<16x32xf32>, vector<32x128xf32>, vector<16x128xf32> -> vector<16x128xf32>
    %c0_69 = arith.constant 0 : index
    %c0_70 = arith.constant 0 : index
    %c0_71 = arith.constant 0 : index
    %166 = vector.load %arg12[%c0_69, %c0_70, %c0_71] : memref<2x1x128xf32, #tpu.memory_space<vmem>>, vector<1x1x128xf32>
    %167 = vector.shape_cast %166 : vector<1x1x128xf32> to vector<1x128xf32>
    %168 = vector.broadcast %167 : vector<1x128xf32> to vector<16x128xf32>
    %169 = arith.addf %165, %168 : vector<16x128xf32>
    %170 = arith.mulf %169, %169 : vector<16x128xf32>
    %171 = arith.mulf %169, %170 : vector<16x128xf32>
    %cst_72 = arith.constant 4.471500e-02 : f32
    %172 = vector.broadcast %cst_72 : f32 to vector<16x128xf32>
    %173 = arith.mulf %172, %171 : vector<16x128xf32>
    %174 = arith.addf %169, %173 : vector<16x128xf32>
    %cst_73 = arith.constant 0.797884583 : f32
    %175 = vector.broadcast %cst_73 : f32 to vector<16x128xf32>
    %176 = arith.mulf %175, %174 : vector<16x128xf32>
    %177 = math.tanh %176 : vector<16x128xf32>
    %cst_74 = arith.constant 1.000000e+00 : f32
    %178 = vector.broadcast %cst_74 : f32 to vector<16x128xf32>
    %179 = arith.addf %178, %177 : vector<16x128xf32>
    %cst_75 = arith.constant 5.000000e-01 : f32
    %180 = vector.broadcast %cst_75 : f32 to vector<16x128xf32>
    %181 = arith.mulf %180, %179 : vector<16x128xf32>
    %182 = arith.mulf %169, %181 : vector<16x128xf32>
    %c0_76 = arith.constant 0 : index
    %c0_77 = arith.constant 0 : index
    %c0_78 = arith.constant 0 : index
    %183 = vector.load %arg13[%c0_76, %c0_77, %c0_78] : memref<2x128x32xf32, #tpu.memory_space<vmem>>, vector<1x128x32xf32>
    %184 = vector.shape_cast %183 : vector<1x128x32xf32> to vector<128x32xf32>
    %cst_79 = arith.constant dense<0.000000e+00> : vector<16x32xf32>
    %185 = tpu.matmul %182, %184, %cst_79 {dimension_numbers = #tpu.dot_dimension_numbers<[1], [0], [0], [1], [0, 0, 1, 1], [], []>} : vector<16x128xf32>, vector<128x32xf32>, vector<16x32xf32> -> vector<16x32xf32>
    %c0_80 = arith.constant 0 : index
    %c0_81 = arith.constant 0 : index
    %c0_82 = arith.constant 0 : index
    %186 = vector.load %arg14[%c0_80, %c0_81, %c0_82] : memref<2x1x32xf32, #tpu.memory_space<vmem>>, vector<1x1x32xf32>
    %187 = vector.shape_cast %186 : vector<1x1x32xf32> to vector<1x32xf32>
    %188 = vector.broadcast %187 : vector<1x32xf32> to vector<16x32xf32>
    %189 = arith.addf %185, %188 : vector<16x32xf32>
    %190 = arith.addf %189, %162 : vector<16x32xf32>
    %c0_83 = arith.constant 0 : index
    %c0_84 = arith.constant 0 : index
    %c0_85 = arith.constant 0 : index
    %191 = vector.load %arg15[%c0_83, %c0_84, %c0_85] : memref<2x1x32xf32, #tpu.memory_space<vmem>>, vector<1x1x32xf32>
    %192 = vector.shape_cast %191 : vector<1x1x32xf32> to vector<1x32xf32>
    %c0_86 = arith.constant 0 : index
    %c0_87 = arith.constant 0 : index
    %c0_88 = arith.constant 0 : index
    %193 = vector.load %arg16[%c0_86, %c0_87, %c0_88] : memref<2x1x32xf32, #tpu.memory_space<vmem>>, vector<1x1x32xf32>
    %194 = vector.shape_cast %193 : vector<1x1x32xf32> to vector<1x32xf32>
    %cst_89 = arith.constant dense<0.000000e+00> : vector<16xf32>
    %195 = vector.multi_reduction <add>, %190, %cst_89 [1] : vector<16x32xf32> to vector<16xf32>
    %196 = vector.shape_cast %195 : vector<16xf32> to vector<16x1xf32>
    %cst_90 = arith.constant 3.200000e+01 : f32
    %197 = vector.broadcast %cst_90 : f32 to vector<16x1xf32>
    %198 = arith.divf %196, %197 : vector<16x1xf32>
    %199 = vector.broadcast %198 : vector<16x1xf32> to vector<16x32xf32>
    %200 = arith.subf %190, %199 : vector<16x32xf32>
    %201 = arith.mulf %200, %200 : vector<16x32xf32>
    %cst_91 = arith.constant dense<0.000000e+00> : vector<16xf32>
    %202 = vector.multi_reduction <add>, %201, %cst_91 [1] : vector<16x32xf32> to vector<16xf32>
    %203 = vector.shape_cast %202 : vector<16xf32> to vector<16x1xf32>
    %cst_92 = arith.constant 3.200000e+01 : f32
    %204 = vector.broadcast %cst_92 : f32 to vector<16x1xf32>
    %205 = arith.divf %203, %204 : vector<16x1xf32>
    %206 = vector.broadcast %198 : vector<16x1xf32> to vector<16x32xf32>
    %207 = arith.subf %190, %206 : vector<16x32xf32>
    %cst_93 = arith.constant 9.99999997E-7 : f32
    %208 = vector.broadcast %cst_93 : f32 to vector<16x1xf32>
    %209 = arith.addf %205, %208 : vector<16x1xf32>
    %210 = math.rsqrt %209 : vector<16x1xf32>
    %211 = vector.broadcast %210 : vector<16x1xf32> to vector<16x32xf32>
    %212 = arith.mulf %207, %211 : vector<16x32xf32>
    %213 = vector.broadcast %192 : vector<1x32xf32> to vector<16x32xf32>
    %214 = arith.mulf %212, %213 : vector<16x32xf32>
    %215 = vector.broadcast %194 : vector<1x32xf32> to vector<16x32xf32>
    %216 = arith.addf %214, %215 : vector<16x32xf32>
    %c1 = arith.constant 1 : index
    %c0_94 = arith.constant 0 : index
    %c0_95 = arith.constant 0 : index
    %217 = vector.load %arg5[%c1, %c0_94, %c0_95] : memref<2x32x96xf32, #tpu.memory_space<vmem>>, vector<1x32x96xf32>
    %218 = vector.shape_cast %217 : vector<1x32x96xf32> to vector<32x96xf32>
    %cst_96 = arith.constant dense<0.000000e+00> : vector<16x96xf32>
    %219 = tpu.matmul %216, %218, %cst_96 {dimension_numbers = #tpu.dot_dimension_numbers<[1], [0], [0], [1], [0, 0, 1, 1], [], []>} : vector<16x32xf32>, vector<32x96xf32>, vector<16x96xf32> -> vector<16x96xf32>
    %c1_97 = arith.constant 1 : index
    %c0_98 = arith.constant 0 : index
    %c0_99 = arith.constant 0 : index
    %220 = vector.load %arg6[%c1_97, %c0_98, %c0_99] : memref<2x1x96xf32, #tpu.memory_space<vmem>>, vector<1x1x96xf32>
    %221 = vector.shape_cast %220 : vector<1x1x96xf32> to vector<1x96xf32>
    %222 = vector.broadcast %221 : vector<1x96xf32> to vector<16x96xf32>
    %223 = arith.addf %219, %222 : vector<16x96xf32>
    %224 = vector.shape_cast %223 : vector<16x96xf32> to vector<2x8x96xf32>
    %225 = vector.extract_strided_slice %224 {offsets = [0, 0, 0], sizes = [2, 8, 8], strides = [1, 1, 1]} : vector<2x8x96xf32> to vector<2x8x8xf32>
    %226 = vector.extract_strided_slice %224 {offsets = [0, 0, 32], sizes = [2, 8, 8], strides = [1, 1, 1]} : vector<2x8x96xf32> to vector<2x8x8xf32>
    %227 = vector.extract_strided_slice %224 {offsets = [0, 0, 64], sizes = [2, 8, 8], strides = [1, 1, 1]} : vector<2x8x96xf32> to vector<2x8x8xf32>
    "tpu.trace_start"() <{level = 10 : i32, message = "bqd,bkd->bqk"}> : () -> ()
    %cst_100 = arith.constant dense<0.000000e+00> : vector<2x8x8xf32>
    %228 = tpu.matmul %225, %226, %cst_100 {dimension_numbers = #tpu.dot_dimension_numbers<[2], [2], [1], [1], [0, 0, 0, 1, 1, 1], [0], [0]>} : vector<2x8x8xf32>, vector<2x8x8xf32>, vector<2x8x8xf32> -> vector<2x8x8xf32>
    "tpu.trace_stop"() : () -> ()
    %cst_101 = arith.constant 0.176776692 : f32
    %229 = vector.broadcast %cst_101 : f32 to vector<2x8x8xf32>
    %230 = arith.mulf %228, %229 : vector<2x8x8xf32>
    %cst_102 = arith.constant -1.000000e+09 : f32
    %231 = vector.shape_cast %34 : vector<2x1x8xi1> to vector<2x1x8xi1>
    %232 = vector.broadcast %231 : vector<2x1x8xi1> to vector<2x8x8xi1>
    %233 = vector.broadcast %cst_102 : f32 to vector<2x8x8xf32>
    %234 = arith.select %232, %230, %233 : vector<2x8x8xi1>, vector<2x8x8xf32>
    %cst_103 = arith.constant dense<0xFF800000> : vector<2x8xf32>
    %235 = vector.multi_reduction <maximumf>, %234, %cst_103 [2] : vector<2x8x8xf32> to vector<2x8xf32>
    %236 = vector.shape_cast %235 : vector<2x8xf32> to vector<2x8x1xf32>
    %237 = vector.broadcast %236 : vector<2x8x1xf32> to vector<2x8x8xf32>
    %238 = arith.subf %234, %237 : vector<2x8x8xf32>
    %239 = math.exp %238 : vector<2x8x8xf32>
    %cst_104 = arith.constant dense<0.000000e+00> : vector<2x8xf32>
    %240 = vector.multi_reduction <add>, %239, %cst_104 [2] : vector<2x8x8xf32> to vector<2x8xf32>
    %241 = vector.shape_cast %240 : vector<2x8xf32> to vector<2x8x1xf32>
    %242 = tpu.reciprocal %241 {approx = true} : vector<2x8x1xf32> -> vector<2x8x1xf32>
    %243 = vector.broadcast %242 : vector<2x8x1xf32> to vector<2x8x8xf32>
    %244 = arith.mulf %239, %243 : vector<2x8x8xf32>
    "tpu.trace_start"() <{level = 10 : i32, message = "bqk,bkd->bqd"}> : () -> ()
    %cst_105 = arith.constant dense<0.000000e+00> : vector<2x8x8xf32>
    %245 = tpu.matmul %244, %227, %cst_105 {dimension_numbers = #tpu.dot_dimension_numbers<[2], [1], [1], [2], [0, 0, 0, 1, 1, 2], [0], [0]>} : vector<2x8x8xf32>, vector<2x8x8xf32>, vector<2x8x8xf32> -> vector<2x8x8xf32>
    "tpu.trace_stop"() : () -> ()
    %246 = vector.extract_strided_slice %224 {offsets = [0, 0, 8], sizes = [2, 8, 8], strides = [1, 1, 1]} : vector<2x8x96xf32> to vector<2x8x8xf32>
    %247 = vector.extract_strided_slice %224 {offsets = [0, 0, 40], sizes = [2, 8, 8], strides = [1, 1, 1]} : vector<2x8x96xf32> to vector<2x8x8xf32>
    %248 = vector.extract_strided_slice %224 {offsets = [0, 0, 72], sizes = [2, 8, 8], strides = [1, 1, 1]} : vector<2x8x96xf32> to vector<2x8x8xf32>
    "tpu.trace_start"() <{level = 10 : i32, message = "bqd,bkd->bqk"}> : () -> ()
    %cst_106 = arith.constant dense<0.000000e+00> : vector<2x8x8xf32>
    %249 = tpu.matmul %246, %247, %cst_106 {dimension_numbers = #tpu.dot_dimension_numbers<[2], [2], [1], [1], [0, 0, 0, 1, 1, 1], [0], [0]>} : vector<2x8x8xf32>, vector<2x8x8xf32>, vector<2x8x8xf32> -> vector<2x8x8xf32>
    "tpu.trace_stop"() : () -> ()
    %cst_107 = arith.constant 0.176776692 : f32
    %250 = vector.broadcast %cst_107 : f32 to vector<2x8x8xf32>
    %251 = arith.mulf %249, %250 : vector<2x8x8xf32>
    %cst_108 = arith.constant -1.000000e+09 : f32
    %252 = vector.shape_cast %34 : vector<2x1x8xi1> to vector<2x1x8xi1>
    %253 = vector.broadcast %252 : vector<2x1x8xi1> to vector<2x8x8xi1>
    %254 = vector.broadcast %cst_108 : f32 to vector<2x8x8xf32>
    %255 = arith.select %253, %251, %254 : vector<2x8x8xi1>, vector<2x8x8xf32>
    %cst_109 = arith.constant dense<0xFF800000> : vector<2x8xf32>
    %256 = vector.multi_reduction <maximumf>, %255, %cst_109 [2] : vector<2x8x8xf32> to vector<2x8xf32>
    %257 = vector.shape_cast %256 : vector<2x8xf32> to vector<2x8x1xf32>
    %258 = vector.broadcast %257 : vector<2x8x1xf32> to vector<2x8x8xf32>
    %259 = arith.subf %255, %258 : vector<2x8x8xf32>
    %260 = math.exp %259 : vector<2x8x8xf32>
    %cst_110 = arith.constant dense<0.000000e+00> : vector<2x8xf32>
    %261 = vector.multi_reduction <add>, %260, %cst_110 [2] : vector<2x8x8xf32> to vector<2x8xf32>
    %262 = vector.shape_cast %261 : vector<2x8xf32> to vector<2x8x1xf32>
    %263 = tpu.reciprocal %262 {approx = true} : vector<2x8x1xf32> -> vector<2x8x1xf32>
    %264 = vector.broadcast %263 : vector<2x8x1xf32> to vector<2x8x8xf32>
    %265 = arith.mulf %260, %264 : vector<2x8x8xf32>
    "tpu.trace_start"() <{level = 10 : i32, message = "bqk,bkd->bqd"}> : () -> ()
    %cst_111 = arith.constant dense<0.000000e+00> : vector<2x8x8xf32>
    %266 = tpu.matmul %265, %248, %cst_111 {dimension_numbers = #tpu.dot_dimension_numbers<[2], [1], [1], [2], [0, 0, 0, 1, 1, 2], [0], [0]>} : vector<2x8x8xf32>, vector<2x8x8xf32>, vector<2x8x8xf32> -> vector<2x8x8xf32>
    "tpu.trace_stop"() : () -> ()
    %267 = vector.extract_strided_slice %224 {offsets = [0, 0, 16], sizes = [2, 8, 8], strides = [1, 1, 1]} : vector<2x8x96xf32> to vector<2x8x8xf32>
    %268 = vector.extract_strided_slice %224 {offsets = [0, 0, 48], sizes = [2, 8, 8], strides = [1, 1, 1]} : vector<2x8x96xf32> to vector<2x8x8xf32>
    %269 = vector.extract_strided_slice %224 {offsets = [0, 0, 80], sizes = [2, 8, 8], strides = [1, 1, 1]} : vector<2x8x96xf32> to vector<2x8x8xf32>
    "tpu.trace_start"() <{level = 10 : i32, message = "bqd,bkd->bqk"}> : () -> ()
    %cst_112 = arith.constant dense<0.000000e+00> : vector<2x8x8xf32>
    %270 = tpu.matmul %267, %268, %cst_112 {dimension_numbers = #tpu.dot_dimension_numbers<[2], [2], [1], [1], [0, 0, 0, 1, 1, 1], [0], [0]>} : vector<2x8x8xf32>, vector<2x8x8xf32>, vector<2x8x8xf32> -> vector<2x8x8xf32>
    "tpu.trace_stop"() : () -> ()
    %cst_113 = arith.constant 0.176776692 : f32
    %271 = vector.broadcast %cst_113 : f32 to vector<2x8x8xf32>
    %272 = arith.mulf %270, %271 : vector<2x8x8xf32>
    %cst_114 = arith.constant -1.000000e+09 : f32
    %273 = vector.shape_cast %34 : vector<2x1x8xi1> to vector<2x1x8xi1>
    %274 = vector.broadcast %273 : vector<2x1x8xi1> to vector<2x8x8xi1>
    %275 = vector.broadcast %cst_114 : f32 to vector<2x8x8xf32>
    %276 = arith.select %274, %272, %275 : vector<2x8x8xi1>, vector<2x8x8xf32>
    %cst_115 = arith.constant dense<0xFF800000> : vector<2x8xf32>
    %277 = vector.multi_reduction <maximumf>, %276, %cst_115 [2] : vector<2x8x8xf32> to vector<2x8xf32>
    %278 = vector.shape_cast %277 : vector<2x8xf32> to vector<2x8x1xf32>
    %279 = vector.broadcast %278 : vector<2x8x1xf32> to vector<2x8x8xf32>
    %280 = arith.subf %276, %279 : vector<2x8x8xf32>
    %281 = math.exp %280 : vector<2x8x8xf32>
    %cst_116 = arith.constant dense<0.000000e+00> : vector<2x8xf32>
    %282 = vector.multi_reduction <add>, %281, %cst_116 [2] : vector<2x8x8xf32> to vector<2x8xf32>
    %283 = vector.shape_cast %282 : vector<2x8xf32> to vector<2x8x1xf32>
    %284 = tpu.reciprocal %283 {approx = true} : vector<2x8x1xf32> -> vector<2x8x1xf32>
    %285 = vector.broadcast %284 : vector<2x8x1xf32> to vector<2x8x8xf32>
    %286 = arith.mulf %281, %285 : vector<2x8x8xf32>
    "tpu.trace_start"() <{level = 10 : i32, message = "bqk,bkd->bqd"}> : () -> ()
    %cst_117 = arith.constant dense<0.000000e+00> : vector<2x8x8xf32>
    %287 = tpu.matmul %286, %269, %cst_117 {dimension_numbers = #tpu.dot_dimension_numbers<[2], [1], [1], [2], [0, 0, 0, 1, 1, 2], [0], [0]>} : vector<2x8x8xf32>, vector<2x8x8xf32>, vector<2x8x8xf32> -> vector<2x8x8xf32>
    "tpu.trace_stop"() : () -> ()
    %288 = vector.extract_strided_slice %224 {offsets = [0, 0, 24], sizes = [2, 8, 8], strides = [1, 1, 1]} : vector<2x8x96xf32> to vector<2x8x8xf32>
    %289 = vector.extract_strided_slice %224 {offsets = [0, 0, 56], sizes = [2, 8, 8], strides = [1, 1, 1]} : vector<2x8x96xf32> to vector<2x8x8xf32>
    %290 = vector.extract_strided_slice %224 {offsets = [0, 0, 88], sizes = [2, 8, 8], strides = [1, 1, 1]} : vector<2x8x96xf32> to vector<2x8x8xf32>
    "tpu.trace_start"() <{level = 10 : i32, message = "bqd,bkd->bqk"}> : () -> ()
    %cst_118 = arith.constant dense<0.000000e+00> : vector<2x8x8xf32>
    %291 = tpu.matmul %288, %289, %cst_118 {dimension_numbers = #tpu.dot_dimension_numbers<[2], [2], [1], [1], [0, 0, 0, 1, 1, 1], [0], [0]>} : vector<2x8x8xf32>, vector<2x8x8xf32>, vector<2x8x8xf32> -> vector<2x8x8xf32>
    "tpu.trace_stop"() : () -> ()
    %cst_119 = arith.constant 0.176776692 : f32
    %292 = vector.broadcast %cst_119 : f32 to vector<2x8x8xf32>
    %293 = arith.mulf %291, %292 : vector<2x8x8xf32>
    %cst_120 = arith.constant -1.000000e+09 : f32
    %294 = vector.shape_cast %34 : vector<2x1x8xi1> to vector<2x1x8xi1>
    %295 = vector.broadcast %294 : vector<2x1x8xi1> to vector<2x8x8xi1>
    %296 = vector.broadcast %cst_120 : f32 to vector<2x8x8xf32>
    %297 = arith.select %295, %293, %296 : vector<2x8x8xi1>, vector<2x8x8xf32>
    %cst_121 = arith.constant dense<0xFF800000> : vector<2x8xf32>
    %298 = vector.multi_reduction <maximumf>, %297, %cst_121 [2] : vector<2x8x8xf32> to vector<2x8xf32>
    %299 = vector.shape_cast %298 : vector<2x8xf32> to vector<2x8x1xf32>
    %300 = vector.broadcast %299 : vector<2x8x1xf32> to vector<2x8x8xf32>
    %301 = arith.subf %297, %300 : vector<2x8x8xf32>
    %302 = math.exp %301 : vector<2x8x8xf32>
    %cst_122 = arith.constant dense<0.000000e+00> : vector<2x8xf32>
    %303 = vector.multi_reduction <add>, %302, %cst_122 [2] : vector<2x8x8xf32> to vector<2x8xf32>
    %304 = vector.shape_cast %303 : vector<2x8xf32> to vector<2x8x1xf32>
    %305 = tpu.reciprocal %304 {approx = true} : vector<2x8x1xf32> -> vector<2x8x1xf32>
    %306 = vector.broadcast %305 : vector<2x8x1xf32> to vector<2x8x8xf32>
    %307 = arith.mulf %302, %306 : vector<2x8x8xf32>
    "tpu.trace_start"() <{level = 10 : i32, message = "bqk,bkd->bqd"}> : () -> ()
    %cst_123 = arith.constant dense<0.000000e+00> : vector<2x8x8xf32>
    %308 = tpu.matmul %307, %290, %cst_123 {dimension_numbers = #tpu.dot_dimension_numbers<[2], [1], [1], [2], [0, 0, 0, 1, 1, 2], [0], [0]>} : vector<2x8x8xf32>, vector<2x8x8xf32>, vector<2x8x8xf32> -> vector<2x8x8xf32>
    "tpu.trace_stop"() : () -> ()
    %309 = tpu.concatenate %245, %266, %287, %308 in 2 : vector<2x8x8xf32>, vector<2x8x8xf32>, vector<2x8x8xf32>, vector<2x8x8xf32> -> vector<2x8x32xf32>
    %310 = vector.shape_cast %309 : vector<2x8x32xf32> to vector<16x32xf32>
    %c1_124 = arith.constant 1 : index
    %c0_125 = arith.constant 0 : index
    %c0_126 = arith.constant 0 : index
    %311 = vector.load %arg7[%c1_124, %c0_125, %c0_126] : memref<2x32x32xf32, #tpu.memory_space<vmem>>, vector<1x32x32xf32>
    %312 = vector.shape_cast %311 : vector<1x32x32xf32> to vector<32x32xf32>
    %cst_127 = arith.constant dense<0.000000e+00> : vector<16x32xf32>
    %313 = tpu.matmul %310, %312, %cst_127 {dimension_numbers = #tpu.dot_dimension_numbers<[1], [0], [0], [1], [0, 0, 1, 1], [], []>} : vector<16x32xf32>, vector<32x32xf32>, vector<16x32xf32> -> vector<16x32xf32>
    %c1_128 = arith.constant 1 : index
    %c0_129 = arith.constant 0 : index
    %c0_130 = arith.constant 0 : index
    %314 = vector.load %arg8[%c1_128, %c0_129, %c0_130] : memref<2x1x32xf32, #tpu.memory_space<vmem>>, vector<1x1x32xf32>
    %315 = vector.shape_cast %314 : vector<1x1x32xf32> to vector<1x32xf32>
    %316 = vector.broadcast %315 : vector<1x32xf32> to vector<16x32xf32>
    %317 = arith.addf %313, %316 : vector<16x32xf32>
    %318 = arith.addf %317, %216 : vector<16x32xf32>
    %c1_131 = arith.constant 1 : index
    %c0_132 = arith.constant 0 : index
    %c0_133 = arith.constant 0 : index
    %319 = vector.load %arg9[%c1_131, %c0_132, %c0_133] : memref<2x1x32xf32, #tpu.memory_space<vmem>>, vector<1x1x32xf32>
    %320 = vector.shape_cast %319 : vector<1x1x32xf32> to vector<1x32xf32>
    %c1_134 = arith.constant 1 : index
    %c0_135 = arith.constant 0 : index
    %c0_136 = arith.constant 0 : index
    %321 = vector.load %arg10[%c1_134, %c0_135, %c0_136] : memref<2x1x32xf32, #tpu.memory_space<vmem>>, vector<1x1x32xf32>
    %322 = vector.shape_cast %321 : vector<1x1x32xf32> to vector<1x32xf32>
    %cst_137 = arith.constant dense<0.000000e+00> : vector<16xf32>
    %323 = vector.multi_reduction <add>, %318, %cst_137 [1] : vector<16x32xf32> to vector<16xf32>
    %324 = vector.shape_cast %323 : vector<16xf32> to vector<16x1xf32>
    %cst_138 = arith.constant 3.200000e+01 : f32
    %325 = vector.broadcast %cst_138 : f32 to vector<16x1xf32>
    %326 = arith.divf %324, %325 : vector<16x1xf32>
    %327 = vector.broadcast %326 : vector<16x1xf32> to vector<16x32xf32>
    %328 = arith.subf %318, %327 : vector<16x32xf32>
    %329 = arith.mulf %328, %328 : vector<16x32xf32>
    %cst_139 = arith.constant dense<0.000000e+00> : vector<16xf32>
    %330 = vector.multi_reduction <add>, %329, %cst_139 [1] : vector<16x32xf32> to vector<16xf32>
    %331 = vector.shape_cast %330 : vector<16xf32> to vector<16x1xf32>
    %cst_140 = arith.constant 3.200000e+01 : f32
    %332 = vector.broadcast %cst_140 : f32 to vector<16x1xf32>
    %333 = arith.divf %331, %332 : vector<16x1xf32>
    %334 = vector.broadcast %326 : vector<16x1xf32> to vector<16x32xf32>
    %335 = arith.subf %318, %334 : vector<16x32xf32>
    %cst_141 = arith.constant 9.99999997E-7 : f32
    %336 = vector.broadcast %cst_141 : f32 to vector<16x1xf32>
    %337 = arith.addf %333, %336 : vector<16x1xf32>
    %338 = math.rsqrt %337 : vector<16x1xf32>
    %339 = vector.broadcast %338 : vector<16x1xf32> to vector<16x32xf32>
    %340 = arith.mulf %335, %339 : vector<16x32xf32>
    %341 = vector.broadcast %320 : vector<1x32xf32> to vector<16x32xf32>
    %342 = arith.mulf %340, %341 : vector<16x32xf32>
    %343 = vector.broadcast %322 : vector<1x32xf32> to vector<16x32xf32>
    %344 = arith.addf %342, %343 : vector<16x32xf32>
    %c1_142 = arith.constant 1 : index
    %c0_143 = arith.constant 0 : index
    %c0_144 = arith.constant 0 : index
    %345 = vector.load %arg11[%c1_142, %c0_143, %c0_144] : memref<2x32x128xf32, #tpu.memory_space<vmem>>, vector<1x32x128xf32>
    %346 = vector.shape_cast %345 : vector<1x32x128xf32> to vector<32x128xf32>
    %cst_145 = arith.constant dense<0.000000e+00> : vector<16x128xf32>
    %347 = tpu.matmul %344, %346, %cst_145 {dimension_numbers = #tpu.dot_dimension_numbers<[1], [0], [0], [1], [0, 0, 1, 1], [], []>} : vector<16x32xf32>, vector<32x128xf32>, vector<16x128xf32> -> vector<16x128xf32>
    %c1_146 = arith.constant 1 : index
    %c0_147 = arith.constant 0 : index
    %c0_148 = arith.constant 0 : index
    %348 = vector.load %arg12[%c1_146, %c0_147, %c0_148] : memref<2x1x128xf32, #tpu.memory_space<vmem>>, vector<1x1x128xf32>
    %349 = vector.shape_cast %348 : vector<1x1x128xf32> to vector<1x128xf32>
    %350 = vector.broadcast %349 : vector<1x128xf32> to vector<16x128xf32>
    %351 = arith.addf %347, %350 : vector<16x128xf32>
    %352 = arith.mulf %351, %351 : vector<16x128xf32>
    %353 = arith.mulf %351, %352 : vector<16x128xf32>
    %cst_149 = arith.constant 4.471500e-02 : f32
    %354 = vector.broadcast %cst_149 : f32 to vector<16x128xf32>
    %355 = arith.mulf %354, %353 : vector<16x128xf32>
    %356 = arith.addf %351, %355 : vector<16x128xf32>
    %cst_150 = arith.constant 0.797884583 : f32
    %357 = vector.broadcast %cst_150 : f32 to vector<16x128xf32>
    %358 = arith.mulf %357, %356 : vector<16x128xf32>
    %359 = math.tanh %358 : vector<16x128xf32>
    %cst_151 = arith.constant 1.000000e+00 : f32
    %360 = vector.broadcast %cst_151 : f32 to vector<16x128xf32>
    %361 = arith.addf %360, %359 : vector<16x128xf32>
    %cst_152 = arith.constant 5.000000e-01 : f32
    %362 = vector.broadcast %cst_152 : f32 to vector<16x128xf32>
    %363 = arith.mulf %362, %361 : vector<16x128xf32>
    %364 = arith.mulf %351, %363 : vector<16x128xf32>
    %c1_153 = arith.constant 1 : index
    %c0_154 = arith.constant 0 : index
    %c0_155 = arith.constant 0 : index
    %365 = vector.load %arg13[%c1_153, %c0_154, %c0_155] : memref<2x128x32xf32, #tpu.memory_space<vmem>>, vector<1x128x32xf32>
    %366 = vector.shape_cast %365 : vector<1x128x32xf32> to vector<128x32xf32>
    %cst_156 = arith.constant dense<0.000000e+00> : vector<16x32xf32>
    %367 = tpu.matmul %364, %366, %cst_156 {dimension_numbers = #tpu.dot_dimension_numbers<[1], [0], [0], [1], [0, 0, 1, 1], [], []>} : vector<16x128xf32>, vector<128x32xf32>, vector<16x32xf32> -> vector<16x32xf32>
    %c1_157 = arith.constant 1 : index
    %c0_158 = arith.constant 0 : index
    %c0_159 = arith.constant 0 : index
    %368 = vector.load %arg14[%c1_157, %c0_158, %c0_159] : memref<2x1x32xf32, #tpu.memory_space<vmem>>, vector<1x1x32xf32>
    %369 = vector.shape_cast %368 : vector<1x1x32xf32> to vector<1x32xf32>
    %370 = vector.broadcast %369 : vector<1x32xf32> to vector<16x32xf32>
    %371 = arith.addf %367, %370 : vector<16x32xf32>
    %372 = arith.addf %371, %344 : vector<16x32xf32>
    %c1_160 = arith.constant 1 : index
    %c0_161 = arith.constant 0 : index
    %c0_162 = arith.constant 0 : index
    %373 = vector.load %arg15[%c1_160, %c0_161, %c0_162] : memref<2x1x32xf32, #tpu.memory_space<vmem>>, vector<1x1x32xf32>
    %374 = vector.shape_cast %373 : vector<1x1x32xf32> to vector<1x32xf32>
    %c1_163 = arith.constant 1 : index
    %c0_164 = arith.constant 0 : index
    %c0_165 = arith.constant 0 : index
    %375 = vector.load %arg16[%c1_163, %c0_164, %c0_165] : memref<2x1x32xf32, #tpu.memory_space<vmem>>, vector<1x1x32xf32>
    %376 = vector.shape_cast %375 : vector<1x1x32xf32> to vector<1x32xf32>
    %cst_166 = arith.constant dense<0.000000e+00> : vector<16xf32>
    %377 = vector.multi_reduction <add>, %372, %cst_166 [1] : vector<16x32xf32> to vector<16xf32>
    %378 = vector.shape_cast %377 : vector<16xf32> to vector<16x1xf32>
    %cst_167 = arith.constant 3.200000e+01 : f32
    %379 = vector.broadcast %cst_167 : f32 to vector<16x1xf32>
    %380 = arith.divf %378, %379 : vector<16x1xf32>
    %381 = vector.broadcast %380 : vector<16x1xf32> to vector<16x32xf32>
    %382 = arith.subf %372, %381 : vector<16x32xf32>
    %383 = arith.mulf %382, %382 : vector<16x32xf32>
    %cst_168 = arith.constant dense<0.000000e+00> : vector<16xf32>
    %384 = vector.multi_reduction <add>, %383, %cst_168 [1] : vector<16x32xf32> to vector<16xf32>
    %385 = vector.shape_cast %384 : vector<16xf32> to vector<16x1xf32>
    %cst_169 = arith.constant 3.200000e+01 : f32
    %386 = vector.broadcast %cst_169 : f32 to vector<16x1xf32>
    %387 = arith.divf %385, %386 : vector<16x1xf32>
    %388 = vector.broadcast %380 : vector<16x1xf32> to vector<16x32xf32>
    %389 = arith.subf %372, %388 : vector<16x32xf32>
    %cst_170 = arith.constant 9.99999997E-7 : f32
    %390 = vector.broadcast %cst_170 : f32 to vector<16x1xf32>
    %391 = arith.addf %387, %390 : vector<16x1xf32>
    %392 = math.rsqrt %391 : vector<16x1xf32>
    %393 = vector.broadcast %392 : vector<16x1xf32> to vector<16x32xf32>
    %394 = arith.mulf %389, %393 : vector<16x32xf32>
    %395 = vector.broadcast %374 : vector<1x32xf32> to vector<16x32xf32>
    %396 = arith.mulf %394, %395 : vector<16x32xf32>
    %397 = vector.broadcast %376 : vector<1x32xf32> to vector<16x32xf32>
    %398 = arith.addf %396, %397 : vector<16x32xf32>
    %c0_171 = arith.constant 0 : index
    %c0_172 = arith.constant 0 : index
    %399 = vector.load %arg17[%c0_171, %c0_172] : memref<32x128xf32, #tpu.memory_space<vmem>>, vector<32x128xf32>
    %cst_173 = arith.constant dense<0.000000e+00> : vector<16x128xf32>
    %400 = tpu.matmul %398, %399, %cst_173 {dimension_numbers = #tpu.dot_dimension_numbers<[1], [0], [0], [1], [0, 0, 1, 1], [], []>} : vector<16x32xf32>, vector<32x128xf32>, vector<16x128xf32> -> vector<16x128xf32>
    %c0_174 = arith.constant 0 : index
    %c0_175 = arith.constant 0 : index
    %401 = vector.load %arg18[%c0_174, %c0_175] : memref<1x128xf32, #tpu.memory_space<vmem>>, vector<1x128xf32>
    %402 = vector.broadcast %401 : vector<1x128xf32> to vector<16x128xf32>
    %403 = arith.addf %400, %402 : vector<16x128xf32>
    %c0_176 = arith.constant 0 : index
    %c0_177 = arith.constant 0 : index
    %404 = vector.load %arg19[%c0_176, %c0_177] : memref<16x128xf32, #tpu.memory_space<vmem>>, vector<16x128xf32>
    tpu.vector_store %arg19[%c0_176, %c0_177], %403 {strides = array<i32>} : memref<16x128xf32, #tpu.memory_space<vmem>>, vector<16x128xf32>,
    return
  }
}

</mosaic_0001>

<llo_original>
// kernel: bert4rec_forward.1
$region0: #{bert4rec_forward.1}
  #allocation0 [shape = 'u32[]', space=smem, size = 0x4, offset = 0x4, fixed_abs, tag = 'smem constant byte address 0x4 - core index']
  #allocation1 [shape = 'u32[144,128]{1,0:T(1,128)}', space=vmem, size = 0x12000, scoped, tag = 'internal scratch']
  %s0 = inlined_call_operand.vmem [shape: f32[2,8,32], index: 0, kind: input, shape index: {}]
  %s1 = inlined_call_operand.vmem [shape: f32[8,32], index: 1, kind: input, shape index: {}]
  %s2 = inlined_call_operand.vmem [shape: f32[2,1,8], index: 2, kind: input, shape index: {}]
  %s3 = inlined_call_operand.vmem [shape: f32[1,32], index: 3, kind: input, shape index: {}]
  %s4 = inlined_call_operand.vmem [shape: f32[1,32], index: 4, kind: input, shape index: {}]
  %s5 = inlined_call_operand.vmem [shape: f32[2,32,96], index: 5, kind: input, shape index: {}]
  %s6 = inlined_call_operand.vmem [shape: f32[2,1,96], index: 6, kind: input, shape index: {}]
  %s7 = inlined_call_operand.vmem [shape: f32[2,32,32], index: 7, kind: input, shape index: {}]
  %s8 = inlined_call_operand.vmem [shape: f32[2,1,32], index: 8, kind: input, shape index: {}]
  %s9 = inlined_call_operand.vmem [shape: f32[2,1,32], index: 9, kind: input, shape index: {}]
  %s10 = inlined_call_operand.vmem [shape: f32[2,1,32], index: 10, kind: input, shape index: {}]
  %s11 = inlined_call_operand.vmem [shape: f32[2,32,128], index: 11, kind: input, shape index: {}]
  %s12 = inlined_call_operand.vmem [shape: f32[2,1,128], index: 12, kind: input, shape index: {}]
  %s13 = inlined_call_operand.vmem [shape: f32[2,128,32], index: 13, kind: input, shape index: {}]
  %s14 = inlined_call_operand.vmem [shape: f32[2,1,32], index: 14, kind: input, shape index: {}]
  %s15 = inlined_call_operand.vmem [shape: f32[2,1,32], index: 15, kind: input, shape index: {}]
  %s16 = inlined_call_operand.vmem [shape: f32[2,1,32], index: 16, kind: input, shape index: {}]
  %s17 = inlined_call_operand.vmem [shape: f32[32,128], index: 17, kind: input, shape index: {}]
  %s18 = inlined_call_operand.vmem [shape: f32[1,128], index: 18, kind: input, shape index: {}]
  %s19 = inlined_call_operand.vmem [shape: f32[16,128], index: 19, kind: output, shape index: {}]
  %s20 = sld [smem:[#allocation0]]
  $region86: #{bert4rec_forward.1} parent=0
    _
  %s22 = ssub.s32 1, %s20
  %s23 = scalar_select 0, %s22, %s20
  // Predicated region
  $region2: #{bert4rec_forward.1} parent=0 // pred_check
    _
  $region3: #{bert4rec_forward.1} parent=0 // pred_check_branch
    %25 = sbr.rel (0) target = $region5
  $region4: #{bert4rec_forward.1} parent=0 // pred_region
    _
  $region5: #{bert4rec_forward.1} parent=0 // pred_fallthru
    _
  // Predicated region
  $region6: #{bert4rec_forward.1} parent=0 // pred_check
    _
  $region7: #{bert4rec_forward.1} parent=0 // pred_check_branch
    %27 = sbr.rel (0) target = $region9
  $region8: #{bert4rec_forward.1} parent=0 // pred_region
    _
  $region9: #{bert4rec_forward.1} parent=0 // pred_fallthru
    _
  // Predicated region
  $region10: #{bert4rec_forward.1} parent=0 // pred_check
    _
  $region11: #{bert4rec_forward.1} parent=0 // pred_check_branch
    %29 = sbr.rel (0) target = $region13
  $region12: #{bert4rec_forward.1} parent=0 // pred_region
    _
  $region13: #{bert4rec_forward.1} parent=0 // pred_fallthru
    _
  // Predicated region
  $region14: #{bert4rec_forward.1} parent=0 // pred_check
    _
  $region15: #{bert4rec_forward.1} parent=0 // pred_check_branch
    %31 = sbr.rel (0) target = $region17
  $region16: #{bert4rec_forward.1} parent=0 // pred_region
    _
  $region17: #{bert4rec_forward.1} parent=0 // pred_fallthru
    _
  // Predicated region
  $region18: #{bert4rec_forward.1} parent=0 // pred_check
    _
  $region19: #{bert4rec_forward.1} parent=0 // pred_check_branch
    %33 = sbr.rel (0) target = $region21
  $region20: #{bert4rec_forward.1} parent=0 // pred_region
    _
  $region21: #{bert4rec_forward.1} parent=0 // pred_fallthru
    _
  // Predicated region
  $region22: #{bert4rec_forward.1} parent=0 // pred_check
    _
  $region23: #{bert4rec_forward.1} parent=0 // pred_check_branch
    %35 = sbr.rel (0) target = $region25
  $region24: #{bert4rec_forward.1} parent=0 // pred_region
    _
  $region25: #{bert4rec_forward.1} parent=0 // pred_fallthru
    _
  // Predicated region
  $region26: #{bert4rec_forward.1} parent=0 // pred_check
    _
  $region27: #{bert4rec_forward.1} parent=0 // pred_check_branch
    %37 = sbr.rel (0) target = $region29
  $region28: #{bert4rec_forward.1} parent=0 // pred_region
    _
  $region29: #{bert4rec_forward.1} parent=0 // pred_fallthru
    _
  // Predicated region
  $region30: #{bert4rec_forward.1} parent=0 // pred_check
    _
  $region31: #{bert4rec_forward.1} parent=0 // pred_check_branch
    %39 = sbr.rel (0) target = $region33
  $region32: #{bert4rec_forward.1} parent=0 // pred_region
    _
  $region33: #{bert4rec_forward.1} parent=0 // pred_fallthru
    _
  // Predicated region
  $region34: #{bert4rec_forward.1} parent=0 // pred_check
    _
  $region35: #{bert4rec_forward.1} parent=0 // pred_check_branch
    %41 = sbr.rel (0) target = $region37
  $region36: #{bert4rec_forward.1} parent=0 // pred_region
    _
  $region37: #{bert4rec_forward.1} parent=0 // pred_fallthru
    _
  // Predicated region
  $region38: #{bert4rec_forward.1} parent=0 // pred_check
    _
  $region39: #{bert4rec_forward.1} parent=0 // pred_check_branch
    %43 = sbr.rel (0) target = $region41
  $region40: #{bert4rec_forward.1} parent=0 // pred_region
    _
  $region41: #{bert4rec_forward.1} parent=0 // pred_fallthru
    _
  // Predicated region
  $region42: #{bert4rec_forward.1} parent=0 // pred_check
    _
  $region43: #{bert4rec_forward.1} parent=0 // pred_check_branch
    %45 = sbr.rel (0) target = $region45
  $region44: #{bert4rec_forward.1} parent=0 // pred_region
    _
  $region45: #{bert4rec_forward.1} parent=0 // pred_fallthru
    _
  // Predicated region
  $region46: #{bert4rec_forward.1} parent=0 // pred_check
    _
  $region47: #{bert4rec_forward.1} parent=0 // pred_check_branch
    %47 = sbr.rel (0) target = $region49
  $region48: #{bert4rec_forward.1} parent=0 // pred_region
    _
  $region49: #{bert4rec_forward.1} parent=0 // pred_fallthru
    _
  // Predicated region
  $region50: #{bert4rec_forward.1} parent=0 // pred_check
    _
  $region51: #{bert4rec_forward.1} parent=0 // pred_check_branch
    %49 = sbr.rel (0) target = $region53
  $region52: #{bert4rec_forward.1} parent=0 // pred_region
    _
  $region53: #{bert4rec_forward.1} parent=0 // pred_fallthru
    _
  // Predicated region
  $region54: #{bert4rec_forward.1} parent=0 // pred_check
    _
  $region55: #{bert4rec_forward.1} parent=0 // pred_check_branch
    %51 = sbr.rel (0) target = $region57
  $region56: #{bert4rec_forward.1} parent=0 // pred_region
    _
  $region57: #{bert4rec_forward.1} parent=0 // pred_fallthru
    _
  // Predicated region
  $region58: #{bert4rec_forward.1} parent=0 // pred_check
    _
  $region59: #{bert4rec_forward.1} parent=0 // pred_check_branch
    %53 = sbr.rel (0) target = $region61
  $region60: #{bert4rec_forward.1} parent=0 // pred_region
    _
  $region61: #{bert4rec_forward.1} parent=0 // pred_fallthru
    _
  // Predicated region
  $region62: #{bert4rec_forward.1} parent=0 // pred_check
    _
  $region63: #{bert4rec_forward.1} parent=0 // pred_check_branch
    %55 = sbr.rel (0) target = $region65
  $region64: #{bert4rec_forward.1} parent=0 // pred_region
    _
  $region65: #{bert4rec_forward.1} parent=0 // pred_fallthru
    _
  // Predicated region
  $region66: #{bert4rec_forward.1} parent=0 // pred_check
    _
  $region67: #{bert4rec_forward.1} parent=0 // pred_check_branch
    %57 = sbr.rel (0) target = $region69
  $region68: #{bert4rec_forward.1} parent=0 // pred_region
    _
  $region69: #{bert4rec_forward.1} parent=0 // pred_fallthru
    _
  // Predicated region
  $region70: #{bert4rec_forward.1} parent=0 // pred_check
    _
  $region71: #{bert4rec_forward.1} parent=0 // pred_check_branch
    %59 = sbr.rel (0) target = $region73
  $region72: #{bert4rec_forward.1} parent=0 // pred_region
    _
  $region73: #{bert4rec_forward.1} parent=0 // pred_fallthru
    _
  // Predicated region
  $region74: #{bert4rec_forward.1} parent=0 // pred_check
    _
  $region75: #{bert4rec_forward.1} parent=0 // pred_check_branch
    %61 = sbr.rel (0) target = $region77
  $region76: #{bert4rec_forward.1} parent=0 // pred_region
    _
  $region77: #{bert4rec_forward.1} parent=0 // pred_fallthru
    _
  %v62 = vld [vmem:[%s0] sm:$0xff]
  %v63 = vld [vmem:[%s0 + $0x8] sm:$0xff]
  %v64 = vld [vmem:[%s1] sm:$0xff]
  %v65 = vadd.f32 %v62, %v64
  %v66 = vadd.f32 %v63, %v64
  %v67 = vld [vmem:[%s3] sm:$0x1]
  %v68 = vld [vmem:[%s4] sm:$0x1]
  %vm69 = vcmask 261120
  %v70 = vsel %vm69, %v65, 0.0
  %71 = vadd.xlane.f32.xlu0 %v70
  %v72 = vpop.xlane.xlu0 %71
  %v73 = vsel %vm69, %v66, 0.0
  %74 = vadd.xlane.f32.xlu0 %v73
  %v75 = vpop.xlane.xlu0 %74
  %v76 = vrcp.pop 32.0
  %v77 = vmul.f32 %v72, %v76
  %v78 = vmul.f32 %v75, %v76
  %v79 = vsub.f32 %v65, %v77
  %v80 = vsub.f32 %v66, %v78
  %v81 = vmul.f32 %v79, %v79
  %v82 = vmul.f32 %v80, %v80
  %v83 = vsel %vm69, %v81, 0.0
  %84 = vadd.xlane.f32.xlu0 %v83
  %v85 = vpop.xlane.xlu0 %84
  %v86 = vsel %vm69, %v82, 0.0
  %87 = vadd.xlane.f32.xlu0 %v86
  %v88 = vpop.xlane.xlu0 %87
  %v89 = vmul.f32 %v85, %v76
  %v90 = vmul.f32 %v88, %v76
  %v91 = vadd.f32 %v89, 1e-06
  %v92 = vadd.f32 %v90, 1e-06
  %v93 = vrsqrt.pop %v91
  %v94 = vrsqrt.pop %v92
  %v95 = vmul.f32 %v79, %v93
  %v96 = vmul.f32 %v80, %v94
  %v98 = vlaneseq
  %v99 = vshrl.u32 %v98, 7
  %v100 = vsub.s32 0, %v99
  %v101 = vrot.slane %v67, %v100
  %v103 = vmul.f32 %v95, %v101
  %v104 = vmul.f32 %v96, %v101
  %v106 = vlaneseq
  %v107 = vshrl.u32 %v106, 7
  %v108 = vsub.s32 0, %v107
  %v109 = vrot.slane %v68, %v108
  %v111 = vadd.f32 %v103, %v109
  %v112 = vadd.f32 %v104, %v109
  %v113 = vld [vmem:[%s2] sm:$0x1]
  %v114 = vld [vmem:[%s2 + $0x1] sm:$0x1]
  %vm115 = vcmp.gt.f32.partialorder %v113, 0.0
  %vm116 = vcmp.gt.f32.partialorder %v114, 0.0
  %v117 = vld [vmem:[%s5] sm:$0xff]
  %v118 = vld [vmem:[%s5 + $0x8] sm:$0xff]
  %v119 = vld [vmem:[%s5 + $0x10] sm:$0xff]
  %v120 = vld [vmem:[%s5 + $0x18] sm:$0xff]
  %v121 = vld [vmem:[%s6] sm:$0x1]
  %v123 = vlaneseq
  %v124 = vshrl.u32 %v123, 7
  %v125 = vsub.s32 0, %v124
  %v126 = vrot.slane %v121, %v125
  %v129 = vsel %vm69, %v111, 0
  %v132 = vsel %vm69, %v112, 0
  %134 = vmatprep.subr.mxu0 0.0
  %135 = vmatpush1.msra.mxu0 %v117
  %136 = vmatprep.subr.mxu0 0.0
  %137 = vmatpush1.msra.mxu0 %v118
  %138 = vmatprep.subr.mxu0 0.0
  %139 = vmatpush1.msra.mxu0 %v119
  %140 = vmatprep.subr.mxu0 0.0
  %141 = vmatpush1.msra.mxu0 %v120
  %142 = vmatprep.subr.mxu0 0.0
  %143 = vmatpush1.msra.mxu0 0.0
  %144 = vmatprep.subr.mxu0 0.0
  %145 = vmatpush1.msra.mxu0 0.0
  %146 = vmatprep.subr.mxu0 0.0
  %147 = vmatpush1.msra.mxu0 0.0
  %148 = vmatprep.subr.mxu0 0.0
  %149 = vmatpush1.msra.mxu0 0.0
  %150 = vmatprep.subr.mxu0 0.0
  %151 = vmatpush1.msra.mxu0 0.0
  %152 = vmatprep.subr.mxu0 0.0
  %153 = vmatpush1.msra.mxu0 0.0
  %154 = vmatprep.subr.mxu0 0.0
  %155 = vmatpush1.msra.mxu0 0.0
  %156 = vmatprep.subr.mxu0 0.0
  %157 = vmatpush1.msra.mxu0 0.0
  %158 = vmatprep.subr.mxu0 0.0
  %159 = vmatpush1.msra.mxu0 0.0
  %160 = vmatprep.subr.mxu0 0.0
  %161 = vmatpush1.msra.mxu0 0.0
  %162 = vmatprep.subr.mxu0 0.0
  %163 = vmatpush1.msra.mxu0 0.0
  %164 = vmatprep.subr.mxu0 0.0
  %165 = vmatpush1.msra.mxu0 0.0
  %166 = vmatprep.subr.mxu0 0.0
  %167 = vmatpush1.msra.mxu0 0.0
  %168 = vmatprep.subr.mxu0 0.0
  %169 = vmatpush1.msra.mxu0 0.0
  %170 = vmatprep.subr.mxu0 0.0
  %171 = vmatpush1.msra.mxu0 0.0
  %172 = vmatprep.subr.mxu0 0.0
  %173 = vmatpush1.msra.mxu0 0.0
  %174 = vmatprep.subr.mxu0 0.0
  %175 = vmatpush1.msra.mxu0 0.0
  %176 = vmatprep.subr.mxu0 0.0
  %177 = vmatpush1.msra.mxu0 0.0
  %178 = vmatprep.subr.mxu0 0.0
  %179 = vmatpush1.msra.mxu0 0.0
  %180 = vmatprep.subr.mxu0 0.0
  %181 = vmatpush1.msra.mxu0 0.0
  %182 = vmatprep.subr.mxu0 0.0
  %183 = vmatpush1.msra.mxu0 0.0
  %184 = vmatprep.subr.mxu0 0.0
  %185 = vmatpush1.msra.mxu0 0.0
  %186 = vmatprep.subr.mxu0 0.0
  %187 = vmatpush1.msra.mxu0 0.0
  %188 = vmatprep.subr.mxu0 0.0
  %189 = vmatpush1.msra.mxu0 0.0
  %190 = vmatprep.subr.mxu0 0.0
  %191 = vmatpush1.msra.mxu0 0.0
  %192 = vmatprep.subr.mxu0 0.0
  %193 = vmatpush1.msra.mxu0 0.0
  %194 = vmatprep.subr.mxu0 0.0
  %195 = vmatpush1.msra.mxu0 0.0
  %196 = vmatprep.subr.mxu0 0.0
  %197 = vmatpush1.msra.mxu0 0.0
  %198 = vmatprep.mubr.f32.mxu0 0.0
  %199 = vmatmul.mubr.f32.gmra.mrb[0].mxu0 %v129
  %v200 = vpop.f32.mrb[0].mxu0
  %v201 = vadd.f32 %v126, %v200
  %v202 = vpop.f32.mrb[0].mxu0
  %203 = vmatprep.mubr.f32.mxu0 0.0
  %204 = vmatmul.mubr.f32.gmra.mrb[0].mxu0 %v132
  %v205 = vpop.f32.mrb[0].mxu0
  %v206 = vadd.f32 %v126, %v205
  %v207 = vpop.f32.mrb[0].mxu0
  %208 = vdwg.mxu0
  %210 = vrot.lane.b32.xlu0 %v201, 96
  %v211 = vpop.permute.xlu0 %210
  %vm212 = vcmask 64512
  %v213 = vsel %vm212, %v201, 0
  %v215 = vsel %vm212, %v211, 0
  %217 = vmatprep.subr.mxu0 0.0
  %218 = vmatpush1.xpose.msra.mxu0 %v215
  %219 = vmatprep.subr.mxu0 0.0
  %220 = vmatpush1.xpose.msra.mxu0 0.0
  %221 = vmatprep.subr.mxu0 0.0
  %222 = vmatpush1.xpose.msra.mxu0 0.0
  %223 = vmatprep.subr.mxu0 0.0
  %224 = vmatpush1.xpose.msra.mxu0 0.0
  %225 = vmatprep.subr.mxu0 0.0
  %226 = vmatpush1.xpose.msra.mxu0 0.0
  %227 = vmatprep.subr.mxu0 0.0
  %228 = vmatpush1.xpose.msra.mxu0 0.0
  %229 = vmatprep.subr.mxu0 0.0
  %230 = vmatpush1.xpose.msra.mxu0 0.0
  %231 = vmatprep.subr.mxu0 0.0
  %232 = vmatpush1.xpose.msra.mxu0 0.0
  %233 = vmatprep.subr.mxu0 0.0
  %234 = vmatpush1.xpose.msra.mxu0 0.0
  %235 = vmatprep.subr.mxu0 0.0
  %236 = vmatpush1.xpose.msra.mxu0 0.0
  %237 = vmatprep.subr.mxu0 0.0
  %238 = vmatpush1.xpose.msra.mxu0 0.0
  %239 = vmatprep.subr.mxu0 0.0
  %240 = vmatpush1.xpose.msra.mxu0 0.0
  %241 = vmatprep.subr.mxu0 0.0
  %242 = vmatpush1.xpose.msra.mxu0 0.0
  %243 = vmatprep.subr.mxu0 0.0
  %244 = vmatpush1.xpose.msra.mxu0 0.0
  %245 = vmatprep.subr.mxu0 0.0
  %246 = vmatpush1.xpose.msra.mxu0 0.0
  %247 = vmatprep.subr.mxu0 0.0
  %248 = vmatpush1.xpose.msra.mxu0 0.0
  %249 = vmatprep.subr.mxu0 0.0
  %250 = vmatpush1.xpose.msra.mxu0 0.0
  %251 = vmatprep.subr.mxu0 0.0
  %252 = vmatpush1.xpose.msra.mxu0 0.0
  %253 = vmatprep.subr.mxu0 0.0
  %254 = vmatpush1.xpose.msra.mxu0 0.0
  %255 = vmatprep.subr.mxu0 0.0
  %256 = vmatpush1.xpose.msra.mxu0 0.0
  %257 = vmatprep.subr.mxu0 0.0
  %258 = vmatpush1.xpose.msra.mxu0 0.0
  %259 = vmatprep.subr.mxu0 0.0
  %260 = vmatpush1.xpose.msra.mxu0 0.0
  %261 = vmatprep.subr.mxu0 0.0
  %262 = vmatpush1.xpose.msra.mxu0 0.0
  %263 = vmatprep.subr.mxu0 0.0
  %264 = vmatpush1.xpose.msra.mxu0 0.0
  %265 = vmatprep.subr.mxu0 0.0
  %266 = vmatpush1.xpose.msra.mxu0 0.0
  %267 = vmatprep.subr.mxu0 0.0
  %268 = vmatpush1.xpose.msra.mxu0 0.0
  %269 = vmatprep.subr.mxu0 0.0
  %270 = vmatpush1.xpose.msra.mxu0 0.0
  %271 = vmatprep.subr.mxu0 0.0
  %272 = vmatpush1.xpose.msra.mxu0 0.0
  %273 = vmatprep.subr.mxu0 0.0
  %274 = vmatpush1.xpose.msra.mxu0 0.0
  %275 = vmatprep.subr.mxu0 0.0
  %276 = vmatpush1.xpose.msra.mxu0 0.0
  %277 = vmatprep.subr.mxu0 0.0
  %278 = vmatpush1.xpose.msra.mxu0 0.0
  %279 = vmatprep.subr.mxu0 0.0
  %280 = vmatpush1.xpose.msra.mxu0 0.0
  %281 = vmatprep.mubr.f32.mxu0 0.0
  %282 = vmatmul.mubr.f32.gmra.mrb[0].mxu0 %v213
  %v283 = vpop.f32.mrb[0].mxu0
  %v284 = vadd.f32 0.0, %v283
  %v285 = vpop.f32.mrb[0].mxu0
  %286 = vdwg.mxu0
  %288 = vrot.lane.b32.xlu0 %v206, 96
  %v289 = vpop.permute.xlu0 %288
  %v290 = vsel %vm212, %v206, 0
  %v292 = vsel %vm212, %v289, 0
  %294 = vmatprep.subr.mxu0 0.0
  %295 = vmatpush1.xpose.msra.mxu0 %v292
  %296 = vmatprep.subr.mxu0 0.0
  %297 = vmatpush1.xpose.msra.mxu0 0.0
  %298 = vmatprep.subr.mxu0 0.0
  %299 = vmatpush1.xpose.msra.mxu0 0.0
  %300 = vmatprep.subr.mxu0 0.0
  %301 = vmatpush1.xpose.msra.mxu0 0.0
  %302 = vmatprep.subr.mxu0 0.0
  %303 = vmatpush1.xpose.msra.mxu0 0.0
  %304 = vmatprep.subr.mxu0 0.0
  %305 = vmatpush1.xpose.msra.mxu0 0.0
  %306 = vmatprep.subr.mxu0 0.0
  %307 = vmatpush1.xpose.msra.mxu0 0.0
  %308 = vmatprep.subr.mxu0 0.0
  %309 = vmatpush1.xpose.msra.mxu0 0.0
  %310 = vmatprep.subr.mxu0 0.0
  %311 = vmatpush1.xpose.msra.mxu0 0.0
  %312 = vmatprep.subr.mxu0 0.0
  %313 = vmatpush1.xpose.msra.mxu0 0.0
  %314 = vmatprep.subr.mxu0 0.0
  %315 = vmatpush1.xpose.msra.mxu0 0.0
  %316 = vmatprep.subr.mxu0 0.0
  %317 = vmatpush1.xpose.msra.mxu0 0.0
  %318 = vmatprep.subr.mxu0 0.0
  %319 = vmatpush1.xpose.msra.mxu0 0.0
  %320 = vmatprep.subr.mxu0 0.0
  %321 = vmatpush1.xpose.msra.mxu0 0.0
  %322 = vmatprep.subr.mxu0 0.0
  %323 = vmatpush1.xpose.msra.mxu0 0.0
  %324 = vmatprep.subr.mxu0 0.0
  %325 = vmatpush1.xpose.msra.mxu0 0.0
  %326 = vmatprep.subr.mxu0 0.0
  %327 = vmatpush1.xpose.msra.mxu0 0.0
  %328 = vmatprep.subr.mxu0 0.0
  %329 = vmatpush1.xpose.msra.mxu0 0.0
  %330 = vmatprep.subr.mxu0 0.0
  %331 = vmatpush1.xpose.msra.mxu0 0.0
  %332 = vmatprep.subr.mxu0 0.0
  %333 = vmatpush1.xpose.msra.mxu0 0.0
  %334 = vmatprep.subr.mxu0 0.0
  %335 = vmatpush1.xpose.msra.mxu0 0.0
  %336 = vmatprep.subr.mxu0 0.0
  %337 = vmatpush1.xpose.msra.mxu0 0.0
  %338 = vmatprep.subr.mxu0 0.0
  %339 = vmatpush1.xpose.msra.mxu0 0.0
  %340 = vmatprep.subr.mxu0 0.0
  %341 = vmatpush1.xpose.msra.mxu0 0.0
  %342 = vmatprep.subr.mxu0 0.0
  %343 = vmatpush1.xpose.msra.mxu0 0.0
  %344 = vmatprep.subr.mxu0 0.0
  %345 = vmatpush1.xpose.msra.mxu0 0.0
  %346 = vmatprep.subr.mxu0 0.0
  %347 = vmatpush1.xpose.msra.mxu0 0.0
  %348 = vmatprep.subr.mxu0 0.0
  %349 = vmatpush1.xpose.msra.mxu0 0.0
  %350 = vmatprep.subr.mxu0 0.0
  %351 = vmatpush1.xpose.msra.mxu0 0.0
  %352 = vmatprep.subr.mxu0 0.0
  %353 = vmatpush1.xpose.msra.mxu0 0.0
  %354 = vmatprep.subr.mxu0 0.0
  %355 = vmatpush1.xpose.msra.mxu0 0.0
  %356 = vmatprep.subr.mxu0 0.0
  %357 = vmatpush1.xpose.msra.mxu0 0.0
  %358 = vmatprep.mubr.f32.mxu0 0.0
  %359 = vmatmul.mubr.f32.gmra.mrb[0].mxu0 %v290
  %v360 = vpop.f32.mrb[0].mxu0
  %v361 = vadd.f32 0.0, %v360
  %v362 = vpop.f32.mrb[0].mxu0
  %363 = vdwg.mxu0
  %v364 = vmul.f32 %v284, 0.17677669
  %v365 = vmul.f32 %v361, 0.17677669
  %v366 = vsel %vm115, 1, 0
  %v367 = vsel %vm116, 1, 0
  %v368 = vlaneseq
  %v369 = vshrl.u32 %v368, 7
  %v370 = vsub.s32 0, %v369
  %v371 = vrot.slane %v366, %v370
  %v372 = vlaneseq
  %v373 = vshrl.u32 %v372, 7
  %v374 = vsub.s32 0, %v373
  %v375 = vrot.slane %v367, %v374
  %vm376 = vcmp.eq.s32.totalorder %v371, 1
  %vm377 = vcmp.eq.s32.totalorder %v375, 1
  %v378 = vsel %vm376, %v364, -1e+09
  %v379 = vsel %vm377, %v365, -1e+09
  %v380 = vsel %vm212, %v378, -inf
  %381 = vmax.xlane.f32.xlu0 %v380
  %v382 = vpop.xlane.xlu0 %381
  %v383 = vsel %vm212, %v379, -inf
  %384 = vmax.xlane.f32.xlu0 %v383
  %v385 = vpop.xlane.xlu0 %384
  %v386 = vsub.f32 %v378, %v382
  %v387 = vsub.f32 %v379, %v385
  %v388 = vmul.f32 %v386, 1.442695
  %v389 = vpow.pop %v388
  %v390 = vmul.f32 %v387, 1.442695
  %v391 = vpow.pop %v390
  %v392 = vsel %vm212, %v389, 0.0
  %393 = vadd.xlane.f32.xlu0 %v392
  %v394 = vpop.xlane.xlu0 %393
  %v395 = vsel %vm212, %v391, 0.0
  %396 = vadd.xlane.f32.xlu0 %v395
  %v397 = vpop.xlane.xlu0 %396
  %v398 = vrcp.pop %v394
  %v399 = vrcp.pop %v397
  %v400 = vmul.f32 %v389, %v398
  %v401 = vmul.f32 %v391, %v399
  %402 = vrot.lane.b32.xlu0 %v201, 64
  %v403 = vpop.permute.xlu0 %402
  %v406 = vsel %vm212, %v400, 0
  %408 = vmatprep.subr.mxu0 0.0
  %409 = vmatpush1.msra.mxu0 %v403
  %410 = vmatprep.subr.mxu0 0.0
  %411 = vmatpush1.msra.mxu0 0.0
  %412 = vmatprep.subr.mxu0 0.0
  %413 = vmatpush1.msra.mxu0 0.0
  %414 = vmatprep.subr.mxu0 0.0
  %415 = vmatpush1.msra.mxu0 0.0
  %416 = vmatprep.subr.mxu0 0.0
  %417 = vmatpush1.msra.mxu0 0.0
  %418 = vmatprep.subr.mxu0 0.0
  %419 = vmatpush1.msra.mxu0 0.0
  %420 = vmatprep.subr.mxu0 0.0
  %421 = vmatpush1.msra.mxu0 0.0
  %422 = vmatprep.subr.mxu0 0.0
  %423 = vmatpush1.msra.mxu0 0.0
  %424 = vmatprep.subr.mxu0 0.0
  %425 = vmatpush1.msra.mxu0 0.0
  %426 = vmatprep.subr.mxu0 0.0
  %427 = vmatpush1.msra.mxu0 0.0
  %428 = vmatprep.subr.mxu0 0.0
  %429 = vmatpush1.msra.mxu0 0.0
  %430 = vmatprep.subr.mxu0 0.0
  %431 = vmatpush1.msra.mxu0 0.0
  %432 = vmatprep.subr.mxu0 0.0
  %433 = vmatpush1.msra.mxu0 0.0
  %434 = vmatprep.subr.mxu0 0.0
  %435 = vmatpush1.msra.mxu0 0.0
  %436 = vmatprep.subr.mxu0 0.0
  %437 = vmatpush1.msra.mxu0 0.0
  %438 = vmatprep.subr.mxu0 0.0
  %439 = vmatpush1.msra.mxu0 0.0
  %440 = vmatprep.subr.mxu0 0.0
  %441 = vmatpush1.msra.mxu0 0.0
  %442 = vmatprep.subr.mxu0 0.0
  %443 = vmatpush1.msra.mxu0 0.0
  %444 = vmatprep.subr.mxu0 0.0
  %445 = vmatpush1.msra.mxu0 0.0
  %446 = vmatprep.subr.mxu0 0.0
  %447 = vmatpush1.msra.mxu0 0.0
  %448 = vmatprep.subr.mxu0 0.0
  %449 = vmatpush1.msra.mxu0 0.0
  %450 = vmatprep.subr.mxu0 0.0
  %451 = vmatpush1.msra.mxu0 0.0
  %452 = vmatprep.subr.mxu0 0.0
  %453 = vmatpush1.msra.mxu0 0.0
  %454 = vmatprep.subr.mxu0 0.0
  %455 = vmatpush1.msra.mxu0 0.0
  %456 = vmatprep.subr.mxu0 0.0
  %457 = vmatpush1.msra.mxu0 0.0
  %458 = vmatprep.subr.mxu0 0.0
  %459 = vmatpush1.msra.mxu0 0.0
  %460 = vmatprep.subr.mxu0 0.0
  %461 = vmatpush1.msra.mxu0 0.0
  %462 = vmatprep.subr.mxu0 0.0
  %463 = vmatpush1.msra.mxu0 0.0
  %464 = vmatprep.subr.mxu0 0.0
  %465 = vmatpush1.msra.mxu0 0.0
  %466 = vmatprep.subr.mxu0 0.0
  %467 = vmatpush1.msra.mxu0 0.0
  %468 = vmatprep.subr.mxu0 0.0
  %469 = vmatpush1.msra.mxu0 0.0
  %470 = vmatprep.subr.mxu0 0.0
  %471 = vmatpush1.msra.mxu0 0.0
  %472 = vmatprep.mubr.f32.mxu0 0.0
  %473 = vmatmul.mubr.f32.gmra.mrb[0].mxu0 %v406
  %v474 = vpop.f32.mrb[0].mxu0
  %v475 = vadd.f32 0.0, %v474
  %v476 = vpop.f32.mrb[0].mxu0
  %477 = vdwg.mxu0
  %478 = vrot.lane.b32.xlu0 %v206, 64
  %v479 = vpop.permute.xlu0 %478
  %v482 = vsel %vm212, %v401, 0
  %484 = vmatprep.subr.mxu0 0.0
  %485 = vmatpush1.msra.mxu0 %v479
  %486 = vmatprep.subr.mxu0 0.0
  %487 = vmatpush1.msra.mxu0 0.0
  %488 = vmatprep.subr.mxu0 0.0
  %489 = vmatpush1.msra.mxu0 0.0
  %490 = vmatprep.subr.mxu0 0.0
  %491 = vmatpush1.msra.mxu0 0.0
  %492 = vmatprep.subr.mxu0 0.0
  %493 = vmatpush1.msra.mxu0 0.0
  %494 = vmatprep.subr.mxu0 0.0
  %495 = vmatpush1.msra.mxu0 0.0
  %496 = vmatprep.subr.mxu0 0.0
  %497 = vmatpush1.msra.mxu0 0.0
  %498 = vmatprep.subr.mxu0 0.0
  %499 = vmatpush1.msra.mxu0 0.0
  %500 = vmatprep.subr.mxu0 0.0
  %501 = vmatpush1.msra.mxu0 0.0
  %502 = vmatprep.subr.mxu0 0.0
  %503 = vmatpush1.msra.mxu0 0.0
  %504 = vmatprep.subr.mxu0 0.0
  %505 = vmatpush1.msra.mxu0 0.0
  %506 = vmatprep.subr.mxu0 0.0
  %507 = vmatpush1.msra.mxu0 0.0
  %508 = vmatprep.subr.mxu0 0.0
  %509 = vmatpush1.msra.mxu0 0.0
  %510 = vmatprep.subr.mxu0 0.0
  %511 = vmatpush1.msra.mxu0 0.0
  %512 = vmatprep.subr.mxu0 0.0
  %513 = vmatpush1.msra.mxu0 0.0
  %514 = vmatprep.subr.mxu0 0.0
  %515 = vmatpush1.msra.mxu0 0.0
  %516 = vmatprep.subr.mxu0 0.0
  %517 = vmatpush1.msra.mxu0 0.0
  %518 = vmatprep.subr.mxu0 0.0
  %519 = vmatpush1.msra.mxu0 0.0
  %520 = vmatprep.subr.mxu0 0.0
  %521 = vmatpush1.msra.mxu0 0.0
  %522 = vmatprep.subr.mxu0 0.0
  %523 = vmatpush1.msra.mxu0 0.0
  %524 = vmatprep.subr.mxu0 0.0
  %525 = vmatpush1.msra.mxu0 0.0
  %526 = vmatprep.subr.mxu0 0.0
  %527 = vmatpush1.msra.mxu0 0.0
  %528 = vmatprep.subr.mxu0 0.0
  %529 = vmatpush1.msra.mxu0 0.0
  %530 = vmatprep.subr.mxu0 0.0
  %531 = vmatpush1.msra.mxu0 0.0
  %532 = vmatprep.subr.mxu0 0.0
  %533 = vmatpush1.msra.mxu0 0.0
  %534 = vmatprep.subr.mxu0 0.0
  %535 = vmatpush1.msra.mxu0 0.0
  %536 = vmatprep.subr.mxu0 0.0
  %537 = vmatpush1.msra.mxu0 0.0
  %538 = vmatprep.subr.mxu0 0.0
  %539 = vmatpush1.msra.mxu0 0.0
  %540 = vmatprep.subr.mxu0 0.0
  %541 = vmatpush1.msra.mxu0 0.0
  %542 = vmatprep.subr.mxu0 0.0
  %543 = vmatpush1.msra.mxu0 0.0
  %544 = vmatprep.subr.mxu0 0.0
  %545 = vmatpush1.msra.mxu0 0.0
  %546 = vmatprep.subr.mxu0 0.0
  %547 = vmatpush1.msra.mxu0 0.0
  %548 = vmatprep.mubr.f32.mxu0 0.0
  %549 = vmatmul.mubr.f32.gmra.mrb[0].mxu0 %v482
  %v550 = vpop.f32.mrb[0].mxu0
  %v551 = vadd.f32 0.0, %v550
  %v552 = vpop.f32.mrb[0].mxu0
  %553 = vdwg.mxu0
  %554 = vrot.lane.b32.xlu0 %v201, 120
  %v555 = vpop.permute.xlu0 %554
  %556 = vrot.lane.b32.xlu0 %v201, 88
  %v557 = vpop.permute.xlu0 %556
  %v558 = vsel %vm212, %v555, 0
  %v560 = vsel %vm212, %v557, 0
  %562 = vmatprep.subr.mxu0 0.0
  %563 = vmatpush1.xpose.msra.mxu0 %v560
  %564 = vmatprep.subr.mxu0 0.0
  %565 = vmatpush1.xpose.msra.mxu0 0.0
  %566 = vmatprep.subr.mxu0 0.0
  %567 = vmatpush1.xpose.msra.mxu0 0.0
  %568 = vmatprep.subr.mxu0 0.0
  %569 = vmatpush1.xpose.msra.mxu0 0.0
  %570 = vmatprep.subr.mxu0 0.0
  %571 = vmatpush1.xpose.msra.mxu0 0.0
  %572 = vmatprep.subr.mxu0 0.0
  %573 = vmatpush1.xpose.msra.mxu0 0.0
  %574 = vmatprep.subr.mxu0 0.0
  %575 = vmatpush1.xpose.msra.mxu0 0.0
  %576 = vmatprep.subr.mxu0 0.0
  %577 = vmatpush1.xpose.msra.mxu0 0.0
  %578 = vmatprep.subr.mxu0 0.0
  %579 = vmatpush1.xpose.msra.mxu0 0.0
  %580 = vmatprep.subr.mxu0 0.0
  %581 = vmatpush1.xpose.msra.mxu0 0.0
  %582 = vmatprep.subr.mxu0 0.0
  %583 = vmatpush1.xpose.msra.mxu0 0.0
  %584 = vmatprep.subr.mxu0 0.0
  %585 = vmatpush1.xpose.msra.mxu0 0.0
  %586 = vmatprep.subr.mxu0 0.0
  %587 = vmatpush1.xpose.msra.mxu0 0.0
  %588 = vmatprep.subr.mxu0 0.0
  %589 = vmatpush1.xpose.msra.mxu0 0.0
  %590 = vmatprep.subr.mxu0 0.0
  %591 = vmatpush1.xpose.msra.mxu0 0.0
  %592 = vmatprep.subr.mxu0 0.0
  %593 = vmatpush1.xpose.msra.mxu0 0.0
  %594 = vmatprep.subr.mxu0 0.0
  %595 = vmatpush1.xpose.msra.mxu0 0.0
  %596 = vmatprep.subr.mxu0 0.0
  %597 = vmatpush1.xpose.msra.mxu0 0.0
  %598 = vmatprep.subr.mxu0 0.0
  %599 = vmatpush1.xpose.msra.mxu0 0.0
  %600 = vmatprep.subr.mxu0 0.0
  %601 = vmatpush1.xpose.msra.mxu0 0.0
  %602 = vmatprep.subr.mxu0 0.0
  %603 = vmatpush1.xpose.msra.mxu0 0.0
  %604 = vmatprep.subr.mxu0 0.0
  %605 = vmatpush1.xpose.msra.mxu0 0.0
  %606 = vmatprep.subr.mxu0 0.0
  %607 = vmatpush1.xpose.msra.mxu0 0.0
  %608 = vmatprep.subr.mxu0 0.0
  %609 = vmatpush1.xpose.msra.mxu0 0.0
  %610 = vmatprep.subr.mxu0 0.0
  %611 = vmatpush1.xpose.msra.mxu0 0.0
  %612 = vmatprep.subr.mxu0 0.0
  %613 = vmatpush1.xpose.msra.mxu0 0.0
  %614 = vmatprep.subr.mxu0 0.0
  %615 = vmatpush1.xpose.msra.mxu0 0.0
  %616 = vmatprep.subr.mxu0 0.0
  %617 = vmatpush1.xpose.msra.mxu0 0.0
  %618 = vmatprep.subr.mxu0 0.0
  %619 = vmatpush1.xpose.msra.mxu0 0.0
  %620 = vmatprep.subr.mxu0 0.0
  %621 = vmatpush1.xpose.msra.mxu0 0.0
  %622 = vmatprep.subr.mxu0 0.0
  %623 = vmatpush1.xpose.msra.mxu0 0.0
  %624 = vmatprep.subr.mxu0 0.0
  %625 = vmatpush1.xpose.msra.mxu0 0.0
  %626 = vmatprep.mubr.f32.mxu0 0.0
  %627 = vmatmul.mubr.f32.gmra.mrb[0].mxu0 %v558
  %v628 = vpop.f32.mrb[0].mxu0
  %v629 = vadd.f32 0.0, %v628
  %v630 = vpop.f32.mrb[0].mxu0
  %631 = vdwg.mxu0
  %632 = vrot.lane.b32.xlu0 %v206, 120
  %v633 = vpop.permute.xlu0 %632
  %634 = vrot.lane.b32.xlu0 %v206, 88
  %v635 = vpop.permute.xlu0 %634
  %v636 = vsel %vm212, %v633, 0
  %v638 = vsel %vm212, %v635, 0
  %640 = vmatprep.subr.mxu0 0.0
  %641 = vmatpush1.xpose.msra.mxu0 %v638
  %642 = vmatprep.subr.mxu0 0.0
  %643 = vmatpush1.xpose.msra.mxu0 0.0
  %644 = vmatprep.subr.mxu0 0.0
  %645 = vmatpush1.xpose.msra.mxu0 0.0
  %646 = vmatprep.subr.mxu0 0.0
  %647 = vmatpush1.xpose.msra.mxu0 0.0
  %648 = vmatprep.subr.mxu0 0.0
  %649 = vmatpush1.xpose.msra.mxu0 0.0
  %650 = vmatprep.subr.mxu0 0.0
  %651 = vmatpush1.xpose.msra.mxu0 0.0
  %652 = vmatprep.subr.mxu0 0.0
  %653 = vmatpush1.xpose.msra.mxu0 0.0
  %654 = vmatprep.subr.mxu0 0.0
  %655 = vmatpush1.xpose.msra.mxu0 0.0
  %656 = vmatprep.subr.mxu0 0.0
  %657 = vmatpush1.xpose.msra.mxu0 0.0
  %658 = vmatprep.subr.mxu0 0.0
  %659 = vmatpush1.xpose.msra.mxu0 0.0
  %660 = vmatprep.subr.mxu0 0.0
  %661 = vmatpush1.xpose.msra.mxu0 0.0
  %662 = vmatprep.subr.mxu0 0.0
  %663 = vmatpush1.xpose.msra.mxu0 0.0
  %664 = vmatprep.subr.mxu0 0.0
  %665 = vmatpush1.xpose.msra.mxu0 0.0
  %666 = vmatprep.subr.mxu0 0.0
  %667 = vmatpush1.xpose.msra.mxu0 0.0
  %668 = vmatprep.subr.mxu0 0.0
  %669 = vmatpush1.xpose.msra.mxu0 0.0
  %670 = vmatprep.subr.mxu0 0.0
  %671 = vmatpush1.xpose.msra.mxu0 0.0
  %672 = vmatprep.subr.mxu0 0.0
  %673 = vmatpush1.xpose.msra.mxu0 0.0
  %674 = vmatprep.subr.mxu0 0.0
  %675 = vmatpush1.xpose.msra.mxu0 0.0
  %676 = vmatprep.subr.mxu0 0.0
  %677 = vmatpush1.xpose.msra.mxu0 0.0
  %678 = vmatprep.subr.mxu0 0.0
  %679 = vmatpush1.xpose.msra.mxu0 0.0
  %680 = vmatprep.subr.mxu0 0.0
  %681 = vmatpush1.xpose.msra.mxu0 0.0
  %682 = vmatprep.subr.mxu0 0.0
  %683 = vmatpush1.xpose.msra.mxu0 0.0
  %684 = vmatprep.subr.mxu0 0.0
  %685 = vmatpush1.xpose.msra.mxu0 0.0
  %686 = vmatprep.subr.mxu0 0.0
  %687 = vmatpush1.xpose.msra.mxu0 0.0
  %688 = vmatprep.subr.mxu0 0.0
  %689 = vmatpush1.xpose.msra.mxu0 0.0
  %690 = vmatprep.subr.mxu0 0.0
  %691 = vmatpush1.xpose.msra.mxu0 0.0
  %692 = vmatprep.subr.mxu0 0.0
  %693 = vmatpush1.xpose.msra.mxu0 0.0
  %694 = vmatprep.subr.mxu0 0.0
  %695 = vmatpush1.xpose.msra.mxu0 0.0
  %696 = vmatprep.subr.mxu0 0.0
  %697 = vmatpush1.xpose.msra.mxu0 0.0
  %698 = vmatprep.subr.mxu0 0.0
  %699 = vmatpush1.xpose.msra.mxu0 0.0
  %700 = vmatprep.subr.mxu0 0.0
  %701 = vmatpush1.xpose.msra.mxu0 0.0
  %702 = vmatprep.subr.mxu0 0.0
  %703 = vmatpush1.xpose.msra.mxu0 0.0
  %704 = vmatprep.mubr.f32.mxu0 0.0
  %705 = vmatmul.mubr.f32.gmra.mrb[0].mxu0 %v636
  %v706 = vpop.f32.mrb[0].mxu0
  %v707 = vadd.f32 0.0, %v706
  %v708 = vpop.f32.mrb[0].mxu0
  %709 = vdwg.mxu0
  %v710 = vmul.f32 %v629, 0.17677669
  %v711 = vmul.f32 %v707, 0.17677669
  %v712 = vsel %vm376, %v710, -1e+09
  %v713 = vsel %vm377, %v711, -1e+09
  %v714 = vsel %vm212, %v712, -inf
  %715 = vmax.xlane.f32.xlu0 %v714
  %v716 = vpop.xlane.xlu0 %715
  %v717 = vsel %vm212, %v713, -inf
  %718 = vmax.xlane.f32.xlu0 %v717
  %v719 = vpop.xlane.xlu0 %718
  %v720 = vsub.f32 %v712, %v716
  %v721 = vsub.f32 %v713, %v719
  %v722 = vmul.f32 %v720, 1.442695
  %v723 = vpow.pop %v722
  %v724 = vmul.f32 %v721, 1.442695
  %v725 = vpow.pop %v724
  %v726 = vsel %vm212, %v723, 0.0
  %727 = vadd.xlane.f32.xlu0 %v726
  %v728 = vpop.xlane.xlu0 %727
  %v729 = vsel %vm212, %v725, 0.0
  %730 = vadd.xlane.f32.xlu0 %v729
  %v731 = vpop.xlane.xlu0 %730
  %v732 = vrcp.pop %v728
  %v733 = vrcp.pop %v731
  %v734 = vmul.f32 %v723, %v732
  %v735 = vmul.f32 %v725, %v733
  %736 = vrot.lane.b32.xlu0 %v201, 56
  %v737 = vpop.permute.xlu0 %736
  %v740 = vsel %vm212, %v734, 0
  %742 = vmatprep.subr.mxu0 0.0
  %743 = vmatpush1.msra.mxu0 %v737
  %744 = vmatprep.subr.mxu0 0.0
  %745 = vmatpush1.msra.mxu0 0.0
  %746 = vmatprep.subr.mxu0 0.0
  %747 = vmatpush1.msra.mxu0 0.0
  %748 = vmatprep.subr.mxu0 0.0
  %749 = vmatpush1.msra.mxu0 0.0
  %750 = vmatprep.subr.mxu0 0.0
  %751 = vmatpush1.msra.mxu0 0.0
  %752 = vmatprep.subr.mxu0 0.0
  %753 = vmatpush1.msra.mxu0 0.0
  %754 = vmatprep.subr.mxu0 0.0
  %755 = vmatpush1.msra.mxu0 0.0
  %756 = vmatprep.subr.mxu0 0.0
  %757 = vmatpush1.msra.mxu0 0.0
  %758 = vmatprep.subr.mxu0 0.0
  %759 = vmatpush1.msra.mxu0 0.0
  %760 = vmatprep.subr.mxu0 0.0
  %761 = vmatpush1.msra.mxu0 0.0
  %762 = vmatprep.subr.mxu0 0.0
  %763 = vmatpush1.msra.mxu0 0.0
  %764 = vmatprep.subr.mxu0 0.0
  %765 = vmatpush1.msra.mxu0 0.0
  %766 = vmatprep.subr.mxu0 0.0
  %767 = vmatpush1.msra.mxu0 0.0
  %768 = vmatprep.subr.mxu0 0.0
  %769 = vmatpush1.msra.mxu0 0.0
  %770 = vmatprep.subr.mxu0 0.0
  %771 = vmatpush1.msra.mxu0 0.0
  %772 = vmatprep.subr.mxu0 0.0
  %773 = vmatpush1.msra.mxu0 0.0
  %774 = vmatprep.subr.mxu0 0.0
  %775 = vmatpush1.msra.mxu0 0.0
  %776 = vmatprep.subr.mxu0 0.0
  %777 = vmatpush1.msra.mxu0 0.0
  %778 = vmatprep.subr.mxu0 0.0
  %779 = vmatpush1.msra.mxu0 0.0
  %780 = vmatprep.subr.mxu0 0.0
  %781 = vmatpush1.msra.mxu0 0.0
  %782 = vmatprep.subr.mxu0 0.0
  %783 = vmatpush1.msra.mxu0 0.0
  %784 = vmatprep.subr.mxu0 0.0
  %785 = vmatpush1.msra.mxu0 0.0
  %786 = vmatprep.subr.mxu0 0.0
  %787 = vmatpush1.msra.mxu0 0.0
  %788 = vmatprep.subr.mxu0 0.0
  %789 = vmatpush1.msra.mxu0 0.0
  %790 = vmatprep.subr.mxu0 0.0
  %791 = vmatpush1.msra.mxu0 0.0
  %792 = vmatprep.subr.mxu0 0.0
  %793 = vmatpush1.msra.mxu0 0.0
  %794 = vmatprep.subr.mxu0 0.0
  %795 = vmatpush1.msra.mxu0 0.0
  %796 = vmatprep.subr.mxu0 0.0
  %797 = vmatpush1.msra.mxu0 0.0
  %798 = vmatprep.subr.mxu0 0.0
  %799 = vmatpush1.msra.mxu0 0.0
  %800 = vmatprep.subr.mxu0 0.0
  %801 = vmatpush1.msra.mxu0 0.0
  %802 = vmatprep.subr.mxu0 0.0
  %803 = vmatpush1.msra.mxu0 0.0
  %804 = vmatprep.subr.mxu0 0.0
  %805 = vmatpush1.msra.mxu0 0.0
  %806 = vmatprep.mubr.f32.mxu0 0.0
  %807 = vmatmul.mubr.f32.gmra.mrb[0].mxu0 %v740
  %v808 = vpop.f32.mrb[0].mxu0
  %v809 = vadd.f32 0.0, %v808
  %v810 = vpop.f32.mrb[0].mxu0
  %811 = vdwg.mxu0
  %812 = vrot.lane.b32.xlu0 %v206, 56
  %v813 = vpop.permute.xlu0 %812
  %v816 = vsel %vm212, %v735, 0
  %818 = vmatprep.subr.mxu0 0.0
  %819 = vmatpush1.msra.mxu0 %v813
  %820 = vmatprep.subr.mxu0 0.0
  %821 = vmatpush1.msra.mxu0 0.0
  %822 = vmatprep.subr.mxu0 0.0
  %823 = vmatpush1.msra.mxu0 0.0
  %824 = vmatprep.subr.mxu0 0.0
  %825 = vmatpush1.msra.mxu0 0.0
  %826 = vmatprep.subr.mxu0 0.0
  %827 = vmatpush1.msra.mxu0 0.0
  %828 = vmatprep.subr.mxu0 0.0
  %829 = vmatpush1.msra.mxu0 0.0
  %830 = vmatprep.subr.mxu0 0.0
  %831 = vmatpush1.msra.mxu0 0.0
  %832 = vmatprep.subr.mxu0 0.0
  %833 = vmatpush1.msra.mxu0 0.0
  %834 = vmatprep.subr.mxu0 0.0
  %835 = vmatpush1.msra.mxu0 0.0
  %836 = vmatprep.subr.mxu0 0.0
  %837 = vmatpush1.msra.mxu0 0.0
  %838 = vmatprep.subr.mxu0 0.0
  %839 = vmatpush1.msra.mxu0 0.0
  %840 = vmatprep.subr.mxu0 0.0
  %841 = vmatpush1.msra.mxu0 0.0
  %842 = vmatprep.subr.mxu0 0.0
  %843 = vmatpush1.msra.mxu0 0.0
  %844 = vmatprep.subr.mxu0 0.0
  %845 = vmatpush1.msra.mxu0 0.0
  %846 = vmatprep.subr.mxu0 0.0
  %847 = vmatpush1.msra.mxu0 0.0
  %848 = vmatprep.subr.mxu0 0.0
  %849 = vmatpush1.msra.mxu0 0.0
  %850 = vmatprep.subr.mxu0 0.0
  %851 = vmatpush1.msra.mxu0 0.0
  %852 = vmatprep.subr.mxu0 0.0
  %853 = vmatpush1.msra.mxu0 0.0
  %854 = vmatprep.subr.mxu0 0.0
  %855 = vmatpush1.msra.mxu0 0.0
  %856 = vmatprep.subr.mxu0 0.0
  %857 = vmatpush1.msra.mxu0 0.0
  %858 = vmatprep.subr.mxu0 0.0
  %859 = vmatpush1.msra.mxu0 0.0
  %860 = vmatprep.subr.mxu0 0.0
  %861 = vmatpush1.msra.mxu0 0.0
  %862 = vmatprep.subr.mxu0 0.0
  %863 = vmatpush1.msra.mxu0 0.0
  %864 = vmatprep.subr.mxu0 0.0
  %865 = vmatpush1.msra.mxu0 0.0
  %866 = vmatprep.subr.mxu0 0.0
  %867 = vmatpush1.msra.mxu0 0.0
  %868 = vmatprep.subr.mxu0 0.0
  %869 = vmatpush1.msra.mxu0 0.0
  %870 = vmatprep.subr.mxu0 0.0
  %871 = vmatpush1.msra.mxu0 0.0
  %872 = vmatprep.subr.mxu0 0.0
  %873 = vmatpush1.msra.mxu0 0.0
  %874 = vmatprep.subr.mxu0 0.0
  %875 = vmatpush1.msra.mxu0 0.0
  %876 = vmatprep.subr.mxu0 0.0
  %877 = vmatpush1.msra.mxu0 0.0
  %878 = vmatprep.subr.mxu0 0.0
  %879 = vmatpush1.msra.mxu0 0.0
  %880 = vmatprep.subr.mxu0 0.0
  %881 = vmatpush1.msra.mxu0 0.0
  %882 = vmatprep.mubr.f32.mxu0 0.0
  %883 = vmatmul.mubr.f32.gmra.mrb[0].mxu0 %v816
  %v884 = vpop.f32.mrb[0].mxu0
  %v885 = vadd.f32 0.0, %v884
  %v886 = vpop.f32.mrb[0].mxu0
  %887 = vdwg.mxu0
  %888 = vrot.lane.b32.xlu0 %v201, 112
  %v889 = vpop.permute.xlu0 %888
  %890 = vrot.lane.b32.xlu0 %v201, 80
  %v891 = vpop.permute.xlu0 %890
  %v892 = vsel %vm212, %v889, 0
  %v894 = vsel %vm212, %v891, 0
  %896 = vmatprep.subr.mxu0 0.0
  %897 = vmatpush1.xpose.msra.mxu0 %v894
  %898 = vmatprep.subr.mxu0 0.0
  %899 = vmatpush1.xpose.msra.mxu0 0.0
  %900 = vmatprep.subr.mxu0 0.0
  %901 = vmatpush1.xpose.msra.mxu0 0.0
  %902 = vmatprep.subr.mxu0 0.0
  %903 = vmatpush1.xpose.msra.mxu0 0.0
  %904 = vmatprep.subr.mxu0 0.0
  %905 = vmatpush1.xpose.msra.mxu0 0.0
  %906 = vmatprep.subr.mxu0 0.0
  %907 = vmatpush1.xpose.msra.mxu0 0.0
  %908 = vmatprep.subr.mxu0 0.0
  %909 = vmatpush1.xpose.msra.mxu0 0.0
  %910 = vmatprep.subr.mxu0 0.0
  %911 = vmatpush1.xpose.msra.mxu0 0.0
  %912 = vmatprep.subr.mxu0 0.0
  %913 = vmatpush1.xpose.msra.mxu0 0.0
  %914 = vmatprep.subr.mxu0 0.0
  %915 = vmatpush1.xpose.msra.mxu0 0.0
  %916 = vmatprep.subr.mxu0 0.0
  %917 = vmatpush1.xpose.msra.mxu0 0.0
  %918 = vmatprep.subr.mxu0 0.0
  %919 = vmatpush1.xpose.msra.mxu0 0.0
  %920 = vmatprep.subr.mxu0 0.0
  %921 = vmatpush1.xpose.msra.mxu0 0.0
  %922 = vmatprep.subr.mxu0 0.0
  %923 = vmatpush1.xpose.msra.mxu0 0.0
  %924 = vmatprep.subr.mxu0 0.0
  %925 = vmatpush1.xpose.msra.mxu0 0.0
  %926 = vmatprep.subr.mxu0 0.0
  %927 = vmatpush1.xpose.msra.mxu0 0.0
  %928 = vmatprep.subr.mxu0 0.0
  %929 = vmatpush1.xpose.msra.mxu0 0.0
  %930 = vmatprep.subr.mxu0 0.0
  %931 = vmatpush1.xpose.msra.mxu0 0.0
  %932 = vmatprep.subr.mxu0 0.0
  %933 = vmatpush1.xpose.msra.mxu0 0.0
  %934 = vmatprep.subr.mxu0 0.0
  %935 = vmatpush1.xpose.msra.mxu0 0.0
  %936 = vmatprep.subr.mxu0 0.0
  %937 = vmatpush1.xpose.msra.mxu0 0.0
  %938 = vmatprep.subr.mxu0 0.0
  %939 = vmatpush1.xpose.msra.mxu0 0.0
  %940 = vmatprep.subr.mxu0 0.0
  %941 = vmatpush1.xpose.msra.mxu0 0.0
  %942 = vmatprep.subr.mxu0 0.0
  %943 = vmatpush1.xpose.msra.mxu0 0.0
  %944 = vmatprep.subr.mxu0 0.0
  %945 = vmatpush1.xpose.msra.mxu0 0.0
  %946 = vmatprep.subr.mxu0 0.0
  %947 = vmatpush1.xpose.msra.mxu0 0.0
  %948 = vmatprep.subr.mxu0 0.0
  %949 = vmatpush1.xpose.msra.mxu0 0.0
  %950 = vmatprep.subr.mxu0 0.0
  %951 = vmatpush1.xpose.msra.mxu0 0.0
  %952 = vmatprep.subr.mxu0 0.0
  %953 = vmatpush1.xpose.msra.mxu0 0.0
  %954 = vmatprep.subr.mxu0 0.0
  %955 = vmatpush1.xpose.msra.mxu0 0.0
  %956 = vmatprep.subr.mxu0 0.0
  %957 = vmatpush1.xpose.msra.mxu0 0.0
  %958 = vmatprep.subr.mxu0 0.0
  %959 = vmatpush1.xpose.msra.mxu0 0.0
  %960 = vmatprep.mubr.f32.mxu0 0.0
  %961 = vmatmul.mubr.f32.gmra.mrb[0].mxu0 %v892
  %v962 = vpop.f32.mrb[0].mxu0
  %v963 = vadd.f32 0.0, %v962
  %v964 = vpop.f32.mrb[0].mxu0
  %965 = vdwg.mxu0
  %966 = vrot.lane.b32.xlu0 %v206, 112
  %v967 = vpop.permute.xlu0 %966
  %968 = vrot.lane.b32.xlu0 %v206, 80
  %v969 = vpop.permute.xlu0 %968
  %v970 = vsel %vm212, %v967, 0
  %v972 = vsel %vm212, %v969, 0
  %974 = vmatprep.subr.mxu0 0.0
  %975 = vmatpush1.xpose.msra.mxu0 %v972
  %976 = vmatprep.subr.mxu0 0.0
  %977 = vmatpush1.xpose.msra.mxu0 0.0
  %978 = vmatprep.subr.mxu0 0.0
  %979 = vmatpush1.xpose.msra.mxu0 0.0
  %980 = vmatprep.subr.mxu0 0.0
  %981 = vmatpush1.xpose.msra.mxu0 0.0
  %982 = vmatprep.subr.mxu0 0.0
  %983 = vmatpush1.xpose.msra.mxu0 0.0
  %984 = vmatprep.subr.mxu0 0.0
  %985 = vmatpush1.xpose.msra.mxu0 0.0
  %986 = vmatprep.subr.mxu0 0.0
  %987 = vmatpush1.xpose.msra.mxu0 0.0
  %988 = vmatprep.subr.mxu0 0.0
  %989 = vmatpush1.xpose.msra.mxu0 0.0
  %990 = vmatprep.subr.mxu0 0.0
  %991 = vmatpush1.xpose.msra.mxu0 0.0
  %992 = vmatprep.subr.mxu0 0.0
  %993 = vmatpush1.xpose.msra.mxu0 0.0
  %994 = vmatprep.subr.mxu0 0.0
  %995 = vmatpush1.xpose.msra.mxu0 0.0
  %996 = vmatprep.subr.mxu0 0.0
  %997 = vmatpush1.xpose.msra.mxu0 0.0
  %998 = vmatprep.subr.mxu0 0.0
  %999 = vmatpush1.xpose.msra.mxu0 0.0
  %1000 = vmatprep.subr.mxu0 0.0
  %1001 = vmatpush1.xpose.msra.mxu0 0.0
  %1002 = vmatprep.subr.mxu0 0.0
  %1003 = vmatpush1.xpose.msra.mxu0 0.0
  %1004 = vmatprep.subr.mxu0 0.0
  %1005 = vmatpush1.xpose.msra.mxu0 0.0
  %1006 = vmatprep.subr.mxu0 0.0
  %1007 = vmatpush1.xpose.msra.mxu0 0.0
  %1008 = vmatprep.subr.mxu0 0.0
  %1009 = vmatpush1.xpose.msra.mxu0 0.0
  %1010 = vmatprep.subr.mxu0 0.0
  %1011 = vmatpush1.xpose.msra.mxu0 0.0
  %1012 = vmatprep.subr.mxu0 0.0
  %1013 = vmatpush1.xpose.msra.mxu0 0.0
  %1014 = vmatprep.subr.mxu0 0.0
  %1015 = vmatpush1.xpose.msra.mxu0 0.0
  %1016 = vmatprep.subr.mxu0 0.0
  %1017 = vmatpush1.xpose.msra.mxu0 0.0
  %1018 = vmatprep.subr.mxu0 0.0
  %1019 = vmatpush1.xpose.msra.mxu0 0.0
  %1020 = vmatprep.subr.mxu0 0.0
  %1021 = vmatpush1.xpose.msra.mxu0 0.0
  %1022 = vmatprep.subr.mxu0 0.0
  %1023 = vmatpush1.xpose.msra.mxu0 0.0
  %1024 = vmatprep.subr.mxu0 0.0
  %1025 = vmatpush1.xpose.msra.mxu0 0.0
  %1026 = vmatprep.subr.mxu0 0.0
  %1027 = vmatpush1.xpose.msra.mxu0 0.0
  %1028 = vmatprep.subr.mxu0 0.0
  %1029 = vmatpush1.xpose.msra.mxu0 0.0
  %1030 = vmatprep.subr.mxu0 0.0
  %1031 = vmatpush1.xpose.msra.mxu0 0.0
  %1032 = vmatprep.subr.mxu0 0.0
  %1033 = vmatpush1.xpose.msra.mxu0 0.0
  %1034 = vmatprep.subr.mxu0 0.0
  %1035 = vmatpush1.xpose.msra.mxu0 0.0
  %1036 = vmatprep.subr.mxu0 0.0
  %1037 = vmatpush1.xpose.msra.mxu0 0.0
  %1038 = vmatprep.mubr.f32.mxu0 0.0
  %1039 = vmatmul.mubr.f32.gmra.mrb[0].mxu0 %v970
  %v1040 = vpop.f32.mrb[0].mxu0
  %v1041 = vadd.f32 0.0, %v1040
  %v1042 = vpop.f32.mrb[0].mxu0
  %1043 = vdwg.mxu0
  %v1044 = vmul.f32 %v963, 0.17677669
  %v1045 = vmul.f32 %v1041, 0.17677669
  %v1046 = vsel %vm376, %v1044, -1e+09
  %v1047 = vsel %vm377, %v1045, -1e+09
  %v1048 = vsel %vm212, %v1046, -inf
  %1049 = vmax.xlane.f32.xlu0 %v1048
  %v1050 = vpop.xlane.xlu0 %1049
  %v1051 = vsel %vm212, %v1047, -inf
  %1052 = vmax.xlane.f32.xlu0 %v1051
  %v1053 = vpop.xlane.xlu0 %1052
  %v1054 = vsub.f32 %v1046, %v1050
  %v1055 = vsub.f32 %v1047, %v1053
  %v1056 = vmul.f32 %v1054, 1.442695
  %v1057 = vpow.pop %v1056
  %v1058 = vmul.f32 %v1055, 1.442695
  %v1059 = vpow.pop %v1058
  %v1060 = vsel %vm212, %v1057, 0.0
  %1061 = vadd.xlane.f32.xlu0 %v1060
  %v1062 = vpop.xlane.xlu0 %1061
  %v1063 = vsel %vm212, %v1059, 0.0
  %1064 = vadd.xlane.f32.xlu0 %v1063
  %v1065 = vpop.xlane.xlu0 %1064
  %v1066 = vrcp.pop %v1062
  %v1067 = vrcp.pop %v1065
  %v1068 = vmul.f32 %v1057, %v1066
  %v1069 = vmul.f32 %v1059, %v1067
  %1070 = vrot.lane.b32.xlu0 %v201, 48
  %v1071 = vpop.permute.xlu0 %1070
  %v1074 = vsel %vm212, %v1068, 0
  %1076 = vmatprep.subr.mxu0 0.0
  %1077 = vmatpush1.msra.mxu0 %v1071
  %1078 = vmatprep.subr.mxu0 0.0
  %1079 = vmatpush1.msra.mxu0 0.0
  %1080 = vmatprep.subr.mxu0 0.0
  %1081 = vmatpush1.msra.mxu0 0.0
  %1082 = vmatprep.subr.mxu0 0.0
  %1083 = vmatpush1.msra.mxu0 0.0
  %1084 = vmatprep.subr.mxu0 0.0
  %1085 = vmatpush1.msra.mxu0 0.0
  %1086 = vmatprep.subr.mxu0 0.0
  %1087 = vmatpush1.msra.mxu0 0.0
  %1088 = vmatprep.subr.mxu0 0.0
  %1089 = vmatpush1.msra.mxu0 0.0
  %1090 = vmatprep.subr.mxu0 0.0
  %1091 = vmatpush1.msra.mxu0 0.0
  %1092 = vmatprep.subr.mxu0 0.0
  %1093 = vmatpush1.msra.mxu0 0.0
  %1094 = vmatprep.subr.mxu0 0.0
  %1095 = vmatpush1.msra.mxu0 0.0
  %1096 = vmatprep.subr.mxu0 0.0
  %1097 = vmatpush1.msra.mxu0 0.0
  %1098 = vmatprep.subr.mxu0 0.0
  %1099 = vmatpush1.msra.mxu0 0.0
  %1100 = vmatprep.subr.mxu0 0.0
  %1101 = vmatpush1.msra.mxu0 0.0
  %1102 = vmatprep.subr.mxu0 0.0
  %1103 = vmatpush1.msra.mxu0 0.0
  %1104 = vmatprep.subr.mxu0 0.0
  %1105 = vmatpush1.msra.mxu0 0.0
  %1106 = vmatprep.subr.mxu0 0.0
  %1107 = vmatpush1.msra.mxu0 0.0
  %1108 = vmatprep.subr.mxu0 0.0
  %1109 = vmatpush1.msra.mxu0 0.0
  %1110 = vmatprep.subr.mxu0 0.0
  %1111 = vmatpush1.msra.mxu0 0.0
  %1112 = vmatprep.subr.mxu0 0.0
  %1113 = vmatpush1.msra.mxu0 0.0
  %1114 = vmatprep.subr.mxu0 0.0
  %1115 = vmatpush1.msra.mxu0 0.0
  %1116 = vmatprep.subr.mxu0 0.0
  %1117 = vmatpush1.msra.mxu0 0.0
  %1118 = vmatprep.subr.mxu0 0.0
  %1119 = vmatpush1.msra.mxu0 0.0
  %1120 = vmatprep.subr.mxu0 0.0
  %1121 = vmatpush1.msra.mxu0 0.0
  %1122 = vmatprep.subr.mxu0 0.0
  %1123 = vmatpush1.msra.mxu0 0.0
  %1124 = vmatprep.subr.mxu0 0.0
  %1125 = vmatpush1.msra.mxu0 0.0
  %1126 = vmatprep.subr.mxu0 0.0
  %1127 = vmatpush1.msra.mxu0 0.0
  %1128 = vmatprep.subr.mxu0 0.0
  %1129 = vmatpush1.msra.mxu0 0.0
  %1130 = vmatprep.subr.mxu0 0.0
  %1131 = vmatpush1.msra.mxu0 0.0
  %1132 = vmatprep.subr.mxu0 0.0
  %1133 = vmatpush1.msra.mxu0 0.0
  %1134 = vmatprep.subr.mxu0 0.0
  %1135 = vmatpush1.msra.mxu0 0.0
  %1136 = vmatprep.subr.mxu0 0.0
  %1137 = vmatpush1.msra.mxu0 0.0
  %1138 = vmatprep.subr.mxu0 0.0
  %1139 = vmatpush1.msra.mxu0 0.0
  %1140 = vmatprep.mubr.f32.mxu0 0.0
  %1141 = vmatmul.mubr.f32.gmra.mrb[0].mxu0 %v1074
  %v1142 = vpop.f32.mrb[0].mxu0
  %v1143 = vadd.f32 0.0, %v1142
  %v1144 = vpop.f32.mrb[0].mxu0
  %1145 = vdwg.mxu0
  %1146 = vrot.lane.b32.xlu0 %v206, 48
  %v1147 = vpop.permute.xlu0 %1146
  %v1150 = vsel %vm212, %v1069, 0
  %1152 = vmatprep.subr.mxu0 0.0
  %1153 = vmatpush1.msra.mxu0 %v1147
  %1154 = vmatprep.subr.mxu0 0.0
  %1155 = vmatpush1.msra.mxu0 0.0
  %1156 = vmatprep.subr.mxu0 0.0
  %1157 = vmatpush1.msra.mxu0 0.0
  %1158 = vmatprep.subr.mxu0 0.0
  %1159 = vmatpush1.msra.mxu0 0.0
  %1160 = vmatprep.subr.mxu0 0.0
  %1161 = vmatpush1.msra.mxu0 0.0
  %1162 = vmatprep.subr.mxu0 0.0
  %1163 = vmatpush1.msra.mxu0 0.0
  %1164 = vmatprep.subr.mxu0 0.0
  %1165 = vmatpush1.msra.mxu0 0.0
  %1166 = vmatprep.subr.mxu0 0.0
  %1167 = vmatpush1.msra.mxu0 0.0
  %1168 = vmatprep.subr.mxu0 0.0
  %1169 = vmatpush1.msra.mxu0 0.0
  %1170 = vmatprep.subr.mxu0 0.0
  %1171 = vmatpush1.msra.mxu0 0.0
  %1172 = vmatprep.subr.mxu0 0.0
  %1173 = vmatpush1.msra.mxu0 0.0
  %1174 = vmatprep.subr.mxu0 0.0
  %1175 = vmatpush1.msra.mxu0 0.0
  %1176 = vmatprep.subr.mxu0 0.0
  %1177 = vmatpush1.msra.mxu0 0.0
  %1178 = vmatprep.subr.mxu0 0.0
  %1179 = vmatpush1.msra.mxu0 0.0
  %1180 = vmatprep.subr.mxu0 0.0
  %1181 = vmatpush1.msra.mxu0 0.0
  %1182 = vmatprep.subr.mxu0 0.0
  %1183 = vmatpush1.msra.mxu0 0.0
  %1184 = vmatprep.subr.mxu0 0.0
  %1185 = vmatpush1.msra.mxu0 0.0
  %1186 = vmatprep.subr.mxu0 0.0
  %1187 = vmatpush1.msra.mxu0 0.0
  %1188 = vmatprep.subr.mxu0 0.0
  %1189 = vmatpush1.msra.mxu0 0.0
  %1190 = vmatprep.subr.mxu0 0.0
  %1191 = vmatpush1.msra.mxu0 0.0
  %1192 = vmatprep.subr.mxu0 0.0
  %1193 = vmatpush1.msra.mxu0 0.0
  %1194 = vmatprep.subr.mxu0 0.0
  %1195 = vmatpush1.msra.mxu0 0.0
  %1196 = vmatprep.subr.mxu0 0.0
  %1197 = vmatpush1.msra.mxu0 0.0
  %1198 = vmatprep.subr.mxu0 0.0
  %1199 = vmatpush1.msra.mxu0 0.0
  %1200 = vmatprep.subr.mxu0 0.0
  %1201 = vmatpush1.msra.mxu0 0.0
  %1202 = vmatprep.subr.mxu0 0.0
  %1203 = vmatpush1.msra.mxu0 0.0
  %1204 = vmatprep.subr.mxu0 0.0
  %1205 = vmatpush1.msra.mxu0 0.0
  %1206 = vmatprep.subr.mxu0 0.0
  %1207 = vmatpush1.msra.mxu0 0.0
  %1208 = vmatprep.subr.mxu0 0.0
  %1209 = vmatpush1.msra.mxu0 0.0
  %1210 = vmatprep.subr.mxu0 0.0
  %1211 = vmatpush1.msra.mxu0 0.0
  %1212 = vmatprep.subr.mxu0 0.0
  %1213 = vmatpush1.msra.mxu0 0.0
  %1214 = vmatprep.subr.mxu0 0.0
  %1215 = vmatpush1.msra.mxu0 0.0
  %1216 = vmatprep.mubr.f32.mxu0 0.0
  %1217 = vmatmul.mubr.f32.gmra.mrb[0].mxu0 %v1150
  %v1218 = vpop.f32.mrb[0].mxu0
  %v1219 = vadd.f32 0.0, %v1218
  %v1220 = vpop.f32.mrb[0].mxu0
  %1221 = vdwg.mxu0
  %1222 = vrot.lane.b32.xlu0 %v201, 104
  %v1223 = vpop.permute.xlu0 %1222
  %1224 = vrot.lane.b32.xlu0 %v201, 72
  %v1225 = vpop.permute.xlu0 %1224
  %v1226 = vsel %vm212, %v1223, 0
  %v1228 = vsel %vm212, %v1225, 0
  %1230 = vmatprep.subr.mxu0 0.0
  %1231 = vmatpush1.xpose.msra.mxu0 %v1228
  %1232 = vmatprep.subr.mxu0 0.0
  %1233 = vmatpush1.xpose.msra.mxu0 0.0
  %1234 = vmatprep.subr.mxu0 0.0
  %1235 = vmatpush1.xpose.msra.mxu0 0.0
  %1236 = vmatprep.subr.mxu0 0.0
  %1237 = vmatpush1.xpose.msra.mxu0 0.0
  %1238 = vmatprep.subr.mxu0 0.0
  %1239 = vmatpush1.xpose.msra.mxu0 0.0
  %1240 = vmatprep.subr.mxu0 0.0
  %1241 = vmatpush1.xpose.msra.mxu0 0.0
  %1242 = vmatprep.subr.mxu0 0.0
  %1243 = vmatpush1.xpose.msra.mxu0 0.0
  %1244 = vmatprep.subr.mxu0 0.0
  %1245 = vmatpush1.xpose.msra.mxu0 0.0
  %1246 = vmatprep.subr.mxu0 0.0
  %1247 = vmatpush1.xpose.msra.mxu0 0.0
  %1248 = vmatprep.subr.mxu0 0.0
  %1249 = vmatpush1.xpose.msra.mxu0 0.0
  %1250 = vmatprep.subr.mxu0 0.0
  %1251 = vmatpush1.xpose.msra.mxu0 0.0
  %1252 = vmatprep.subr.mxu0 0.0
  %1253 = vmatpush1.xpose.msra.mxu0 0.0
  %1254 = vmatprep.subr.mxu0 0.0
  %1255 = vmatpush1.xpose.msra.mxu0 0.0
  %1256 = vmatprep.subr.mxu0 0.0
  %1257 = vmatpush1.xpose.msra.mxu0 0.0
  %1258 = vmatprep.subr.mxu0 0.0
  %1259 = vmatpush1.xpose.msra.mxu0 0.0
  %1260 = vmatprep.subr.mxu0 0.0
  %1261 = vmatpush1.xpose.msra.mxu0 0.0
  %1262 = vmatprep.subr.mxu0 0.0
  %1263 = vmatpush1.xpose.msra.mxu0 0.0
  %1264 = vmatprep.subr.mxu0 0.0
  %1265 = vmatpush1.xpose.msra.mxu0 0.0
  %1266 = vmatprep.subr.mxu0 0.0
  %1267 = vmatpush1.xpose.msra.mxu0 0.0
  %1268 = vmatprep.subr.mxu0 0.0
  %1269 = vmatpush1.xpose.msra.mxu0 0.0
  %1270 = vmatprep.subr.mxu0 0.0
  %1271 = vmatpush1.xpose.msra.mxu0 0.0
  %1272 = vmatprep.subr.mxu0 0.0
  %1273 = vmatpush1.xpose.msra.mxu0 0.0
  %1274 = vmatprep.subr.mxu0 0.0
  %1275 = vmatpush1.xpose.msra.mxu0 0.0
  %1276 = vmatprep.subr.mxu0 0.0
  %1277 = vmatpush1.xpose.msra.mxu0 0.0
  %1278 = vmatprep.subr.mxu0 0.0
  %1279 = vmatpush1.xpose.msra.mxu0 0.0
  %1280 = vmatprep.subr.mxu0 0.0
  %1281 = vmatpush1.xpose.msra.mxu0 0.0
  %1282 = vmatprep.subr.mxu0 0.0
  %1283 = vmatpush1.xpose.msra.mxu0 0.0
  %1284 = vmatprep.subr.mxu0 0.0
  %1285 = vmatpush1.xpose.msra.mxu0 0.0
  %1286 = vmatprep.subr.mxu0 0.0
  %1287 = vmatpush1.xpose.msra.mxu0 0.0
  %1288 = vmatprep.subr.mxu0 0.0
  %1289 = vmatpush1.xpose.msra.mxu0 0.0
  %1290 = vmatprep.subr.mxu0 0.0
  %1291 = vmatpush1.xpose.msra.mxu0 0.0
  %1292 = vmatprep.subr.mxu0 0.0
  %1293 = vmatpush1.xpose.msra.mxu0 0.0
  %1294 = vmatprep.mubr.f32.mxu0 0.0
  %1295 = vmatmul.mubr.f32.gmra.mrb[0].mxu0 %v1226
  %v1296 = vpop.f32.mrb[0].mxu0
  %v1297 = vadd.f32 0.0, %v1296
  %v1298 = vpop.f32.mrb[0].mxu0
  %1299 = vdwg.mxu0
  %1300 = vrot.lane.b32.xlu0 %v206, 104
  %v1301 = vpop.permute.xlu0 %1300
  %1302 = vrot.lane.b32.xlu0 %v206, 72
  %v1303 = vpop.permute.xlu0 %1302
  %v1304 = vsel %vm212, %v1301, 0
  %v1306 = vsel %vm212, %v1303, 0
  %1308 = vmatprep.subr.mxu0 0.0
  %1309 = vmatpush1.xpose.msra.mxu0 %v1306
  %1310 = vmatprep.subr.mxu0 0.0
  %1311 = vmatpush1.xpose.msra.mxu0 0.0
  %1312 = vmatprep.subr.mxu0 0.0
  %1313 = vmatpush1.xpose.msra.mxu0 0.0
  %1314 = vmatprep.subr.mxu0 0.0
  %1315 = vmatpush1.xpose.msra.mxu0 0.0
  %1316 = vmatprep.subr.mxu0 0.0
  %1317 = vmatpush1.xpose.msra.mxu0 0.0
  %1318 = vmatprep.subr.mxu0 0.0
  %1319 = vmatpush1.xpose.msra.mxu0 0.0
  %1320 = vmatprep.subr.mxu0 0.0
  %1321 = vmatpush1.xpose.msra.mxu0 0.0
  %1322 = vmatprep.subr.mxu0 0.0
  %1323 = vmatpush1.xpose.msra.mxu0 0.0
  %1324 = vmatprep.subr.mxu0 0.0
  %1325 = vmatpush1.xpose.msra.mxu0 0.0
  %1326 = vmatprep.subr.mxu0 0.0
  %1327 = vmatpush1.xpose.msra.mxu0 0.0
  %1328 = vmatprep.subr.mxu0 0.0
  %1329 = vmatpush1.xpose.msra.mxu0 0.0
  %1330 = vmatprep.subr.mxu0 0.0
  %1331 = vmatpush1.xpose.msra.mxu0 0.0
  %1332 = vmatprep.subr.mxu0 0.0
  %1333 = vmatpush1.xpose.msra.mxu0 0.0
  %1334 = vmatprep.subr.mxu0 0.0
  %1335 = vmatpush1.xpose.msra.mxu0 0.0
  %1336 = vmatprep.subr.mxu0 0.0
  %1337 = vmatpush1.xpose.msra.mxu0 0.0
  %1338 = vmatprep.subr.mxu0 0.0
  %1339 = vmatpush1.xpose.msra.mxu0 0.0
  %1340 = vmatprep.subr.mxu0 0.0
  %1341 = vmatpush1.xpose.msra.mxu0 0.0
  %1342 = vmatprep.subr.mxu0 0.0
  %1343 = vmatpush1.xpose.msra.mxu0 0.0
  %1344 = vmatprep.subr.mxu0 0.0
  %1345 = vmatpush1.xpose.msra.mxu0 0.0
  %1346 = vmatprep.subr.mxu0 0.0
  %1347 = vmatpush1.xpose.msra.mxu0 0.0
  %1348 = vmatprep.subr.mxu0 0.0
  %1349 = vmatpush1.xpose.msra.mxu0 0.0
  %1350 = vmatprep.subr.mxu0 0.0
  %1351 = vmatpush1.xpose.msra.mxu0 0.0
  %1352 = vmatprep.subr.mxu0 0.0
  %1353 = vmatpush1.xpose.msra.mxu0 0.0
  %1354 = vmatprep.subr.mxu0 0.0
  %1355 = vmatpush1.xpose.msra.mxu0 0.0
  %1356 = vmatprep.subr.mxu0 0.0
  %1357 = vmatpush1.xpose.msra.mxu0 0.0
  %1358 = vmatprep.subr.mxu0 0.0
  %1359 = vmatpush1.xpose.msra.mxu0 0.0
  %1360 = vmatprep.subr.mxu0 0.0
  %1361 = vmatpush1.xpose.msra.mxu0 0.0
  %1362 = vmatprep.subr.mxu0 0.0
  %1363 = vmatpush1.xpose.msra.mxu0 0.0
  %1364 = vmatprep.subr.mxu0 0.0
  %1365 = vmatpush1.xpose.msra.mxu0 0.0
  %1366 = vmatprep.subr.mxu0 0.0
  %1367 = vmatpush1.xpose.msra.mxu0 0.0
  %1368 = vmatprep.subr.mxu0 0.0
  %1369 = vmatpush1.xpose.msra.mxu0 0.0
  %1370 = vmatprep.subr.mxu0 0.0
  %1371 = vmatpush1.xpose.msra.mxu0 0.0
  %1372 = vmatprep.mubr.f32.mxu0 0.0
  %1373 = vmatmul.mubr.f32.gmra.mrb[0].mxu0 %v1304
  %v1374 = vpop.f32.mrb[0].mxu0
  %v1375 = vadd.f32 0.0, %v1374
  %v1376 = vpop.f32.mrb[0].mxu0
  %1377 = vdwg.mxu0
  %v1378 = vmul.f32 %v1297, 0.17677669
  %v1379 = vmul.f32 %v1375, 0.17677669
  %v1380 = vsel %vm376, %v1378, -1e+09
  %v1381 = vsel %vm377, %v1379, -1e+09
  %v1382 = vsel %vm212, %v1380, -inf
  %1383 = vmax.xlane.f32.xlu0 %v1382
  %v1384 = vpop.xlane.xlu0 %1383
  %v1385 = vsel %vm212, %v1381, -inf
  %1386 = vmax.xlane.f32.xlu0 %v1385
  %v1387 = vpop.xlane.xlu0 %1386
  %v1388 = vsub.f32 %v1380, %v1384
  %v1389 = vsub.f32 %v1381, %v1387
  %v1390 = vmul.f32 %v1388, 1.442695
  %v1391 = vpow.pop %v1390
  %v1392 = vmul.f32 %v1389, 1.442695
  %v1393 = vpow.pop %v1392
  %v1394 = vsel %vm212, %v1391, 0.0
  %1395 = vadd.xlane.f32.xlu0 %v1394
  %v1396 = vpop.xlane.xlu0 %1395
  %v1397 = vsel %vm212, %v1393, 0.0
  %1398 = vadd.xlane.f32.xlu0 %v1397
  %v1399 = vpop.xlane.xlu0 %1398
  %v1400 = vrcp.pop %v1396
  %v1401 = vrcp.pop %v1399
  %v1402 = vmul.f32 %v1391, %v1400
  %v1403 = vmul.f32 %v1393, %v1401
  %1404 = vrot.lane.b32.xlu0 %v201, 40
  %v1405 = vpop.permute.xlu0 %1404
  %v1408 = vsel %vm212, %v1402, 0
  %1410 = vmatprep.subr.mxu0 0.0
  %1411 = vmatpush1.msra.mxu0 %v1405
  %1412 = vmatprep.subr.mxu0 0.0
  %1413 = vmatpush1.msra.mxu0 0.0
  %1414 = vmatprep.subr.mxu0 0.0
  %1415 = vmatpush1.msra.mxu0 0.0
  %1416 = vmatprep.subr.mxu0 0.0
  %1417 = vmatpush1.msra.mxu0 0.0
  %1418 = vmatprep.subr.mxu0 0.0
  %1419 = vmatpush1.msra.mxu0 0.0
  %1420 = vmatprep.subr.mxu0 0.0
  %1421 = vmatpush1.msra.mxu0 0.0
  %1422 = vmatprep.subr.mxu0 0.0
  %1423 = vmatpush1.msra.mxu0 0.0
  %1424 = vmatprep.subr.mxu0 0.0
  %1425 = vmatpush1.msra.mxu0 0.0
  %1426 = vmatprep.subr.mxu0 0.0
  %1427 = vmatpush1.msra.mxu0 0.0
  %1428 = vmatprep.subr.mxu0 0.0
  %1429 = vmatpush1.msra.mxu0 0.0
  %1430 = vmatprep.subr.mxu0 0.0
  %1431 = vmatpush1.msra.mxu0 0.0
  %1432 = vmatprep.subr.mxu0 0.0
  %1433 = vmatpush1.msra.mxu0 0.0
  %1434 = vmatprep.subr.mxu0 0.0
  %1435 = vmatpush1.msra.mxu0 0.0
  %1436 = vmatprep.subr.mxu0 0.0
  %1437 = vmatpush1.msra.mxu0 0.0
  %1438 = vmatprep.subr.mxu0 0.0
  %1439 = vmatpush1.msra.mxu0 0.0
  %1440 = vmatprep.subr.mxu0 0.0
  %1441 = vmatpush1.msra.mxu0 0.0
  %1442 = vmatprep.subr.mxu0 0.0
  %1443 = vmatpush1.msra.mxu0 0.0
  %1444 = vmatprep.subr.mxu0 0.0
  %1445 = vmatpush1.msra.mxu0 0.0
  %1446 = vmatprep.subr.mxu0 0.0
  %1447 = vmatpush1.msra.mxu0 0.0
  %1448 = vmatprep.subr.mxu0 0.0
  %1449 = vmatpush1.msra.mxu0 0.0
  %1450 = vmatprep.subr.mxu0 0.0
  %1451 = vmatpush1.msra.mxu0 0.0
  %1452 = vmatprep.subr.mxu0 0.0
  %1453 = vmatpush1.msra.mxu0 0.0
  %1454 = vmatprep.subr.mxu0 0.0
  %1455 = vmatpush1.msra.mxu0 0.0
  %1456 = vmatprep.subr.mxu0 0.0
  %1457 = vmatpush1.msra.mxu0 0.0
  %1458 = vmatprep.subr.mxu0 0.0
  %1459 = vmatpush1.msra.mxu0 0.0
  %1460 = vmatprep.subr.mxu0 0.0
  %1461 = vmatpush1.msra.mxu0 0.0
  %1462 = vmatprep.subr.mxu0 0.0
  %1463 = vmatpush1.msra.mxu0 0.0
  %1464 = vmatprep.subr.mxu0 0.0
  %1465 = vmatpush1.msra.mxu0 0.0
  %1466 = vmatprep.subr.mxu0 0.0
  %1467 = vmatpush1.msra.mxu0 0.0
  %1468 = vmatprep.subr.mxu0 0.0
  %1469 = vmatpush1.msra.mxu0 0.0
  %1470 = vmatprep.subr.mxu0 0.0
  %1471 = vmatpush1.msra.mxu0 0.0
  %1472 = vmatprep.subr.mxu0 0.0
  %1473 = vmatpush1.msra.mxu0 0.0
  %1474 = vmatprep.mubr.f32.mxu0 0.0
  %1475 = vmatmul.mubr.f32.gmra.mrb[0].mxu0 %v1408
  %v1476 = vpop.f32.mrb[0].mxu0
  %v1477 = vadd.f32 0.0, %v1476
  %v1478 = vpop.f32.mrb[0].mxu0
  %1479 = vdwg.mxu0
  %1480 = vrot.lane.b32.xlu0 %v206, 40
  %v1481 = vpop.permute.xlu0 %1480
  %v1484 = vsel %vm212, %v1403, 0
  %1486 = vmatprep.subr.mxu0 0.0
  %1487 = vmatpush1.msra.mxu0 %v1481
  %1488 = vmatprep.subr.mxu0 0.0
  %1489 = vmatpush1.msra.mxu0 0.0
  %1490 = vmatprep.subr.mxu0 0.0
  %1491 = vmatpush1.msra.mxu0 0.0
  %1492 = vmatprep.subr.mxu0 0.0
  %1493 = vmatpush1.msra.mxu0 0.0
  %1494 = vmatprep.subr.mxu0 0.0
  %1495 = vmatpush1.msra.mxu0 0.0
  %1496 = vmatprep.subr.mxu0 0.0
  %1497 = vmatpush1.msra.mxu0 0.0
  %1498 = vmatprep.subr.mxu0 0.0
  %1499 = vmatpush1.msra.mxu0 0.0
  %1500 = vmatprep.subr.mxu0 0.0
  %1501 = vmatpush1.msra.mxu0 0.0
  %1502 = vmatprep.subr.mxu0 0.0
  %1503 = vmatpush1.msra.mxu0 0.0
  %1504 = vmatprep.subr.mxu0 0.0
  %1505 = vmatpush1.msra.mxu0 0.0
  %1506 = vmatprep.subr.mxu0 0.0
  %1507 = vmatpush1.msra.mxu0 0.0
  %1508 = vmatprep.subr.mxu0 0.0
  %1509 = vmatpush1.msra.mxu0 0.0
  %1510 = vmatprep.subr.mxu0 0.0
  %1511 = vmatpush1.msra.mxu0 0.0
  %1512 = vmatprep.subr.mxu0 0.0
  %1513 = vmatpush1.msra.mxu0 0.0
  %1514 = vmatprep.subr.mxu0 0.0
  %1515 = vmatpush1.msra.mxu0 0.0
  %1516 = vmatprep.subr.mxu0 0.0
  %1517 = vmatpush1.msra.mxu0 0.0
  %1518 = vmatprep.subr.mxu0 0.0
  %1519 = vmatpush1.msra.mxu0 0.0
  %1520 = vmatprep.subr.mxu0 0.0
  %1521 = vmatpush1.msra.mxu0 0.0
  %1522 = vmatprep.subr.mxu0 0.0
  %1523 = vmatpush1.msra.mxu0 0.0
  %1524 = vmatprep.subr.mxu0 0.0
  %1525 = vmatpush1.msra.mxu0 0.0
  %1526 = vmatprep.subr.mxu0 0.0
  %1527 = vmatpush1.msra.mxu0 0.0
  %1528 = vmatprep.subr.mxu0 0.0
  %1529 = vmatpush1.msra.mxu0 0.0
  %1530 = vmatprep.subr.mxu0 0.0
  %1531 = vmatpush1.msra.mxu0 0.0
  %1532 = vmatprep.subr.mxu0 0.0
  %1533 = vmatpush1.msra.mxu0 0.0
  %1534 = vmatprep.subr.mxu0 0.0
  %1535 = vmatpush1.msra.mxu0 0.0
  %1536 = vmatprep.subr.mxu0 0.0
  %1537 = vmatpush1.msra.mxu0 0.0
  %1538 = vmatprep.subr.mxu0 0.0
  %1539 = vmatpush1.msra.mxu0 0.0
  %1540 = vmatprep.subr.mxu0 0.0
  %1541 = vmatpush1.msra.mxu0 0.0
  %1542 = vmatprep.subr.mxu0 0.0
  %1543 = vmatpush1.msra.mxu0 0.0
  %1544 = vmatprep.subr.mxu0 0.0
  %1545 = vmatpush1.msra.mxu0 0.0
  %1546 = vmatprep.subr.mxu0 0.0
  %1547 = vmatpush1.msra.mxu0 0.0
  %1548 = vmatprep.subr.mxu0 0.0
  %1549 = vmatpush1.msra.mxu0 0.0
  %1550 = vmatprep.mubr.f32.mxu0 0.0
  %1551 = vmatmul.mubr.f32.gmra.mrb[0].mxu0 %v1484
  %v1552 = vpop.f32.mrb[0].mxu0
  %v1553 = vadd.f32 0.0, %v1552
  %v1554 = vpop.f32.mrb[0].mxu0
  %1555 = vdwg.mxu0
  %1558 = vrot.lane.b32.xlu0 %v809, 8
  %v1559 = vpop.permute.xlu0 %1558
  %1560 = vrot.lane.b32.xlu0 %v885, 8
  %v1561 = vpop.permute.xlu0 %1560
  %1566 = vrot.lane.b32.xlu0 %v1143, 16
  %v1567 = vpop.permute.xlu0 %1566
  %1568 = vrot.lane.b32.xlu0 %v1219, 16
  %v1569 = vpop.permute.xlu0 %1568
  %1574 = vrot.lane.b32.xlu0 %v1477, 24
  %v1575 = vpop.permute.xlu0 %1574
  %1576 = vrot.lane.b32.xlu0 %v1553, 24
  %v1577 = vpop.permute.xlu0 %1576
  %v1580 = vsel %vm212, %v475, %v1559
  %v1581 = vsel %vm212, %v551, %v1561
  %vm1582 = vcmask 130048
  %v1583 = vsel %vm1582, %v1580, %v1567
  %v1584 = vsel %vm1582, %v1581, %v1569
  %vm1585 = vcmask 195584
  %v1586 = vsel %vm1585, %v1583, %v1575
  %v1587 = vsel %vm1585, %v1584, %v1577
  %v1588 = vld [vmem:[%s7] sm:$0xff]
  %v1589 = vld [vmem:[%s7 + $0x8] sm:$0xff]
  %v1590 = vld [vmem:[%s7 + $0x10] sm:$0xff]
  %v1591 = vld [vmem:[%s7 + $0x18] sm:$0xff]
  %v1592 = vld [vmem:[%s8] sm:$0x1]
  %v1594 = vlaneseq
  %v1595 = vshrl.u32 %v1594, 7
  %v1596 = vsub.s32 0, %v1595
  %v1597 = vrot.slane %v1592, %v1596
  %v1600 = vsel %vm69, %v1586, 0
  %v1603 = vsel %vm69, %v1587, 0
  %1605 = vmatprep.subr.mxu0 0.0
  %1606 = vmatpush1.msra.mxu0 %v1588
  %1607 = vmatprep.subr.mxu0 0.0
  %1608 = vmatpush1.msra.mxu0 %v1589
  %1609 = vmatprep.subr.mxu0 0.0
  %1610 = vmatpush1.msra.mxu0 %v1590
  %1611 = vmatprep.subr.mxu0 0.0
  %1612 = vmatpush1.msra.mxu0 %v1591
  %1613 = vmatprep.subr.mxu0 0.0
  %1614 = vmatpush1.msra.mxu0 0.0
  %1615 = vmatprep.subr.mxu0 0.0
  %1616 = vmatpush1.msra.mxu0 0.0
  %1617 = vmatprep.subr.mxu0 0.0
  %1618 = vmatpush1.msra.mxu0 0.0
  %1619 = vmatprep.subr.mxu0 0.0
  %1620 = vmatpush1.msra.mxu0 0.0
  %1621 = vmatprep.subr.mxu0 0.0
  %1622 = vmatpush1.msra.mxu0 0.0
  %1623 = vmatprep.subr.mxu0 0.0
  %1624 = vmatpush1.msra.mxu0 0.0
  %1625 = vmatprep.subr.mxu0 0.0
  %1626 = vmatpush1.msra.mxu0 0.0
  %1627 = vmatprep.subr.mxu0 0.0
  %1628 = vmatpush1.msra.mxu0 0.0
  %1629 = vmatprep.subr.mxu0 0.0
  %1630 = vmatpush1.msra.mxu0 0.0
  %1631 = vmatprep.subr.mxu0 0.0
  %1632 = vmatpush1.msra.mxu0 0.0
  %1633 = vmatprep.subr.mxu0 0.0
  %1634 = vmatpush1.msra.mxu0 0.0
  %1635 = vmatprep.subr.mxu0 0.0
  %1636 = vmatpush1.msra.mxu0 0.0
  %1637 = vmatprep.subr.mxu0 0.0
  %1638 = vmatpush1.msra.mxu0 0.0
  %1639 = vmatprep.subr.mxu0 0.0
  %1640 = vmatpush1.msra.mxu0 0.0
  %1641 = vmatprep.subr.mxu0 0.0
  %1642 = vmatpush1.msra.mxu0 0.0
  %1643 = vmatprep.subr.mxu0 0.0
  %1644 = vmatpush1.msra.mxu0 0.0
  %1645 = vmatprep.subr.mxu0 0.0
  %1646 = vmatpush1.msra.mxu0 0.0
  %1647 = vmatprep.subr.mxu0 0.0
  %1648 = vmatpush1.msra.mxu0 0.0
  %1649 = vmatprep.subr.mxu0 0.0
  %1650 = vmatpush1.msra.mxu0 0.0
  %1651 = vmatprep.subr.mxu0 0.0
  %1652 = vmatpush1.msra.mxu0 0.0
  %1653 = vmatprep.subr.mxu0 0.0
  %1654 = vmatpush1.msra.mxu0 0.0
  %1655 = vmatprep.subr.mxu0 0.0
  %1656 = vmatpush1.msra.mxu0 0.0
  %1657 = vmatprep.subr.mxu0 0.0
  %1658 = vmatpush1.msra.mxu0 0.0
  %1659 = vmatprep.subr.mxu0 0.0
  %1660 = vmatpush1.msra.mxu0 0.0
  %1661 = vmatprep.subr.mxu0 0.0
  %1662 = vmatpush1.msra.mxu0 0.0
  %1663 = vmatprep.subr.mxu0 0.0
  %1664 = vmatpush1.msra.mxu0 0.0
  %1665 = vmatprep.subr.mxu0 0.0
  %1666 = vmatpush1.msra.mxu0 0.0
  %1667 = vmatprep.subr.mxu0 0.0
  %1668 = vmatpush1.msra.mxu0 0.0
  %1669 = vmatprep.mubr.f32.mxu0 0.0
  %1670 = vmatmul.mubr.f32.gmra.mrb[0].mxu0 %v1600
  %v1671 = vpop.f32.mrb[0].mxu0
  %v1672 = vadd.f32 %v1597, %v1671
  %v1673 = vpop.f32.mrb[0].mxu0
  %1674 = vmatprep.mubr.f32.mxu0 0.0
  %1675 = vmatmul.mubr.f32.gmra.mrb[0].mxu0 %v1603
  %v1676 = vpop.f32.mrb[0].mxu0
  %v1677 = vadd.f32 %v1597, %v1676
  %v1678 = vpop.f32.mrb[0].mxu0
  %1679 = vdwg.mxu0
  %v1680 = vadd.f32 %v1672, %v111
  %v1681 = vadd.f32 %v1677, %v112
  %v1682 = vld [vmem:[%s9] sm:$0x1]
  %v1683 = vld [vmem:[%s10] sm:$0x1]
  %v1684 = vsel %vm69, %v1680, 0.0
  %1685 = vadd.xlane.f32.xlu0 %v1684
  %v1686 = vpop.xlane.xlu0 %1685
  %v1687 = vsel %vm69, %v1681, 0.0
  %1688 = vadd.xlane.f32.xlu0 %v1687
  %v1689 = vpop.xlane.xlu0 %1688
  %v1690 = vmul.f32 %v1686, %v76
  %v1691 = vmul.f32 %v1689, %v76
  %v1692 = vsub.f32 %v1680, %v1690
  %v1693 = vsub.f32 %v1681, %v1691
  %v1694 = vmul.f32 %v1692, %v1692
  %v1695 = vmul.f32 %v1693, %v1693
  %v1696 = vsel %vm69, %v1694, 0.0
  %1697 = vadd.xlane.f32.xlu0 %v1696
  %v1698 = vpop.xlane.xlu0 %1697
  %v1699 = vsel %vm69, %v1695, 0.0
  %1700 = vadd.xlane.f32.xlu0 %v1699
  %v1701 = vpop.xlane.xlu0 %1700
  %v1702 = vmul.f32 %v1698, %v76
  %v1703 = vmul.f32 %v1701, %v76
  %v1704 = vadd.f32 %v1702, 1e-06
  %v1705 = vadd.f32 %v1703, 1e-06
  %v1706 = vrsqrt.pop %v1704
  %v1707 = vrsqrt.pop %v1705
  %v1708 = vmul.f32 %v1692, %v1706
  %v1709 = vmul.f32 %v1693, %v1707
  %v1711 = vlaneseq
  %v1712 = vshrl.u32 %v1711, 7
  %v1713 = vsub.s32 0, %v1712
  %v1714 = vrot.slane %v1682, %v1713
  %v1716 = vmul.f32 %v1708, %v1714
  %v1717 = vmul.f32 %v1709, %v1714
  %v1719 = vlaneseq
  %v1720 = vshrl.u32 %v1719, 7
  %v1721 = vsub.s32 0, %v1720
  %v1722 = vrot.slane %v1683, %v1721
  %v1724 = vadd.f32 %v1716, %v1722
  %v1725 = vadd.f32 %v1717, %v1722
  %v1726 = vld [vmem:[%s11] sm:$0xff]
  %v1727 = vld [vmem:[%s11 + $0x8] sm:$0xff]
  %v1728 = vld [vmem:[%s11 + $0x10] sm:$0xff]
  %v1729 = vld [vmem:[%s11 + $0x18] sm:$0xff]
  %v1730 = vld [vmem:[%s12] sm:$0x1]
  %v1732 = vlaneseq
  %v1733 = vshrl.u32 %v1732, 7
  %v1734 = vsub.s32 0, %v1733
  %v1735 = vrot.slane %v1730, %v1734
  %v1738 = vsel %vm69, %v1724, 0
  %v1741 = vsel %vm69, %v1725, 0
  %1743 = vmatprep.subr.mxu0 0.0
  %1744 = vmatpush1.msra.mxu0 %v1726
  %1745 = vmatprep.subr.mxu0 0.0
  %1746 = vmatpush1.msra.mxu0 %v1727
  %1747 = vmatprep.subr.mxu0 0.0
  %1748 = vmatpush1.msra.mxu0 %v1728
  %1749 = vmatprep.subr.mxu0 0.0
  %1750 = vmatpush1.msra.mxu0 %v1729
  %1751 = vmatprep.subr.mxu0 0.0
  %1752 = vmatpush1.msra.mxu0 0.0
  %1753 = vmatprep.subr.mxu0 0.0
  %1754 = vmatpush1.msra.mxu0 0.0
  %1755 = vmatprep.subr.mxu0 0.0
  %1756 = vmatpush1.msra.mxu0 0.0
  %1757 = vmatprep.subr.mxu0 0.0
  %1758 = vmatpush1.msra.mxu0 0.0
  %1759 = vmatprep.subr.mxu0 0.0
  %1760 = vmatpush1.msra.mxu0 0.0
  %1761 = vmatprep.subr.mxu0 0.0
  %1762 = vmatpush1.msra.mxu0 0.0
  %1763 = vmatprep.subr.mxu0 0.0
  %1764 = vmatpush1.msra.mxu0 0.0
  %1765 = vmatprep.subr.mxu0 0.0
  %1766 = vmatpush1.msra.mxu0 0.0
  %1767 = vmatprep.subr.mxu0 0.0
  %1768 = vmatpush1.msra.mxu0 0.0
  %1769 = vmatprep.subr.mxu0 0.0
  %1770 = vmatpush1.msra.mxu0 0.0
  %1771 = vmatprep.subr.mxu0 0.0
  %1772 = vmatpush1.msra.mxu0 0.0
  %1773 = vmatprep.subr.mxu0 0.0
  %1774 = vmatpush1.msra.mxu0 0.0
  %1775 = vmatprep.subr.mxu0 0.0
  %1776 = vmatpush1.msra.mxu0 0.0
  %1777 = vmatprep.subr.mxu0 0.0
  %1778 = vmatpush1.msra.mxu0 0.0
  %1779 = vmatprep.subr.mxu0 0.0
  %1780 = vmatpush1.msra.mxu0 0.0
  %1781 = vmatprep.subr.mxu0 0.0
  %1782 = vmatpush1.msra.mxu0 0.0
  %1783 = vmatprep.subr.mxu0 0.0
  %1784 = vmatpush1.msra.mxu0 0.0
  %1785 = vmatprep.subr.mxu0 0.0
  %1786 = vmatpush1.msra.mxu0 0.0
  %1787 = vmatprep.subr.mxu0 0.0
  %1788 = vmatpush1.msra.mxu0 0.0
  %1789 = vmatprep.subr.mxu0 0.0
  %1790 = vmatpush1.msra.mxu0 0.0
  %1791 = vmatprep.subr.mxu0 0.0
  %1792 = vmatpush1.msra.mxu0 0.0
  %1793 = vmatprep.subr.mxu0 0.0
  %1794 = vmatpush1.msra.mxu0 0.0
  %1795 = vmatprep.subr.mxu0 0.0
  %1796 = vmatpush1.msra.mxu0 0.0
  %1797 = vmatprep.subr.mxu0 0.0
  %1798 = vmatpush1.msra.mxu0 0.0
  %1799 = vmatprep.subr.mxu0 0.0
  %1800 = vmatpush1.msra.mxu0 0.0
  %1801 = vmatprep.subr.mxu0 0.0
  %1802 = vmatpush1.msra.mxu0 0.0
  %1803 = vmatprep.subr.mxu0 0.0
  %1804 = vmatpush1.msra.mxu0 0.0
  %1805 = vmatprep.subr.mxu0 0.0
  %1806 = vmatpush1.msra.mxu0 0.0
  %1807 = vmatprep.mubr.f32.mxu0 0.0
  %1808 = vmatmul.mubr.f32.gmra.mrb[0].mxu0 %v1738
  %v1809 = vpop.f32.mrb[0].mxu0
  %v1810 = vadd.f32 %v1735, %v1809
  %v1811 = vpop.f32.mrb[0].mxu0
  %1812 = vmatprep.mubr.f32.mxu0 0.0
  %1813 = vmatmul.mubr.f32.gmra.mrb[0].mxu0 %v1741
  %v1814 = vpop.f32.mrb[0].mxu0
  %v1815 = vadd.f32 %v1735, %v1814
  %v1816 = vpop.f32.mrb[0].mxu0
  %1817 = vdwg.mxu0
  %v1818 = vmul.f32 %v1810, %v1810
  %v1819 = vmul.f32 %v1815, %v1815
  %v1820 = vmul.f32 %v1810, %v1818
  %v1821 = vmul.f32 %v1815, %v1819
  %v1822 = vmul.f32 %v1820, 0.044715
  %v1823 = vmul.f32 %v1821, 0.044715
  %v1824 = vadd.f32 %v1810, %v1822
  %v1825 = vadd.f32 %v1815, %v1823
  %v1826 = vmul.f32 %v1824, 0.7978846
  %v1827 = vmul.f32 %v1825, 0.7978846
  %v1828 = vtanh.pop %v1826
  %v1829 = vtanh.pop %v1827
  %v1830 = vadd.f32 %v1828, 1.0
  %v1831 = vadd.f32 %v1829, 1.0
  %v1832 = vmul.f32 %v1830, 0.5
  %v1833 = vmul.f32 %v1831, 0.5
  %v1834 = vmul.f32 %v1810, %v1832
  %v1835 = vmul.f32 %v1815, %v1833
  %v1836 = vld [vmem:[%s13] sm:$0xff]
  %v1837 = vld [vmem:[%s13 + $0x8] sm:$0xff]
  %v1838 = vld [vmem:[%s13 + $0x10] sm:$0xff]
  %v1839 = vld [vmem:[%s13 + $0x18] sm:$0xff]
  %v1840 = vld [vmem:[%s13 + $0x20] sm:$0xff]
  %v1841 = vld [vmem:[%s13 + $0x28] sm:$0xff]
  %v1842 = vld [vmem:[%s13 + $0x30] sm:$0xff]
  %v1843 = vld [vmem:[%s13 + $0x38] sm:$0xff]
  %v1844 = vld [vmem:[%s13 + $0x40] sm:$0xff]
  %v1845 = vld [vmem:[%s13 + $0x48] sm:$0xff]
  %v1846 = vld [vmem:[%s13 + $0x50] sm:$0xff]
  %v1847 = vld [vmem:[%s13 + $0x58] sm:$0xff]
  %v1848 = vld [vmem:[%s13 + $0x60] sm:$0xff]
  %v1849 = vld [vmem:[%s13 + $0x68] sm:$0xff]
  %v1850 = vld [vmem:[%s13 + $0x70] sm:$0xff]
  %v1851 = vld [vmem:[%s13 + $0x78] sm:$0xff]
  %v1852 = vld [vmem:[%s14] sm:$0x1]
  %v1854 = vlaneseq
  %v1855 = vshrl.u32 %v1854, 7
  %v1856 = vsub.s32 0, %v1855
  %v1857 = vrot.slane %v1852, %v1856
  %1859 = vmatprep.subr.mxu0 0.0
  %1860 = vmatpush1.msra.mxu0 %v1836
  %1861 = vmatprep.subr.mxu0 0.0
  %1862 = vmatpush1.msra.mxu0 %v1837
  %1863 = vmatprep.subr.mxu0 0.0
  %1864 = vmatpush1.msra.mxu0 %v1838
  %1865 = vmatprep.subr.mxu0 0.0
  %1866 = vmatpush1.msra.mxu0 %v1839
  %1867 = vmatprep.subr.mxu0 0.0
  %1868 = vmatpush1.msra.mxu0 %v1840
  %1869 = vmatprep.subr.mxu0 0.0
  %1870 = vmatpush1.msra.mxu0 %v1841
  %1871 = vmatprep.subr.mxu0 0.0
  %1872 = vmatpush1.msra.mxu0 %v1842
  %1873 = vmatprep.subr.mxu0 0.0
  %1874 = vmatpush1.msra.mxu0 %v1843
  %1875 = vmatprep.subr.mxu0 0.0
  %1876 = vmatpush1.msra.mxu0 %v1844
  %1877 = vmatprep.subr.mxu0 0.0
  %1878 = vmatpush1.msra.mxu0 %v1845
  %1879 = vmatprep.subr.mxu0 0.0
  %1880 = vmatpush1.msra.mxu0 %v1846
  %1881 = vmatprep.subr.mxu0 0.0
  %1882 = vmatpush1.msra.mxu0 %v1847
  %1883 = vmatprep.subr.mxu0 0.0
  %1884 = vmatpush1.msra.mxu0 %v1848
  %1885 = vmatprep.subr.mxu0 0.0
  %1886 = vmatpush1.msra.mxu0 %v1849
  %1887 = vmatprep.subr.mxu0 0.0
  %1888 = vmatpush1.msra.mxu0 %v1850
  %1889 = vmatprep.subr.mxu0 0.0
  %1890 = vmatpush1.msra.mxu0 %v1851
  %1891 = vmatprep.subr.mxu0 0.0
  %1892 = vmatpush1.msra.mxu0 0.0
  %1893 = vmatprep.subr.mxu0 0.0
  %1894 = vmatpush1.msra.mxu0 0.0
  %1895 = vmatprep.subr.mxu0 0.0
  %1896 = vmatpush1.msra.mxu0 0.0
  %1897 = vmatprep.subr.mxu0 0.0
  %1898 = vmatpush1.msra.mxu0 0.0
  %1899 = vmatprep.subr.mxu0 0.0
  %1900 = vmatpush1.msra.mxu0 0.0
  %1901 = vmatprep.subr.mxu0 0.0
  %1902 = vmatpush1.msra.mxu0 0.0
  %1903 = vmatprep.subr.mxu0 0.0
  %1904 = vmatpush1.msra.mxu0 0.0
  %1905 = vmatprep.subr.mxu0 0.0
  %1906 = vmatpush1.msra.mxu0 0.0
  %1907 = vmatprep.subr.mxu0 0.0
  %1908 = vmatpush1.msra.mxu0 0.0
  %1909 = vmatprep.subr.mxu0 0.0
  %1910 = vmatpush1.msra.mxu0 0.0
  %1911 = vmatprep.subr.mxu0 0.0
  %1912 = vmatpush1.msra.mxu0 0.0
  %1913 = vmatprep.subr.mxu0 0.0
  %1914 = vmatpush1.msra.mxu0 0.0
  %1915 = vmatprep.subr.mxu0 0.0
  %1916 = vmatpush1.msra.mxu0 0.0
  %1917 = vmatprep.subr.mxu0 0.0
  %1918 = vmatpush1.msra.mxu0 0.0
  %1919 = vmatprep.subr.mxu0 0.0
  %1920 = vmatpush1.msra.mxu0 0.0
  %1921 = vmatprep.subr.mxu0 0.0
  %1922 = vmatpush1.msra.mxu0 0.0
  %1923 = vmatprep.mubr.f32.mxu0 0.0
  %1924 = vmatmul.mubr.f32.gmra.mrb[0].mxu0 %v1834
  %v1925 = vpop.f32.mrb[0].mxu0
  %v1926 = vadd.f32 %v1857, %v1925
  %v1927 = vpop.f32.mrb[0].mxu0
  %1928 = vmatprep.mubr.f32.mxu0 0.0
  %1929 = vmatmul.mubr.f32.gmra.mrb[0].mxu0 %v1835
  %v1930 = vpop.f32.mrb[0].mxu0
  %v1931 = vadd.f32 %v1857, %v1930
  %v1932 = vpop.f32.mrb[0].mxu0
  %1933 = vdwg.mxu0
  %v1934 = vadd.f32 %v1926, %v1724
  %v1935 = vadd.f32 %v1931, %v1725
  %v1936 = vld [vmem:[%s15] sm:$0x1]
  %v1937 = vld [vmem:[%s16] sm:$0x1]
  %v1938 = vsel %vm69, %v1934, 0.0
  %1939 = vadd.xlane.f32.xlu0 %v1938
  %v1940 = vpop.xlane.xlu0 %1939
  %v1941 = vsel %vm69, %v1935, 0.0
  %1942 = vadd.xlane.f32.xlu0 %v1941
  %v1943 = vpop.xlane.xlu0 %1942
  %v1944 = vmul.f32 %v1940, %v76
  %v1945 = vmul.f32 %v1943, %v76
  %v1946 = vsub.f32 %v1934, %v1944
  %v1947 = vsub.f32 %v1935, %v1945
  %v1948 = vmul.f32 %v1946, %v1946
  %v1949 = vmul.f32 %v1947, %v1947
  %v1950 = vsel %vm69, %v1948, 0.0
  %1951 = vadd.xlane.f32.xlu0 %v1950
  %v1952 = vpop.xlane.xlu0 %1951
  %v1953 = vsel %vm69, %v1949, 0.0
  %1954 = vadd.xlane.f32.xlu0 %v1953
  %v1955 = vpop.xlane.xlu0 %1954
  %v1956 = vmul.f32 %v1952, %v76
  %v1957 = vmul.f32 %v1955, %v76
  %v1958 = vadd.f32 %v1956, 1e-06
  %v1959 = vadd.f32 %v1957, 1e-06
  %v1960 = vrsqrt.pop %v1958
  %v1961 = vrsqrt.pop %v1959
  %v1962 = vmul.f32 %v1946, %v1960
  %v1963 = vmul.f32 %v1947, %v1961
  %v1965 = vlaneseq
  %v1966 = vshrl.u32 %v1965, 7
  %v1967 = vsub.s32 0, %v1966
  %v1968 = vrot.slane %v1936, %v1967
  %v1970 = vmul.f32 %v1962, %v1968
  %v1971 = vmul.f32 %v1963, %v1968
  %v1973 = vlaneseq
  %v1974 = vshrl.u32 %v1973, 7
  %v1975 = vsub.s32 0, %v1974
  %v1976 = vrot.slane %v1937, %v1975
  %v1978 = vadd.f32 %v1970, %v1976
  %v1979 = vadd.f32 %v1971, %v1976
  %s1980 = scalar_lea.vmem %s5, 32
  %v1981 = vld [vmem:[%s1980] sm:$0xff]
  %v1982 = vld [vmem:[%s1980 + $0x8] sm:$0xff]
  %v1983 = vld [vmem:[%s1980 + $0x10] sm:$0xff]
  %v1984 = vld [vmem:[%s1980 + $0x18] sm:$0xff]
  %s1985 = scalar_lea.vmem %s6, 1
  %v1986 = vld [vmem:[%s1985] sm:$0x1]
  %v1988 = vlaneseq
  %v1989 = vshrl.u32 %v1988, 7
  %v1990 = vsub.s32 0, %v1989
  %v1991 = vrot.slane %v1986, %v1990
  %v1994 = vsel %vm69, %v1978, 0
  %v1997 = vsel %vm69, %v1979, 0
  %1999 = vmatprep.subr.mxu0 0.0
  %2000 = vmatpush1.msra.mxu0 %v1981
  %2001 = vmatprep.subr.mxu0 0.0
  %2002 = vmatpush1.msra.mxu0 %v1982
  %2003 = vmatprep.subr.mxu0 0.0
  %2004 = vmatpush1.msra.mxu0 %v1983
  %2005 = vmatprep.subr.mxu0 0.0
  %2006 = vmatpush1.msra.mxu0 %v1984
  %2007 = vmatprep.subr.mxu0 0.0
  %2008 = vmatpush1.msra.mxu0 0.0
  %2009 = vmatprep.subr.mxu0 0.0
  %2010 = vmatpush1.msra.mxu0 0.0
  %2011 = vmatprep.subr.mxu0 0.0
  %2012 = vmatpush1.msra.mxu0 0.0
  %2013 = vmatprep.subr.mxu0 0.0
  %2014 = vmatpush1.msra.mxu0 0.0
  %2015 = vmatprep.subr.mxu0 0.0
  %2016 = vmatpush1.msra.mxu0 0.0
  %2017 = vmatprep.subr.mxu0 0.0
  %2018 = vmatpush1.msra.mxu0 0.0
  %2019 = vmatprep.subr.mxu0 0.0
  %2020 = vmatpush1.msra.mxu0 0.0
  %2021 = vmatprep.subr.mxu0 0.0
  %2022 = vmatpush1.msra.mxu0 0.0
  %2023 = vmatprep.subr.mxu0 0.0
  %2024 = vmatpush1.msra.mxu0 0.0
  %2025 = vmatprep.subr.mxu0 0.0
  %2026 = vmatpush1.msra.mxu0 0.0
  %2027 = vmatprep.subr.mxu0 0.0
  %2028 = vmatpush1.msra.mxu0 0.0
  %2029 = vmatprep.subr.mxu0 0.0
  %2030 = vmatpush1.msra.mxu0 0.0
  %2031 = vmatprep.subr.mxu0 0.0
  %2032 = vmatpush1.msra.mxu0 0.0
  %2033 = vmatprep.subr.mxu0 0.0
  %2034 = vmatpush1.msra.mxu0 0.0
  %2035 = vmatprep.subr.mxu0 0.0
  %2036 = vmatpush1.msra.mxu0 0.0
  %2037 = vmatprep.subr.mxu0 0.0
  %2038 = vmatpush1.msra.mxu0 0.0
  %2039 = vmatprep.subr.mxu0 0.0
  %2040 = vmatpush1.msra.mxu0 0.0
  %2041 = vmatprep.subr.mxu0 0.0
  %2042 = vmatpush1.msra.mxu0 0.0
  %2043 = vmatprep.subr.mxu0 0.0
  %2044 = vmatpush1.msra.mxu0 0.0
  %2045 = vmatprep.subr.mxu0 0.0
  %2046 = vmatpush1.msra.mxu0 0.0
  %2047 = vmatprep.subr.mxu0 0.0
  %2048 = vmatpush1.msra.mxu0 0.0
  %2049 = vmatprep.subr.mxu0 0.0
  %2050 = vmatpush1.msra.mxu0 0.0
  %2051 = vmatprep.subr.mxu0 0.0
  %2052 = vmatpush1.msra.mxu0 0.0
  %2053 = vmatprep.subr.mxu0 0.0
  %2054 = vmatpush1.msra.mxu0 0.0
  %2055 = vmatprep.subr.mxu0 0.0
  %2056 = vmatpush1.msra.mxu0 0.0
  %2057 = vmatprep.subr.mxu0 0.0
  %2058 = vmatpush1.msra.mxu0 0.0
  %2059 = vmatprep.subr.mxu0 0.0
  %2060 = vmatpush1.msra.mxu0 0.0
  %2061 = vmatprep.subr.mxu0 0.0
  %2062 = vmatpush1.msra.mxu0 0.0
  %2063 = vmatprep.mubr.f32.mxu0 0.0
  %2064 = vmatmul.mubr.f32.gmra.mrb[0].mxu0 %v1994
  %v2065 = vpop.f32.mrb[0].mxu0
  %v2066 = vadd.f32 %v1991, %v2065
  %v2067 = vpop.f32.mrb[0].mxu0
  %2068 = vmatprep.mubr.f32.mxu0 0.0
  %2069 = vmatmul.mubr.f32.gmra.mrb[0].mxu0 %v1997
  %v2070 = vpop.f32.mrb[0].mxu0
  %v2071 = vadd.f32 %v1991, %v2070
  %v2072 = vpop.f32.mrb[0].mxu0
  %2073 = vdwg.mxu0
  %2075 = vrot.lane.b32.xlu0 %v2066, 96
  %v2076 = vpop.permute.xlu0 %2075
  %v2077 = vsel %vm212, %v2066, 0
  %v2079 = vsel %vm212, %v2076, 0
  %2081 = vmatprep.subr.mxu0 0.0
  %2082 = vmatpush1.xpose.msra.mxu0 %v2079
  %2083 = vmatprep.subr.mxu0 0.0
  %2084 = vmatpush1.xpose.msra.mxu0 0.0
  %2085 = vmatprep.subr.mxu0 0.0
  %2086 = vmatpush1.xpose.msra.mxu0 0.0
  %2087 = vmatprep.subr.mxu0 0.0
  %2088 = vmatpush1.xpose.msra.mxu0 0.0
  %2089 = vmatprep.subr.mxu0 0.0
  %2090 = vmatpush1.xpose.msra.mxu0 0.0
  %2091 = vmatprep.subr.mxu0 0.0
  %2092 = vmatpush1.xpose.msra.mxu0 0.0
  %2093 = vmatprep.subr.mxu0 0.0
  %2094 = vmatpush1.xpose.msra.mxu0 0.0
  %2095 = vmatprep.subr.mxu0 0.0
  %2096 = vmatpush1.xpose.msra.mxu0 0.0
  %2097 = vmatprep.subr.mxu0 0.0
  %2098 = vmatpush1.xpose.msra.mxu0 0.0
  %2099 = vmatprep.subr.mxu0 0.0
  %2100 = vmatpush1.xpose.msra.mxu0 0.0
  %2101 = vmatprep.subr.mxu0 0.0
  %2102 = vmatpush1.xpose.msra.mxu0 0.0
  %2103 = vmatprep.subr.mxu0 0.0
  %2104 = vmatpush1.xpose.msra.mxu0 0.0
  %2105 = vmatprep.subr.mxu0 0.0
  %2106 = vmatpush1.xpose.msra.mxu0 0.0
  %2107 = vmatprep.subr.mxu0 0.0
  %2108 = vmatpush1.xpose.msra.mxu0 0.0
  %2109 = vmatprep.subr.mxu0 0.0
  %2110 = vmatpush1.xpose.msra.mxu0 0.0
  %2111 = vmatprep.subr.mxu0 0.0
  %2112 = vmatpush1.xpose.msra.mxu0 0.0
  %2113 = vmatprep.subr.mxu0 0.0
  %2114 = vmatpush1.xpose.msra.mxu0 0.0
  %2115 = vmatprep.subr.mxu0 0.0
  %2116 = vmatpush1.xpose.msra.mxu0 0.0
  %2117 = vmatprep.subr.mxu0 0.0
  %2118 = vmatpush1.xpose.msra.mxu0 0.0
  %2119 = vmatprep.subr.mxu0 0.0
  %2120 = vmatpush1.xpose.msra.mxu0 0.0
  %2121 = vmatprep.subr.mxu0 0.0
  %2122 = vmatpush1.xpose.msra.mxu0 0.0
  %2123 = vmatprep.subr.mxu0 0.0
  %2124 = vmatpush1.xpose.msra.mxu0 0.0
  %2125 = vmatprep.subr.mxu0 0.0
  %2126 = vmatpush1.xpose.msra.mxu0 0.0
  %2127 = vmatprep.subr.mxu0 0.0
  %2128 = vmatpush1.xpose.msra.mxu0 0.0
  %2129 = vmatprep.subr.mxu0 0.0
  %2130 = vmatpush1.xpose.msra.mxu0 0.0
  %2131 = vmatprep.subr.mxu0 0.0
  %2132 = vmatpush1.xpose.msra.mxu0 0.0
  %2133 = vmatprep.subr.mxu0 0.0
  %2134 = vmatpush1.xpose.msra.mxu0 0.0
  %2135 = vmatprep.subr.mxu0 0.0
  %2136 = vmatpush1.xpose.msra.mxu0 0.0
  %2137 = vmatprep.subr.mxu0 0.0
  %2138 = vmatpush1.xpose.msra.mxu0 0.0
  %2139 = vmatprep.subr.mxu0 0.0
  %2140 = vmatpush1.xpose.msra.mxu0 0.0
  %2141 = vmatprep.subr.mxu0 0.0
  %2142 = vmatpush1.xpose.msra.mxu0 0.0
  %2143 = vmatprep.subr.mxu0 0.0
  %2144 = vmatpush1.xpose.msra.mxu0 0.0
  %2145 = vmatprep.mubr.f32.mxu0 0.0
  %2146 = vmatmul.mubr.f32.gmra.mrb[0].mxu0 %v2077
  %v2147 = vpop.f32.mrb[0].mxu0
  %v2148 = vadd.f32 0.0, %v2147
  %v2149 = vpop.f32.mrb[0].mxu0
  %2150 = vdwg.mxu0
  %2152 = vrot.lane.b32.xlu0 %v2071, 96
  %v2153 = vpop.permute.xlu0 %2152
  %v2154 = vsel %vm212, %v2071, 0
  %v2156 = vsel %vm212, %v2153, 0
  %2158 = vmatprep.subr.mxu0 0.0
  %2159 = vmatpush1.xpose.msra.mxu0 %v2156
  %2160 = vmatprep.subr.mxu0 0.0
  %2161 = vmatpush1.xpose.msra.mxu0 0.0
  %2162 = vmatprep.subr.mxu0 0.0
  %2163 = vmatpush1.xpose.msra.mxu0 0.0
  %2164 = vmatprep.subr.mxu0 0.0
  %2165 = vmatpush1.xpose.msra.mxu0 0.0
  %2166 = vmatprep.subr.mxu0 0.0
  %2167 = vmatpush1.xpose.msra.mxu0 0.0
  %2168 = vmatprep.subr.mxu0 0.0
  %2169 = vmatpush1.xpose.msra.mxu0 0.0
  %2170 = vmatprep.subr.mxu0 0.0
  %2171 = vmatpush1.xpose.msra.mxu0 0.0
  %2172 = vmatprep.subr.mxu0 0.0
  %2173 = vmatpush1.xpose.msra.mxu0 0.0
  %2174 = vmatprep.subr.mxu0 0.0
  %2175 = vmatpush1.xpose.msra.mxu0 0.0
  %2176 = vmatprep.subr.mxu0 0.0
  %2177 = vmatpush1.xpose.msra.mxu0 0.0
  %2178 = vmatprep.subr.mxu0 0.0
  %2179 = vmatpush1.xpose.msra.mxu0 0.0
  %2180 = vmatprep.subr.mxu0 0.0
  %2181 = vmatpush1.xpose.msra.mxu0 0.0
  %2182 = vmatprep.subr.mxu0 0.0
  %2183 = vmatpush1.xpose.msra.mxu0 0.0
  %2184 = vmatprep.subr.mxu0 0.0
  %2185 = vmatpush1.xpose.msra.mxu0 0.0
  %2186 = vmatprep.subr.mxu0 0.0
  %2187 = vmatpush1.xpose.msra.mxu0 0.0
  %2188 = vmatprep.subr.mxu0 0.0
  %2189 = vmatpush1.xpose.msra.mxu0 0.0
  %2190 = vmatprep.subr.mxu0 0.0
  %2191 = vmatpush1.xpose.msra.mxu0 0.0
  %2192 = vmatprep.subr.mxu0 0.0
  %2193 = vmatpush1.xpose.msra.mxu0 0.0
  %2194 = vmatprep.subr.mxu0 0.0
  %2195 = vmatpush1.xpose.msra.mxu0 0.0
  %2196 = vmatprep.subr.mxu0 0.0
  %2197 = vmatpush1.xpose.msra.mxu0 0.0
  %2198 = vmatprep.subr.mxu0 0.0
  %2199 = vmatpush1.xpose.msra.mxu0 0.0
  %2200 = vmatprep.subr.mxu0 0.0
  %2201 = vmatpush1.xpose.msra.mxu0 0.0
  %2202 = vmatprep.subr.mxu0 0.0
  %2203 = vmatpush1.xpose.msra.mxu0 0.0
  %2204 = vmatprep.subr.mxu0 0.0
  %2205 = vmatpush1.xpose.msra.mxu0 0.0
  %2206 = vmatprep.subr.mxu0 0.0
  %2207 = vmatpush1.xpose.msra.mxu0 0.0
  %2208 = vmatprep.subr.mxu0 0.0
  %2209 = vmatpush1.xpose.msra.mxu0 0.0
  %2210 = vmatprep.subr.mxu0 0.0
  %2211 = vmatpush1.xpose.msra.mxu0 0.0
  %2212 = vmatprep.subr.mxu0 0.0
  %2213 = vmatpush1.xpose.msra.mxu0 0.0
  %2214 = vmatprep.subr.mxu0 0.0
  %2215 = vmatpush1.xpose.msra.mxu0 0.0
  %2216 = vmatprep.subr.mxu0 0.0
  %2217 = vmatpush1.xpose.msra.mxu0 0.0
  %2218 = vmatprep.subr.mxu0 0.0
  %2219 = vmatpush1.xpose.msra.mxu0 0.0
  %2220 = vmatprep.subr.mxu0 0.0
  %2221 = vmatpush1.xpose.msra.mxu0 0.0
  %2222 = vmatprep.mubr.f32.mxu0 0.0
  %2223 = vmatmul.mubr.f32.gmra.mrb[0].mxu0 %v2154
  %v2224 = vpop.f32.mrb[0].mxu0
  %v2225 = vadd.f32 0.0, %v2224
  %v2226 = vpop.f32.mrb[0].mxu0
  %2227 = vdwg.mxu0
  %v2228 = vmul.f32 %v2148, 0.17677669
  %v2229 = vmul.f32 %v2225, 0.17677669
  %v2230 = vsel %vm376, %v2228, -1e+09
  %v2231 = vsel %vm377, %v2229, -1e+09
  %v2232 = vsel %vm212, %v2230, -inf
  %2233 = vmax.xlane.f32.xlu0 %v2232
  %v2234 = vpop.xlane.xlu0 %2233
  %v2235 = vsel %vm212, %v2231, -inf
  %2236 = vmax.xlane.f32.xlu0 %v2235
  %v2237 = vpop.xlane.xlu0 %2236
  %v2238 = vsub.f32 %v2230, %v2234
  %v2239 = vsub.f32 %v2231, %v2237
  %v2240 = vmul.f32 %v2238, 1.442695
  %v2241 = vpow.pop %v2240
  %v2242 = vmul.f32 %v2239, 1.442695
  %v2243 = vpow.pop %v2242
  %v2244 = vsel %vm212, %v2241, 0.0
  %2245 = vadd.xlane.f32.xlu0 %v2244
  %v2246 = vpop.xlane.xlu0 %2245
  %v2247 = vsel %vm212, %v2243, 0.0
  %2248 = vadd.xlane.f32.xlu0 %v2247
  %v2249 = vpop.xlane.xlu0 %2248
  %v2250 = vrcp.pop %v2246
  %v2251 = vrcp.pop %v2249
  %v2252 = vmul.f32 %v2241, %v2250
  %v2253 = vmul.f32 %v2243, %v2251
  %2254 = vrot.lane.b32.xlu0 %v2066, 64
  %v2255 = vpop.permute.xlu0 %2254
  %v2258 = vsel %vm212, %v2252, 0
  %2260 = vmatprep.subr.mxu0 0.0
  %2261 = vmatpush1.msra.mxu0 %v2255
  %2262 = vmatprep.subr.mxu0 0.0
  %2263 = vmatpush1.msra.mxu0 0.0
  %2264 = vmatprep.subr.mxu0 0.0
  %2265 = vmatpush1.msra.mxu0 0.0
  %2266 = vmatprep.subr.mxu0 0.0
  %2267 = vmatpush1.msra.mxu0 0.0
  %2268 = vmatprep.subr.mxu0 0.0
  %2269 = vmatpush1.msra.mxu0 0.0
  %2270 = vmatprep.subr.mxu0 0.0
  %2271 = vmatpush1.msra.mxu0 0.0
  %2272 = vmatprep.subr.mxu0 0.0
  %2273 = vmatpush1.msra.mxu0 0.0
  %2274 = vmatprep.subr.mxu0 0.0
  %2275 = vmatpush1.msra.mxu0 0.0
  %2276 = vmatprep.subr.mxu0 0.0
  %2277 = vmatpush1.msra.mxu0 0.0
  %2278 = vmatprep.subr.mxu0 0.0
  %2279 = vmatpush1.msra.mxu0 0.0
  %2280 = vmatprep.subr.mxu0 0.0
  %2281 = vmatpush1.msra.mxu0 0.0
  %2282 = vmatprep.subr.mxu0 0.0
  %2283 = vmatpush1.msra.mxu0 0.0
  %2284 = vmatprep.subr.mxu0 0.0
  %2285 = vmatpush1.msra.mxu0 0.0
  %2286 = vmatprep.subr.mxu0 0.0
  %2287 = vmatpush1.msra.mxu0 0.0
  %2288 = vmatprep.subr.mxu0 0.0
  %2289 = vmatpush1.msra.mxu0 0.0
  %2290 = vmatprep.subr.mxu0 0.0
  %2291 = vmatpush1.msra.mxu0 0.0
  %2292 = vmatprep.subr.mxu0 0.0
  %2293 = vmatpush1.msra.mxu0 0.0
  %2294 = vmatprep.subr.mxu0 0.0
  %2295 = vmatpush1.msra.mxu0 0.0
  %2296 = vmatprep.subr.mxu0 0.0
  %2297 = vmatpush1.msra.mxu0 0.0
  %2298 = vmatprep.subr.mxu0 0.0
  %2299 = vmatpush1.msra.mxu0 0.0
  %2300 = vmatprep.subr.mxu0 0.0
  %2301 = vmatpush1.msra.mxu0 0.0
  %2302 = vmatprep.subr.mxu0 0.0
  %2303 = vmatpush1.msra.mxu0 0.0
  %2304 = vmatprep.subr.mxu0 0.0
  %2305 = vmatpush1.msra.mxu0 0.0
  %2306 = vmatprep.subr.mxu0 0.0
  %2307 = vmatpush1.msra.mxu0 0.0
  %2308 = vmatprep.subr.mxu0 0.0
  %2309 = vmatpush1.msra.mxu0 0.0
  %2310 = vmatprep.subr.mxu0 0.0
  %2311 = vmatpush1.msra.mxu0 0.0
  %2312 = vmatprep.subr.mxu0 0.0
  %2313 = vmatpush1.msra.mxu0 0.0
  %2314 = vmatprep.subr.mxu0 0.0
  %2315 = vmatpush1.msra.mxu0 0.0
  %2316 = vmatprep.subr.mxu0 0.0
  %2317 = vmatpush1.msra.mxu0 0.0
  %2318 = vmatprep.subr.mxu0 0.0
  %2319 = vmatpush1.msra.mxu0 0.0
  %2320 = vmatprep.subr.mxu0 0.0
  %2321 = vmatpush1.msra.mxu0 0.0
  %2322 = vmatprep.subr.mxu0 0.0
  %2323 = vmatpush1.msra.mxu0 0.0
  %2324 = vmatprep.mubr.f32.mxu0 0.0
  %2325 = vmatmul.mubr.f32.gmra.mrb[0].mxu0 %v2258
  %v2326 = vpop.f32.mrb[0].mxu0
  %v2327 = vadd.f32 0.0, %v2326
  %v2328 = vpop.f32.mrb[0].mxu0
  %2329 = vdwg.mxu0
  %2330 = vrot.lane.b32.xlu0 %v2071, 64
  %v2331 = vpop.permute.xlu0 %2330
  %v2334 = vsel %vm212, %v2253, 0
  %2336 = vmatprep.subr.mxu0 0.0
  %2337 = vmatpush1.msra.mxu0 %v2331
  %2338 = vmatprep.subr.mxu0 0.0
  %2339 = vmatpush1.msra.mxu0 0.0
  %2340 = vmatprep.subr.mxu0 0.0
  %2341 = vmatpush1.msra.mxu0 0.0
  %2342 = vmatprep.subr.mxu0 0.0
  %2343 = vmatpush1.msra.mxu0 0.0
  %2344 = vmatprep.subr.mxu0 0.0
  %2345 = vmatpush1.msra.mxu0 0.0
  %2346 = vmatprep.subr.mxu0 0.0
  %2347 = vmatpush1.msra.mxu0 0.0
  %2348 = vmatprep.subr.mxu0 0.0
  %2349 = vmatpush1.msra.mxu0 0.0
  %2350 = vmatprep.subr.mxu0 0.0
  %2351 = vmatpush1.msra.mxu0 0.0
  %2352 = vmatprep.subr.mxu0 0.0
  %2353 = vmatpush1.msra.mxu0 0.0
  %2354 = vmatprep.subr.mxu0 0.0
  %2355 = vmatpush1.msra.mxu0 0.0
  %2356 = vmatprep.subr.mxu0 0.0
  %2357 = vmatpush1.msra.mxu0 0.0
  %2358 = vmatprep.subr.mxu0 0.0
  %2359 = vmatpush1.msra.mxu0 0.0
  %2360 = vmatprep.subr.mxu0 0.0
  %2361 = vmatpush1.msra.mxu0 0.0
  %2362 = vmatprep.subr.mxu0 0.0
  %2363 = vmatpush1.msra.mxu0 0.0
  %2364 = vmatprep.subr.mxu0 0.0
  %2365 = vmatpush1.msra.mxu0 0.0
  %2366 = vmatprep.subr.mxu0 0.0
  %2367 = vmatpush1.msra.mxu0 0.0
  %2368 = vmatprep.subr.mxu0 0.0
  %2369 = vmatpush1.msra.mxu0 0.0
  %2370 = vmatprep.subr.mxu0 0.0
  %2371 = vmatpush1.msra.mxu0 0.0
  %2372 = vmatprep.subr.mxu0 0.0
  %2373 = vmatpush1.msra.mxu0 0.0
  %2374 = vmatprep.subr.mxu0 0.0
  %2375 = vmatpush1.msra.mxu0 0.0
  %2376 = vmatprep.subr.mxu0 0.0
  %2377 = vmatpush1.msra.mxu0 0.0
  %2378 = vmatprep.subr.mxu0 0.0
  %2379 = vmatpush1.msra.mxu0 0.0
  %2380 = vmatprep.subr.mxu0 0.0
  %2381 = vmatpush1.msra.mxu0 0.0
  %2382 = vmatprep.subr.mxu0 0.0
  %2383 = vmatpush1.msra.mxu0 0.0
  %2384 = vmatprep.subr.mxu0 0.0
  %2385 = vmatpush1.msra.mxu0 0.0
  %2386 = vmatprep.subr.mxu0 0.0
  %2387 = vmatpush1.msra.mxu0 0.0
  %2388 = vmatprep.subr.mxu0 0.0
  %2389 = vmatpush1.msra.mxu0 0.0
  %2390 = vmatprep.subr.mxu0 0.0
  %2391 = vmatpush1.msra.mxu0 0.0
  %2392 = vmatprep.subr.mxu0 0.0
  %2393 = vmatpush1.msra.mxu0 0.0
  %2394 = vmatprep.subr.mxu0 0.0
  %2395 = vmatpush1.msra.mxu0 0.0
  %2396 = vmatprep.subr.mxu0 0.0
  %2397 = vmatpush1.msra.mxu0 0.0
  %2398 = vmatprep.subr.mxu0 0.0
  %2399 = vmatpush1.msra.mxu0 0.0
  %2400 = vmatprep.mubr.f32.mxu0 0.0
  %2401 = vmatmul.mubr.f32.gmra.mrb[0].mxu0 %v2334
  %v2402 = vpop.f32.mrb[0].mxu0
  %v2403 = vadd.f32 0.0, %v2402
  %v2404 = vpop.f32.mrb[0].mxu0
  %2405 = vdwg.mxu0
  %2406 = vrot.lane.b32.xlu0 %v2066, 120
  %v2407 = vpop.permute.xlu0 %2406
  %2408 = vrot.lane.b32.xlu0 %v2066, 88
  %v2409 = vpop.permute.xlu0 %2408
  %v2410 = vsel %vm212, %v2407, 0
  %v2412 = vsel %vm212, %v2409, 0
  %2414 = vmatprep.subr.mxu0 0.0
  %2415 = vmatpush1.xpose.msra.mxu0 %v2412
  %2416 = vmatprep.subr.mxu0 0.0
  %2417 = vmatpush1.xpose.msra.mxu0 0.0
  %2418 = vmatprep.subr.mxu0 0.0
  %2419 = vmatpush1.xpose.msra.mxu0 0.0
  %2420 = vmatprep.subr.mxu0 0.0
  %2421 = vmatpush1.xpose.msra.mxu0 0.0
  %2422 = vmatprep.subr.mxu0 0.0
  %2423 = vmatpush1.xpose.msra.mxu0 0.0
  %2424 = vmatprep.subr.mxu0 0.0
  %2425 = vmatpush1.xpose.msra.mxu0 0.0
  %2426 = vmatprep.subr.mxu0 0.0
  %2427 = vmatpush1.xpose.msra.mxu0 0.0
  %2428 = vmatprep.subr.mxu0 0.0
  %2429 = vmatpush1.xpose.msra.mxu0 0.0
  %2430 = vmatprep.subr.mxu0 0.0
  %2431 = vmatpush1.xpose.msra.mxu0 0.0
  %2432 = vmatprep.subr.mxu0 0.0
  %2433 = vmatpush1.xpose.msra.mxu0 0.0
  %2434 = vmatprep.subr.mxu0 0.0
  %2435 = vmatpush1.xpose.msra.mxu0 0.0
  %2436 = vmatprep.subr.mxu0 0.0
  %2437 = vmatpush1.xpose.msra.mxu0 0.0
  %2438 = vmatprep.subr.mxu0 0.0
  %2439 = vmatpush1.xpose.msra.mxu0 0.0
  %2440 = vmatprep.subr.mxu0 0.0
  %2441 = vmatpush1.xpose.msra.mxu0 0.0
  %2442 = vmatprep.subr.mxu0 0.0
  %2443 = vmatpush1.xpose.msra.mxu0 0.0
  %2444 = vmatprep.subr.mxu0 0.0
  %2445 = vmatpush1.xpose.msra.mxu0 0.0
  %2446 = vmatprep.subr.mxu0 0.0
  %2447 = vmatpush1.xpose.msra.mxu0 0.0
  %2448 = vmatprep.subr.mxu0 0.0
  %2449 = vmatpush1.xpose.msra.mxu0 0.0
  %2450 = vmatprep.subr.mxu0 0.0
  %2451 = vmatpush1.xpose.msra.mxu0 0.0
  %2452 = vmatprep.subr.mxu0 0.0
  %2453 = vmatpush1.xpose.msra.mxu0 0.0
  %2454 = vmatprep.subr.mxu0 0.0
  %2455 = vmatpush1.xpose.msra.mxu0 0.0
  %2456 = vmatprep.subr.mxu0 0.0
  %2457 = vmatpush1.xpose.msra.mxu0 0.0
  %2458 = vmatprep.subr.mxu0 0.0
  %2459 = vmatpush1.xpose.msra.mxu0 0.0
  %2460 = vmatprep.subr.mxu0 0.0
  %2461 = vmatpush1.xpose.msra.mxu0 0.0
  %2462 = vmatprep.subr.mxu0 0.0
  %2463 = vmatpush1.xpose.msra.mxu0 0.0
  %2464 = vmatprep.subr.mxu0 0.0
  %2465 = vmatpush1.xpose.msra.mxu0 0.0
  %2466 = vmatprep.subr.mxu0 0.0
  %2467 = vmatpush1.xpose.msra.mxu0 0.0
  %2468 = vmatprep.subr.mxu0 0.0
  %2469 = vmatpush1.xpose.msra.mxu0 0.0
  %2470 = vmatprep.subr.mxu0 0.0
  %2471 = vmatpush1.xpose.msra.mxu0 0.0
  %2472 = vmatprep.subr.mxu0 0.0
  %2473 = vmatpush1.xpose.msra.mxu0 0.0
  %2474 = vmatprep.subr.mxu0 0.0
  %2475 = vmatpush1.xpose.msra.mxu0 0.0
  %2476 = vmatprep.subr.mxu0 0.0
  %2477 = vmatpush1.xpose.msra.mxu0 0.0
  %2478 = vmatprep.mubr.f32.mxu0 0.0
  %2479 = vmatmul.mubr.f32.gmra.mrb[0].mxu0 %v2410
  %v2480 = vpop.f32.mrb[0].mxu0
  %v2481 = vadd.f32 0.0, %v2480
  %v2482 = vpop.f32.mrb[0].mxu0
  %2483 = vdwg.mxu0
  %2484 = vrot.lane.b32.xlu0 %v2071, 120
  %v2485 = vpop.permute.xlu0 %2484
  %2486 = vrot.lane.b32.xlu0 %v2071, 88
  %v2487 = vpop.permute.xlu0 %2486
  %v2488 = vsel %vm212, %v2485, 0
  %v2490 = vsel %vm212, %v2487, 0
  %2492 = vmatprep.subr.mxu0 0.0
  %2493 = vmatpush1.xpose.msra.mxu0 %v2490
  %2494 = vmatprep.subr.mxu0 0.0
  %2495 = vmatpush1.xpose.msra.mxu0 0.0
  %2496 = vmatprep.subr.mxu0 0.0
  %2497 = vmatpush1.xpose.msra.mxu0 0.0
  %2498 = vmatprep.subr.mxu0 0.0
  %2499 = vmatpush1.xpose.msra.mxu0 0.0
  %2500 = vmatprep.subr.mxu0 0.0
  %2501 = vmatpush1.xpose.msra.mxu0 0.0
  %2502 = vmatprep.subr.mxu0 0.0
  %2503 = vmatpush1.xpose.msra.mxu0 0.0
  %2504 = vmatprep.subr.mxu0 0.0
  %2505 = vmatpush1.xpose.msra.mxu0 0.0
  %2506 = vmatprep.subr.mxu0 0.0
  %2507 = vmatpush1.xpose.msra.mxu0 0.0
  %2508 = vmatprep.subr.mxu0 0.0
  %2509 = vmatpush1.xpose.msra.mxu0 0.0
  %2510 = vmatprep.subr.mxu0 0.0
  %2511 = vmatpush1.xpose.msra.mxu0 0.0
  %2512 = vmatprep.subr.mxu0 0.0
  %2513 = vmatpush1.xpose.msra.mxu0 0.0
  %2514 = vmatprep.subr.mxu0 0.0
  %2515 = vmatpush1.xpose.msra.mxu0 0.0
  %2516 = vmatprep.subr.mxu0 0.0
  %2517 = vmatpush1.xpose.msra.mxu0 0.0
  %2518 = vmatprep.subr.mxu0 0.0
  %2519 = vmatpush1.xpose.msra.mxu0 0.0
  %2520 = vmatprep.subr.mxu0 0.0
  %2521 = vmatpush1.xpose.msra.mxu0 0.0
  %2522 = vmatprep.subr.mxu0 0.0
  %2523 = vmatpush1.xpose.msra.mxu0 0.0
  %2524 = vmatprep.subr.mxu0 0.0
  %2525 = vmatpush1.xpose.msra.mxu0 0.0
  %2526 = vmatprep.subr.mxu0 0.0
  %2527 = vmatpush1.xpose.msra.mxu0 0.0
  %2528 = vmatprep.subr.mxu0 0.0
  %2529 = vmatpush1.xpose.msra.mxu0 0.0
  %2530 = vmatprep.subr.mxu0 0.0
  %2531 = vmatpush1.xpose.msra.mxu0 0.0
  %2532 = vmatprep.subr.mxu0 0.0
  %2533 = vmatpush1.xpose.msra.mxu0 0.0
  %2534 = vmatprep.subr.mxu0 0.0
  %2535 = vmatpush1.xpose.msra.mxu0 0.0
  %2536 = vmatprep.subr.mxu0 0.0
  %2537 = vmatpush1.xpose.msra.mxu0 0.0
  %2538 = vmatprep.subr.mxu0 0.0
  %2539 = vmatpush1.xpose.msra.mxu0 0.0
  %2540 = vmatprep.subr.mxu0 0.0
  %2541 = vmatpush1.xpose.msra.mxu0 0.0
  %2542 = vmatprep.subr.mxu0 0.0
  %2543 = vmatpush1.xpose.msra.mxu0 0.0
  %2544 = vmatprep.subr.mxu0 0.0
  %2545 = vmatpush1.xpose.msra.mxu0 0.0
  %2546 = vmatprep.subr.mxu0 0.0
  %2547 = vmatpush1.xpose.msra.mxu0 0.0
  %2548 = vmatprep.subr.mxu0 0.0
  %2549 = vmatpush1.xpose.msra.mxu0 0.0
  %2550 = vmatprep.subr.mxu0 0.0
  %2551 = vmatpush1.xpose.msra.mxu0 0.0
  %2552 = vmatprep.subr.mxu0 0.0
  %2553 = vmatpush1.xpose.msra.mxu0 0.0
  %2554 = vmatprep.subr.mxu0 0.0
  %2555 = vmatpush1.xpose.msra.mxu0 0.0
  %2556 = vmatprep.mubr.f32.mxu0 0.0
  %2557 = vmatmul.mubr.f32.gmra.mrb[0].mxu0 %v2488
  %v2558 = vpop.f32.mrb[0].mxu0
  %v2559 = vadd.f32 0.0, %v2558
  %v2560 = vpop.f32.mrb[0].mxu0
  %2561 = vdwg.mxu0
  %v2562 = vmul.f32 %v2481, 0.17677669
  %v2563 = vmul.f32 %v2559, 0.17677669
  %v2564 = vsel %vm376, %v2562, -1e+09
  %v2565 = vsel %vm377, %v2563, -1e+09
  %v2566 = vsel %vm212, %v2564, -inf
  %2567 = vmax.xlane.f32.xlu0 %v2566
  %v2568 = vpop.xlane.xlu0 %2567
  %v2569 = vsel %vm212, %v2565, -inf
  %2570 = vmax.xlane.f32.xlu0 %v2569
  %v2571 = vpop.xlane.xlu0 %2570
  %v2572 = vsub.f32 %v2564, %v2568
  %v2573 = vsub.f32 %v2565, %v2571
  %v2574 = vmul.f32 %v2572, 1.442695
  %v2575 = vpow.pop %v2574
  %v2576 = vmul.f32 %v2573, 1.442695
  %v2577 = vpow.pop %v2576
  %v2578 = vsel %vm212, %v2575, 0.0
  %2579 = vadd.xlane.f32.xlu0 %v2578
  %v2580 = vpop.xlane.xlu0 %2579
  %v2581 = vsel %vm212, %v2577, 0.0
  %2582 = vadd.xlane.f32.xlu0 %v2581
  %v2583 = vpop.xlane.xlu0 %2582
  %v2584 = vrcp.pop %v2580
  %v2585 = vrcp.pop %v2583
  %v2586 = vmul.f32 %v2575, %v2584
  %v2587 = vmul.f32 %v2577, %v2585
  %2588 = vrot.lane.b32.xlu0 %v2066, 56
  %v2589 = vpop.permute.xlu0 %2588
  %v2592 = vsel %vm212, %v2586, 0
  %2594 = vmatprep.subr.mxu0 0.0
  %2595 = vmatpush1.msra.mxu0 %v2589
  %2596 = vmatprep.subr.mxu0 0.0
  %2597 = vmatpush1.msra.mxu0 0.0
  %2598 = vmatprep.subr.mxu0 0.0
  %2599 = vmatpush1.msra.mxu0 0.0
  %2600 = vmatprep.subr.mxu0 0.0
  %2601 = vmatpush1.msra.mxu0 0.0
  %2602 = vmatprep.subr.mxu0 0.0
  %2603 = vmatpush1.msra.mxu0 0.0
  %2604 = vmatprep.subr.mxu0 0.0
  %2605 = vmatpush1.msra.mxu0 0.0
  %2606 = vmatprep.subr.mxu0 0.0
  %2607 = vmatpush1.msra.mxu0 0.0
  %2608 = vmatprep.subr.mxu0 0.0
  %2609 = vmatpush1.msra.mxu0 0.0
  %2610 = vmatprep.subr.mxu0 0.0
  %2611 = vmatpush1.msra.mxu0 0.0
  %2612 = vmatprep.subr.mxu0 0.0
  %2613 = vmatpush1.msra.mxu0 0.0
  %2614 = vmatprep.subr.mxu0 0.0
  %2615 = vmatpush1.msra.mxu0 0.0
  %2616 = vmatprep.subr.mxu0 0.0
  %2617 = vmatpush1.msra.mxu0 0.0
  %2618 = vmatprep.subr.mxu0 0.0
  %2619 = vmatpush1.msra.mxu0 0.0
  %2620 = vmatprep.subr.mxu0 0.0
  %2621 = vmatpush1.msra.mxu0 0.0
  %2622 = vmatprep.subr.mxu0 0.0
  %2623 = vmatpush1.msra.mxu0 0.0
  %2624 = vmatprep.subr.mxu0 0.0
  %2625 = vmatpush1.msra.mxu0 0.0
  %2626 = vmatprep.subr.mxu0 0.0
  %2627 = vmatpush1.msra.mxu0 0.0
  %2628 = vmatprep.subr.mxu0 0.0
  %2629 = vmatpush1.msra.mxu0 0.0
  %2630 = vmatprep.subr.mxu0 0.0
  %2631 = vmatpush1.msra.mxu0 0.0
  %2632 = vmatprep.subr.mxu0 0.0
  %2633 = vmatpush1.msra.mxu0 0.0
  %2634 = vmatprep.subr.mxu0 0.0
  %2635 = vmatpush1.msra.mxu0 0.0
  %2636 = vmatprep.subr.mxu0 0.0
  %2637 = vmatpush1.msra.mxu0 0.0
  %2638 = vmatprep.subr.mxu0 0.0
  %2639 = vmatpush1.msra.mxu0 0.0
  %2640 = vmatprep.subr.mxu0 0.0
  %2641 = vmatpush1.msra.mxu0 0.0
  %2642 = vmatprep.subr.mxu0 0.0
  %2643 = vmatpush1.msra.mxu0 0.0
  %2644 = vmatprep.subr.mxu0 0.0
  %2645 = vmatpush1.msra.mxu0 0.0
  %2646 = vmatprep.subr.mxu0 0.0
  %2647 = vmatpush1.msra.mxu0 0.0
  %2648 = vmatprep.subr.mxu0 0.0
  %2649 = vmatpush1.msra.mxu0 0.0
  %2650 = vmatprep.subr.mxu0 0.0
  %2651 = vmatpush1.msra.mxu0 0.0
  %2652 = vmatprep.subr.mxu0 0.0
  %2653 = vmatpush1.msra.mxu0 0.0
  %2654 = vmatprep.subr.mxu0 0.0
  %2655 = vmatpush1.msra.mxu0 0.0
  %2656 = vmatprep.subr.mxu0 0.0
  %2657 = vmatpush1.msra.mxu0 0.0
  %2658 = vmatprep.mubr.f32.mxu0 0.0
  %2659 = vmatmul.mubr.f32.gmra.mrb[0].mxu0 %v2592
  %v2660 = vpop.f32.mrb[0].mxu0
  %v2661 = vadd.f32 0.0, %v2660
  %v2662 = vpop.f32.mrb[0].mxu0
  %2663 = vdwg.mxu0
  %2664 = vrot.lane.b32.xlu0 %v2071, 56
  %v2665 = vpop.permute.xlu0 %2664
  %v2668 = vsel %vm212, %v2587, 0
  %2670 = vmatprep.subr.mxu0 0.0
  %2671 = vmatpush1.msra.mxu0 %v2665
  %2672 = vmatprep.subr.mxu0 0.0
  %2673 = vmatpush1.msra.mxu0 0.0
  %2674 = vmatprep.subr.mxu0 0.0
  %2675 = vmatpush1.msra.mxu0 0.0
  %2676 = vmatprep.subr.mxu0 0.0
  %2677 = vmatpush1.msra.mxu0 0.0
  %2678 = vmatprep.subr.mxu0 0.0
  %2679 = vmatpush1.msra.mxu0 0.0
  %2680 = vmatprep.subr.mxu0 0.0
  %2681 = vmatpush1.msra.mxu0 0.0
  %2682 = vmatprep.subr.mxu0 0.0
  %2683 = vmatpush1.msra.mxu0 0.0
  %2684 = vmatprep.subr.mxu0 0.0
  %2685 = vmatpush1.msra.mxu0 0.0
  %2686 = vmatprep.subr.mxu0 0.0
  %2687 = vmatpush1.msra.mxu0 0.0
  %2688 = vmatprep.subr.mxu0 0.0
  %2689 = vmatpush1.msra.mxu0 0.0
  %2690 = vmatprep.subr.mxu0 0.0
  %2691 = vmatpush1.msra.mxu0 0.0
  %2692 = vmatprep.subr.mxu0 0.0
  %2693 = vmatpush1.msra.mxu0 0.0
  %2694 = vmatprep.subr.mxu0 0.0
  %2695 = vmatpush1.msra.mxu0 0.0
  %2696 = vmatprep.subr.mxu0 0.0
  %2697 = vmatpush1.msra.mxu0 0.0
  %2698 = vmatprep.subr.mxu0 0.0
  %2699 = vmatpush1.msra.mxu0 0.0
  %2700 = vmatprep.subr.mxu0 0.0
  %2701 = vmatpush1.msra.mxu0 0.0
  %2702 = vmatprep.subr.mxu0 0.0
  %2703 = vmatpush1.msra.mxu0 0.0
  %2704 = vmatprep.subr.mxu0 0.0
  %2705 = vmatpush1.msra.mxu0 0.0
  %2706 = vmatprep.subr.mxu0 0.0
  %2707 = vmatpush1.msra.mxu0 0.0
  %2708 = vmatprep.subr.mxu0 0.0
  %2709 = vmatpush1.msra.mxu0 0.0
  %2710 = vmatprep.subr.mxu0 0.0
  %2711 = vmatpush1.msra.mxu0 0.0
  %2712 = vmatprep.subr.mxu0 0.0
  %2713 = vmatpush1.msra.mxu0 0.0
  %2714 = vmatprep.subr.mxu0 0.0
  %2715 = vmatpush1.msra.mxu0 0.0
  %2716 = vmatprep.subr.mxu0 0.0
  %2717 = vmatpush1.msra.mxu0 0.0
  %2718 = vmatprep.subr.mxu0 0.0
  %2719 = vmatpush1.msra.mxu0 0.0
  %2720 = vmatprep.subr.mxu0 0.0
  %2721 = vmatpush1.msra.mxu0 0.0
  %2722 = vmatprep.subr.mxu0 0.0
  %2723 = vmatpush1.msra.mxu0 0.0
  %2724 = vmatprep.subr.mxu0 0.0
  %2725 = vmatpush1.msra.mxu0 0.0
  %2726 = vmatprep.subr.mxu0 0.0
  %2727 = vmatpush1.msra.mxu0 0.0
  %2728 = vmatprep.subr.mxu0 0.0
  %2729 = vmatpush1.msra.mxu0 0.0
  %2730 = vmatprep.subr.mxu0 0.0
  %2731 = vmatpush1.msra.mxu0 0.0
  %2732 = vmatprep.subr.mxu0 0.0
  %2733 = vmatpush1.msra.mxu0 0.0
  %2734 = vmatprep.mubr.f32.mxu0 0.0
  %2735 = vmatmul.mubr.f32.gmra.mrb[0].mxu0 %v2668
  %v2736 = vpop.f32.mrb[0].mxu0
  %v2737 = vadd.f32 0.0, %v2736
  %v2738 = vpop.f32.mrb[0].mxu0
  %2739 = vdwg.mxu0
  %2740 = vrot.lane.b32.xlu0 %v2066, 112
  %v2741 = vpop.permute.xlu0 %2740
  %2742 = vrot.lane.b32.xlu0 %v2066, 80
  %v2743 = vpop.permute.xlu0 %2742
  %v2744 = vsel %vm212, %v2741, 0
  %v2746 = vsel %vm212, %v2743, 0
  %2748 = vmatprep.subr.mxu0 0.0
  %2749 = vmatpush1.xpose.msra.mxu0 %v2746
  %2750 = vmatprep.subr.mxu0 0.0
  %2751 = vmatpush1.xpose.msra.mxu0 0.0
  %2752 = vmatprep.subr.mxu0 0.0
  %2753 = vmatpush1.xpose.msra.mxu0 0.0
  %2754 = vmatprep.subr.mxu0 0.0
  %2755 = vmatpush1.xpose.msra.mxu0 0.0
  %2756 = vmatprep.subr.mxu0 0.0
  %2757 = vmatpush1.xpose.msra.mxu0 0.0
  %2758 = vmatprep.subr.mxu0 0.0
  %2759 = vmatpush1.xpose.msra.mxu0 0.0
  %2760 = vmatprep.subr.mxu0 0.0
  %2761 = vmatpush1.xpose.msra.mxu0 0.0
  %2762 = vmatprep.subr.mxu0 0.0
  %2763 = vmatpush1.xpose.msra.mxu0 0.0
  %2764 = vmatprep.subr.mxu0 0.0
  %2765 = vmatpush1.xpose.msra.mxu0 0.0
  %2766 = vmatprep.subr.mxu0 0.0
  %2767 = vmatpush1.xpose.msra.mxu0 0.0
  %2768 = vmatprep.subr.mxu0 0.0
  %2769 = vmatpush1.xpose.msra.mxu0 0.0
  %2770 = vmatprep.subr.mxu0 0.0
  %2771 = vmatpush1.xpose.msra.mxu0 0.0
  %2772 = vmatprep.subr.mxu0 0.0
  %2773 = vmatpush1.xpose.msra.mxu0 0.0
  %2774 = vmatprep.subr.mxu0 0.0
  %2775 = vmatpush1.xpose.msra.mxu0 0.0
  %2776 = vmatprep.subr.mxu0 0.0
  %2777 = vmatpush1.xpose.msra.mxu0 0.0
  %2778 = vmatprep.subr.mxu0 0.0
  %2779 = vmatpush1.xpose.msra.mxu0 0.0
  %2780 = vmatprep.subr.mxu0 0.0
  %2781 = vmatpush1.xpose.msra.mxu0 0.0
  %2782 = vmatprep.subr.mxu0 0.0
  %2783 = vmatpush1.xpose.msra.mxu0 0.0
  %2784 = vmatprep.subr.mxu0 0.0
  %2785 = vmatpush1.xpose.msra.mxu0 0.0
  %2786 = vmatprep.subr.mxu0 0.0
  %2787 = vmatpush1.xpose.msra.mxu0 0.0
  %2788 = vmatprep.subr.mxu0 0.0
  %2789 = vmatpush1.xpose.msra.mxu0 0.0
  %2790 = vmatprep.subr.mxu0 0.0
  %2791 = vmatpush1.xpose.msra.mxu0 0.0
  %2792 = vmatprep.subr.mxu0 0.0
  %2793 = vmatpush1.xpose.msra.mxu0 0.0
  %2794 = vmatprep.subr.mxu0 0.0
  %2795 = vmatpush1.xpose.msra.mxu0 0.0
  %2796 = vmatprep.subr.mxu0 0.0
  %2797 = vmatpush1.xpose.msra.mxu0 0.0
  %2798 = vmatprep.subr.mxu0 0.0
  %2799 = vmatpush1.xpose.msra.mxu0 0.0
  %2800 = vmatprep.subr.mxu0 0.0
  %2801 = vmatpush1.xpose.msra.mxu0 0.0
  %2802 = vmatprep.subr.mxu0 0.0
  %2803 = vmatpush1.xpose.msra.mxu0 0.0
  %2804 = vmatprep.subr.mxu0 0.0
  %2805 = vmatpush1.xpose.msra.mxu0 0.0
  %2806 = vmatprep.subr.mxu0 0.0
  %2807 = vmatpush1.xpose.msra.mxu0 0.0
  %2808 = vmatprep.subr.mxu0 0.0
  %2809 = vmatpush1.xpose.msra.mxu0 0.0
  %2810 = vmatprep.subr.mxu0 0.0
  %2811 = vmatpush1.xpose.msra.mxu0 0.0
  %2812 = vmatprep.mubr.f32.mxu0 0.0
  %2813 = vmatmul.mubr.f32.gmra.mrb[0].mxu0 %v2744
  %v2814 = vpop.f32.mrb[0].mxu0
  %v2815 = vadd.f32 0.0, %v2814
  %v2816 = vpop.f32.mrb[0].mxu0
  %2817 = vdwg.mxu0
  %2818 = vrot.lane.b32.xlu0 %v2071, 112
  %v2819 = vpop.permute.xlu0 %2818
  %2820 = vrot.lane.b32.xlu0 %v2071, 80
  %v2821 = vpop.permute.xlu0 %2820
  %v2822 = vsel %vm212, %v2819, 0
  %v2824 = vsel %vm212, %v2821, 0
  %2826 = vmatprep.subr.mxu0 0.0
  %2827 = vmatpush1.xpose.msra.mxu0 %v2824
  %2828 = vmatprep.subr.mxu0 0.0
  %2829 = vmatpush1.xpose.msra.mxu0 0.0
  %2830 = vmatprep.subr.mxu0 0.0
  %2831 = vmatpush1.xpose.msra.mxu0 0.0
  %2832 = vmatprep.subr.mxu0 0.0
  %2833 = vmatpush1.xpose.msra.mxu0 0.0
  %2834 = vmatprep.subr.mxu0 0.0
  %2835 = vmatpush1.xpose.msra.mxu0 0.0
  %2836 = vmatprep.subr.mxu0 0.0
  %2837 = vmatpush1.xpose.msra.mxu0 0.0
  %2838 = vmatprep.subr.mxu0 0.0
  %2839 = vmatpush1.xpose.msra.mxu0 0.0
  %2840 = vmatprep.subr.mxu0 0.0
  %2841 = vmatpush1.xpose.msra.mxu0 0.0
  %2842 = vmatprep.subr.mxu0 0.0
  %2843 = vmatpush1.xpose.msra.mxu0 0.0
  %2844 = vmatprep.subr.mxu0 0.0
  %2845 = vmatpush1.xpose.msra.mxu0 0.0
  %2846 = vmatprep.subr.mxu0 0.0
  %2847 = vmatpush1.xpose.msra.mxu0 0.0
  %2848 = vmatprep.subr.mxu0 0.0
  %2849 = vmatpush1.xpose.msra.mxu0 0.0
  %2850 = vmatprep.subr.mxu0 0.0
  %2851 = vmatpush1.xpose.msra.mxu0 0.0
  %2852 = vmatprep.subr.mxu0 0.0
  %2853 = vmatpush1.xpose.msra.mxu0 0.0
  %2854 = vmatprep.subr.mxu0 0.0
  %2855 = vmatpush1.xpose.msra.mxu0 0.0
  %2856 = vmatprep.subr.mxu0 0.0
  %2857 = vmatpush1.xpose.msra.mxu0 0.0
  %2858 = vmatprep.subr.mxu0 0.0
  %2859 = vmatpush1.xpose.msra.mxu0 0.0
  %2860 = vmatprep.subr.mxu0 0.0
  %2861 = vmatpush1.xpose.msra.mxu0 0.0
  %2862 = vmatprep.subr.mxu0 0.0
  %2863 = vmatpush1.xpose.msra.mxu0 0.0
  %2864 = vmatprep.subr.mxu0 0.0
  %2865 = vmatpush1.xpose.msra.mxu0 0.0
  %2866 = vmatprep.subr.mxu0 0.0
  %2867 = vmatpush1.xpose.msra.mxu0 0.0
  %2868 = vmatprep.subr.mxu0 0.0
  %2869 = vmatpush1.xpose.msra.mxu0 0.0
  %2870 = vmatprep.subr.mxu0 0.0
  %2871 = vmatpush1.xpose.msra.mxu0 0.0
  %2872 = vmatprep.subr.mxu0 0.0
  %2873 = vmatpush1.xpose.msra.mxu0 0.0
  %2874 = vmatprep.subr.mxu0 0.0
  %2875 = vmatpush1.xpose.msra.mxu0 0.0
  %2876 = vmatprep.subr.mxu0 0.0
  %2877 = vmatpush1.xpose.msra.mxu0 0.0
  %2878 = vmatprep.subr.mxu0 0.0
  %2879 = vmatpush1.xpose.msra.mxu0 0.0
  %2880 = vmatprep.subr.mxu0 0.0
  %2881 = vmatpush1.xpose.msra.mxu0 0.0
  %2882 = vmatprep.subr.mxu0 0.0
  %2883 = vmatpush1.xpose.msra.mxu0 0.0
  %2884 = vmatprep.subr.mxu0 0.0
  %2885 = vmatpush1.xpose.msra.mxu0 0.0
  %2886 = vmatprep.subr.mxu0 0.0
  %2887 = vmatpush1.xpose.msra.mxu0 0.0
  %2888 = vmatprep.subr.mxu0 0.0
  %2889 = vmatpush1.xpose.msra.mxu0 0.0
  %2890 = vmatprep.mubr.f32.mxu0 0.0
  %2891 = vmatmul.mubr.f32.gmra.mrb[0].mxu0 %v2822
  %v2892 = vpop.f32.mrb[0].mxu0
  %v2893 = vadd.f32 0.0, %v2892
  %v2894 = vpop.f32.mrb[0].mxu0
  %2895 = vdwg.mxu0
  %v2896 = vmul.f32 %v2815, 0.17677669
  %v2897 = vmul.f32 %v2893, 0.17677669
  %v2898 = vsel %vm376, %v2896, -1e+09
  %v2899 = vsel %vm377, %v2897, -1e+09
  %v2900 = vsel %vm212, %v2898, -inf
  %2901 = vmax.xlane.f32.xlu0 %v2900
  %v2902 = vpop.xlane.xlu0 %2901
  %v2903 = vsel %vm212, %v2899, -inf
  %2904 = vmax.xlane.f32.xlu0 %v2903
  %v2905 = vpop.xlane.xlu0 %2904
  %v2906 = vsub.f32 %v2898, %v2902
  %v2907 = vsub.f32 %v2899, %v2905
  %v2908 = vmul.f32 %v2906, 1.442695
  %v2909 = vpow.pop %v2908
  %v2910 = vmul.f32 %v2907, 1.442695
  %v2911 = vpow.pop %v2910
  %v2912 = vsel %vm212, %v2909, 0.0
  %2913 = vadd.xlane.f32.xlu0 %v2912
  %v2914 = vpop.xlane.xlu0 %2913
  %v2915 = vsel %vm212, %v2911, 0.0
  %2916 = vadd.xlane.f32.xlu0 %v2915
  %v2917 = vpop.xlane.xlu0 %2916
  %v2918 = vrcp.pop %v2914
  %v2919 = vrcp.pop %v2917
  %v2920 = vmul.f32 %v2909, %v2918
  %v2921 = vmul.f32 %v2911, %v2919
  %2922 = vrot.lane.b32.xlu0 %v2066, 48
  %v2923 = vpop.permute.xlu0 %2922
  %v2926 = vsel %vm212, %v2920, 0
  %2928 = vmatprep.subr.mxu0 0.0
  %2929 = vmatpush1.msra.mxu0 %v2923
  %2930 = vmatprep.subr.mxu0 0.0
  %2931 = vmatpush1.msra.mxu0 0.0
  %2932 = vmatprep.subr.mxu0 0.0
  %2933 = vmatpush1.msra.mxu0 0.0
  %2934 = vmatprep.subr.mxu0 0.0
  %2935 = vmatpush1.msra.mxu0 0.0
  %2936 = vmatprep.subr.mxu0 0.0
  %2937 = vmatpush1.msra.mxu0 0.0
  %2938 = vmatprep.subr.mxu0 0.0
  %2939 = vmatpush1.msra.mxu0 0.0
  %2940 = vmatprep.subr.mxu0 0.0
  %2941 = vmatpush1.msra.mxu0 0.0
  %2942 = vmatprep.subr.mxu0 0.0
  %2943 = vmatpush1.msra.mxu0 0.0
  %2944 = vmatprep.subr.mxu0 0.0
  %2945 = vmatpush1.msra.mxu0 0.0
  %2946 = vmatprep.subr.mxu0 0.0
  %2947 = vmatpush1.msra.mxu0 0.0
  %2948 = vmatprep.subr.mxu0 0.0
  %2949 = vmatpush1.msra.mxu0 0.0
  %2950 = vmatprep.subr.mxu0 0.0
  %2951 = vmatpush1.msra.mxu0 0.0
  %2952 = vmatprep.subr.mxu0 0.0
  %2953 = vmatpush1.msra.mxu0 0.0
  %2954 = vmatprep.subr.mxu0 0.0
  %2955 = vmatpush1.msra.mxu0 0.0
  %2956 = vmatprep.subr.mxu0 0.0
  %2957 = vmatpush1.msra.mxu0 0.0
  %2958 = vmatprep.subr.mxu0 0.0
  %2959 = vmatpush1.msra.mxu0 0.0
  %2960 = vmatprep.subr.mxu0 0.0
  %2961 = vmatpush1.msra.mxu0 0.0
  %2962 = vmatprep.subr.mxu0 0.0
  %2963 = vmatpush1.msra.mxu0 0.0
  %2964 = vmatprep.subr.mxu0 0.0
  %2965 = vmatpush1.msra.mxu0 0.0
  %2966 = vmatprep.subr.mxu0 0.0
  %2967 = vmatpush1.msra.mxu0 0.0
  %2968 = vmatprep.subr.mxu0 0.0
  %2969 = vmatpush1.msra.mxu0 0.0
  %2970 = vmatprep.subr.mxu0 0.0
  %2971 = vmatpush1.msra.mxu0 0.0
  %2972 = vmatprep.subr.mxu0 0.0
  %2973 = vmatpush1.msra.mxu0 0.0
  %2974 = vmatprep.subr.mxu0 0.0
  %2975 = vmatpush1.msra.mxu0 0.0
  %2976 = vmatprep.subr.mxu0 0.0
  %2977 = vmatpush1.msra.mxu0 0.0
  %2978 = vmatprep.subr.mxu0 0.0
  %2979 = vmatpush1.msra.mxu0 0.0
  %2980 = vmatprep.subr.mxu0 0.0
  %2981 = vmatpush1.msra.mxu0 0.0
  %2982 = vmatprep.subr.mxu0 0.0
  %2983 = vmatpush1.msra.mxu0 0.0
  %2984 = vmatprep.subr.mxu0 0.0
  %2985 = vmatpush1.msra.mxu0 0.0
  %2986 = vmatprep.subr.mxu0 0.0
  %2987 = vmatpush1.msra.mxu0 0.0
  %2988 = vmatprep.subr.mxu0 0.0
  %2989 = vmatpush1.msra.mxu0 0.0
  %2990 = vmatprep.subr.mxu0 0.0
  %2991 = vmatpush1.msra.mxu0 0.0
  %2992 = vmatprep.mubr.f32.mxu0 0.0
  %2993 = vmatmul.mubr.f32.gmra.mrb[0].mxu0 %v2926
  %v2994 = vpop.f32.mrb[0].mxu0
  %v2995 = vadd.f32 0.0, %v2994
  %v2996 = vpop.f32.mrb[0].mxu0
  %2997 = vdwg.mxu0
  %2998 = vrot.lane.b32.xlu0 %v2071, 48
  %v2999 = vpop.permute.xlu0 %2998
  %v3002 = vsel %vm212, %v2921, 0
  %3004 = vmatprep.subr.mxu0 0.0
  %3005 = vmatpush1.msra.mxu0 %v2999
  %3006 = vmatprep.subr.mxu0 0.0
  %3007 = vmatpush1.msra.mxu0 0.0
  %3008 = vmatprep.subr.mxu0 0.0
  %3009 = vmatpush1.msra.mxu0 0.0
  %3010 = vmatprep.subr.mxu0 0.0
  %3011 = vmatpush1.msra.mxu0 0.0
  %3012 = vmatprep.subr.mxu0 0.0
  %3013 = vmatpush1.msra.mxu0 0.0
  %3014 = vmatprep.subr.mxu0 0.0
  %3015 = vmatpush1.msra.mxu0 0.0
  %3016 = vmatprep.subr.mxu0 0.0
  %3017 = vmatpush1.msra.mxu0 0.0
  %3018 = vmatprep.subr.mxu0 0.0
  %3019 = vmatpush1.msra.mxu0 0.0
  %3020 = vmatprep.subr.mxu0 0.0
  %3021 = vmatpush1.msra.mxu0 0.0
  %3022 = vmatprep.subr.mxu0 0.0
  %3023 = vmatpush1.msra.mxu0 0.0
  %3024 = vmatprep.subr.mxu0 0.0
  %3025 = vmatpush1.msra.mxu0 0.0
  %3026 = vmatprep.subr.mxu0 0.0
  %3027 = vmatpush1.msra.mxu0 0.0
  %3028 = vmatprep.subr.mxu0 0.0
  %3029 = vmatpush1.msra.mxu0 0.0
  %3030 = vmatprep.subr.mxu0 0.0
  %3031 = vmatpush1.msra.mxu0 0.0
  %3032 = vmatprep.subr.mxu0 0.0
  %3033 = vmatpush1.msra.mxu0 0.0
  %3034 = vmatprep.subr.mxu0 0.0
  %3035 = vmatpush1.msra.mxu0 0.0
  %3036 = vmatprep.subr.mxu0 0.0
  %3037 = vmatpush1.msra.mxu0 0.0
  %3038 = vmatprep.subr.mxu0 0.0
  %3039 = vmatpush1.msra.mxu0 0.0
  %3040 = vmatprep.subr.mxu0 0.0
  %3041 = vmatpush1.msra.mxu0 0.0
  %3042 = vmatprep.subr.mxu0 0.0
  %3043 = vmatpush1.msra.mxu0 0.0
  %3044 = vmatprep.subr.mxu0 0.0
  %3045 = vmatpush1.msra.mxu0 0.0
  %3046 = vmatprep.subr.mxu0 0.0
  %3047 = vmatpush1.msra.mxu0 0.0
  %3048 = vmatprep.subr.mxu0 0.0
  %3049 = vmatpush1.msra.mxu0 0.0
  %3050 = vmatprep.subr.mxu0 0.0
  %3051 = vmatpush1.msra.mxu0 0.0
  %3052 = vmatprep.subr.mxu0 0.0
  %3053 = vmatpush1.msra.mxu0 0.0
  %3054 = vmatprep.subr.mxu0 0.0
  %3055 = vmatpush1.msra.mxu0 0.0
  %3056 = vmatprep.subr.mxu0 0.0
  %3057 = vmatpush1.msra.mxu0 0.0
  %3058 = vmatprep.subr.mxu0 0.0
  %3059 = vmatpush1.msra.mxu0 0.0
  %3060 = vmatprep.subr.mxu0 0.0
  %3061 = vmatpush1.msra.mxu0 0.0
  %3062 = vmatprep.subr.mxu0 0.0
  %3063 = vmatpush1.msra.mxu0 0.0
  %3064 = vmatprep.subr.mxu0 0.0
  %3065 = vmatpush1.msra.mxu0 0.0
  %3066 = vmatprep.subr.mxu0 0.0
  %3067 = vmatpush1.msra.mxu0 0.0
  %3068 = vmatprep.mubr.f32.mxu0 0.0
  %3069 = vmatmul.mubr.f32.gmra.mrb[0].mxu0 %v3002
  %v3070 = vpop.f32.mrb[0].mxu0
  %v3071 = vadd.f32 0.0, %v3070
  %v3072 = vpop.f32.mrb[0].mxu0
  %3073 = vdwg.mxu0
  %3074 = vrot.lane.b32.xlu0 %v2066, 104
  %v3075 = vpop.permute.xlu0 %3074
  %3076 = vrot.lane.b32.xlu0 %v2066, 72
  %v3077 = vpop.permute.xlu0 %3076
  %v3078 = vsel %vm212, %v3075, 0
  %v3080 = vsel %vm212, %v3077, 0
  %3082 = vmatprep.subr.mxu0 0.0
  %3083 = vmatpush1.xpose.msra.mxu0 %v3080
  %3084 = vmatprep.subr.mxu0 0.0
  %3085 = vmatpush1.xpose.msra.mxu0 0.0
  %3086 = vmatprep.subr.mxu0 0.0
  %3087 = vmatpush1.xpose.msra.mxu0 0.0
  %3088 = vmatprep.subr.mxu0 0.0
  %3089 = vmatpush1.xpose.msra.mxu0 0.0
  %3090 = vmatprep.subr.mxu0 0.0
  %3091 = vmatpush1.xpose.msra.mxu0 0.0
  %3092 = vmatprep.subr.mxu0 0.0
  %3093 = vmatpush1.xpose.msra.mxu0 0.0
  %3094 = vmatprep.subr.mxu0 0.0
  %3095 = vmatpush1.xpose.msra.mxu0 0.0
  %3096 = vmatprep.subr.mxu0 0.0
  %3097 = vmatpush1.xpose.msra.mxu0 0.0
  %3098 = vmatprep.subr.mxu0 0.0
  %3099 = vmatpush1.xpose.msra.mxu0 0.0
  %3100 = vmatprep.subr.mxu0 0.0
  %3101 = vmatpush1.xpose.msra.mxu0 0.0
  %3102 = vmatprep.subr.mxu0 0.0
  %3103 = vmatpush1.xpose.msra.mxu0 0.0
  %3104 = vmatprep.subr.mxu0 0.0
  %3105 = vmatpush1.xpose.msra.mxu0 0.0
  %3106 = vmatprep.subr.mxu0 0.0
  %3107 = vmatpush1.xpose.msra.mxu0 0.0
  %3108 = vmatprep.subr.mxu0 0.0
  %3109 = vmatpush1.xpose.msra.mxu0 0.0
  %3110 = vmatprep.subr.mxu0 0.0
  %3111 = vmatpush1.xpose.msra.mxu0 0.0
  %3112 = vmatprep.subr.mxu0 0.0
  %3113 = vmatpush1.xpose.msra.mxu0 0.0
  %3114 = vmatprep.subr.mxu0 0.0
  %3115 = vmatpush1.xpose.msra.mxu0 0.0
  %3116 = vmatprep.subr.mxu0 0.0
  %3117 = vmatpush1.xpose.msra.mxu0 0.0
  %3118 = vmatprep.subr.mxu0 0.0
  %3119 = vmatpush1.xpose.msra.mxu0 0.0
  %3120 = vmatprep.subr.mxu0 0.0
  %3121 = vmatpush1.xpose.msra.mxu0 0.0
  %3122 = vmatprep.subr.mxu0 0.0
  %3123 = vmatpush1.xpose.msra.mxu0 0.0
  %3124 = vmatprep.subr.mxu0 0.0
  %3125 = vmatpush1.xpose.msra.mxu0 0.0
  %3126 = vmatprep.subr.mxu0 0.0
  %3127 = vmatpush1.xpose.msra.mxu0 0.0
  %3128 = vmatprep.subr.mxu0 0.0
  %3129 = vmatpush1.xpose.msra.mxu0 0.0
  %3130 = vmatprep.subr.mxu0 0.0
  %3131 = vmatpush1.xpose.msra.mxu0 0.0
  %3132 = vmatprep.subr.mxu0 0.0
  %3133 = vmatpush1.xpose.msra.mxu0 0.0
  %3134 = vmatprep.subr.mxu0 0.0
  %3135 = vmatpush1.xpose.msra.mxu0 0.0
  %3136 = vmatprep.subr.mxu0 0.0
  %3137 = vmatpush1.xpose.msra.mxu0 0.0
  %3138 = vmatprep.subr.mxu0 0.0
  %3139 = vmatpush1.xpose.msra.mxu0 0.0
  %3140 = vmatprep.subr.mxu0 0.0
  %3141 = vmatpush1.xpose.msra.mxu0 0.0
  %3142 = vmatprep.subr.mxu0 0.0
  %3143 = vmatpush1.xpose.msra.mxu0 0.0
  %3144 = vmatprep.subr.mxu0 0.0
  %3145 = vmatpush1.xpose.msra.mxu0 0.0
  %3146 = vmatprep.mubr.f32.mxu0 0.0
  %3147 = vmatmul.mubr.f32.gmra.mrb[0].mxu0 %v3078
  %v3148 = vpop.f32.mrb[0].mxu0
  %v3149 = vadd.f32 0.0, %v3148
  %v3150 = vpop.f32.mrb[0].mxu0
  %3151 = vdwg.mxu0
  %3152 = vrot.lane.b32.xlu0 %v2071, 104
  %v3153 = vpop.permute.xlu0 %3152
  %3154 = vrot.lane.b32.xlu0 %v2071, 72
  %v3155 = vpop.permute.xlu0 %3154
  %v3156 = vsel %vm212, %v3153, 0
  %v3158 = vsel %vm212, %v3155, 0
  %3160 = vmatprep.subr.mxu0 0.0
  %3161 = vmatpush1.xpose.msra.mxu0 %v3158
  %3162 = vmatprep.subr.mxu0 0.0
  %3163 = vmatpush1.xpose.msra.mxu0 0.0
  %3164 = vmatprep.subr.mxu0 0.0
  %3165 = vmatpush1.xpose.msra.mxu0 0.0
  %3166 = vmatprep.subr.mxu0 0.0
  %3167 = vmatpush1.xpose.msra.mxu0 0.0
  %3168 = vmatprep.subr.mxu0 0.0
  %3169 = vmatpush1.xpose.msra.mxu0 0.0
  %3170 = vmatprep.subr.mxu0 0.0
  %3171 = vmatpush1.xpose.msra.mxu0 0.0
  %3172 = vmatprep.subr.mxu0 0.0
  %3173 = vmatpush1.xpose.msra.mxu0 0.0
  %3174 = vmatprep.subr.mxu0 0.0
  %3175 = vmatpush1.xpose.msra.mxu0 0.0
  %3176 = vmatprep.subr.mxu0 0.0
  %3177 = vmatpush1.xpose.msra.mxu0 0.0
  %3178 = vmatprep.subr.mxu0 0.0
  %3179 = vmatpush1.xpose.msra.mxu0 0.0
  %3180 = vmatprep.subr.mxu0 0.0
  %3181 = vmatpush1.xpose.msra.mxu0 0.0
  %3182 = vmatprep.subr.mxu0 0.0
  %3183 = vmatpush1.xpose.msra.mxu0 0.0
  %3184 = vmatprep.subr.mxu0 0.0
  %3185 = vmatpush1.xpose.msra.mxu0 0.0
  %3186 = vmatprep.subr.mxu0 0.0
  %3187 = vmatpush1.xpose.msra.mxu0 0.0
  %3188 = vmatprep.subr.mxu0 0.0
  %3189 = vmatpush1.xpose.msra.mxu0 0.0
  %3190 = vmatprep.subr.mxu0 0.0
  %3191 = vmatpush1.xpose.msra.mxu0 0.0
  %3192 = vmatprep.subr.mxu0 0.0
  %3193 = vmatpush1.xpose.msra.mxu0 0.0
  %3194 = vmatprep.subr.mxu0 0.0
  %3195 = vmatpush1.xpose.msra.mxu0 0.0
  %3196 = vmatprep.subr.mxu0 0.0
  %3197 = vmatpush1.xpose.msra.mxu0 0.0
  %3198 = vmatprep.subr.mxu0 0.0
  %3199 = vmatpush1.xpose.msra.mxu0 0.0
  %3200 = vmatprep.subr.mxu0 0.0
  %3201 = vmatpush1.xpose.msra.mxu0 0.0
  %3202 = vmatprep.subr.mxu0 0.0
  %3203 = vmatpush1.xpose.msra.mxu0 0.0
  %3204 = vmatprep.subr.mxu0 0.0
  %3205 = vmatpush1.xpose.msra.mxu0 0.0
  %3206 = vmatprep.subr.mxu0 0.0
  %3207 = vmatpush1.xpose.msra.mxu0 0.0
  %3208 = vmatprep.subr.mxu0 0.0
  %3209 = vmatpush1.xpose.msra.mxu0 0.0
  %3210 = vmatprep.subr.mxu0 0.0
  %3211 = vmatpush1.xpose.msra.mxu0 0.0
  %3212 = vmatprep.subr.mxu0 0.0
  %3213 = vmatpush1.xpose.msra.mxu0 0.0
  %3214 = vmatprep.subr.mxu0 0.0
  %3215 = vmatpush1.xpose.msra.mxu0 0.0
  %3216 = vmatprep.subr.mxu0 0.0
  %3217 = vmatpush1.xpose.msra.mxu0 0.0
  %3218 = vmatprep.subr.mxu0 0.0
  %3219 = vmatpush1.xpose.msra.mxu0 0.0
  %3220 = vmatprep.subr.mxu0 0.0
  %3221 = vmatpush1.xpose.msra.mxu0 0.0
  %3222 = vmatprep.subr.mxu0 0.0
  %3223 = vmatpush1.xpose.msra.mxu0 0.0
  %3224 = vmatprep.mubr.f32.mxu0 0.0
  %3225 = vmatmul.mubr.f32.gmra.mrb[0].mxu0 %v3156
  %v3226 = vpop.f32.mrb[0].mxu0
  %v3227 = vadd.f32 0.0, %v3226
  %v3228 = vpop.f32.mrb[0].mxu0
  %3229 = vdwg.mxu0
  %v3230 = vmul.f32 %v3149, 0.17677669
  %v3231 = vmul.f32 %v3227, 0.17677669
  %v3232 = vsel %vm376, %v3230, -1e+09
  %v3233 = vsel %vm377, %v3231, -1e+09
  %v3234 = vsel %vm212, %v3232, -inf
  %3235 = vmax.xlane.f32.xlu0 %v3234
  %v3236 = vpop.xlane.xlu0 %3235
  %v3237 = vsel %vm212, %v3233, -inf
  %3238 = vmax.xlane.f32.xlu0 %v3237
  %v3239 = vpop.xlane.xlu0 %3238
  %v3240 = vsub.f32 %v3232, %v3236
  %v3241 = vsub.f32 %v3233, %v3239
  %v3242 = vmul.f32 %v3240, 1.442695
  %v3243 = vpow.pop %v3242
  %v3244 = vmul.f32 %v3241, 1.442695
  %v3245 = vpow.pop %v3244
  %v3246 = vsel %vm212, %v3243, 0.0
  %3247 = vadd.xlane.f32.xlu0 %v3246
  %v3248 = vpop.xlane.xlu0 %3247
  %v3249 = vsel %vm212, %v3245, 0.0
  %3250 = vadd.xlane.f32.xlu0 %v3249
  %v3251 = vpop.xlane.xlu0 %3250
  %v3252 = vrcp.pop %v3248
  %v3253 = vrcp.pop %v3251
  %v3254 = vmul.f32 %v3243, %v3252
  %v3255 = vmul.f32 %v3245, %v3253
  %3256 = vrot.lane.b32.xlu0 %v2066, 40
  %v3257 = vpop.permute.xlu0 %3256
  %v3260 = vsel %vm212, %v3254, 0
  %3262 = vmatprep.subr.mxu0 0.0
  %3263 = vmatpush1.msra.mxu0 %v3257
  %3264 = vmatprep.subr.mxu0 0.0
  %3265 = vmatpush1.msra.mxu0 0.0
  %3266 = vmatprep.subr.mxu0 0.0
  %3267 = vmatpush1.msra.mxu0 0.0
  %3268 = vmatprep.subr.mxu0 0.0
  %3269 = vmatpush1.msra.mxu0 0.0
  %3270 = vmatprep.subr.mxu0 0.0
  %3271 = vmatpush1.msra.mxu0 0.0
  %3272 = vmatprep.subr.mxu0 0.0
  %3273 = vmatpush1.msra.mxu0 0.0
  %3274 = vmatprep.subr.mxu0 0.0
  %3275 = vmatpush1.msra.mxu0 0.0
  %3276 = vmatprep.subr.mxu0 0.0
  %3277 = vmatpush1.msra.mxu0 0.0
  %3278 = vmatprep.subr.mxu0 0.0
  %3279 = vmatpush1.msra.mxu0 0.0
  %3280 = vmatprep.subr.mxu0 0.0
  %3281 = vmatpush1.msra.mxu0 0.0
  %3282 = vmatprep.subr.mxu0 0.0
  %3283 = vmatpush1.msra.mxu0 0.0
  %3284 = vmatprep.subr.mxu0 0.0
  %3285 = vmatpush1.msra.mxu0 0.0
  %3286 = vmatprep.subr.mxu0 0.0
  %3287 = vmatpush1.msra.mxu0 0.0
  %3288 = vmatprep.subr.mxu0 0.0
  %3289 = vmatpush1.msra.mxu0 0.0
  %3290 = vmatprep.subr.mxu0 0.0
  %3291 = vmatpush1.msra.mxu0 0.0
  %3292 = vmatprep.subr.mxu0 0.0
  %3293 = vmatpush1.msra.mxu0 0.0
  %3294 = vmatprep.subr.mxu0 0.0
  %3295 = vmatpush1.msra.mxu0 0.0
  %3296 = vmatprep.subr.mxu0 0.0
  %3297 = vmatpush1.msra.mxu0 0.0
  %3298 = vmatprep.subr.mxu0 0.0
  %3299 = vmatpush1.msra.mxu0 0.0
  %3300 = vmatprep.subr.mxu0 0.0
  %3301 = vmatpush1.msra.mxu0 0.0
  %3302 = vmatprep.subr.mxu0 0.0
  %3303 = vmatpush1.msra.mxu0 0.0
  %3304 = vmatprep.subr.mxu0 0.0
  %3305 = vmatpush1.msra.mxu0 0.0
  %3306 = vmatprep.subr.mxu0 0.0
  %3307 = vmatpush1.msra.mxu0 0.0
  %3308 = vmatprep.subr.mxu0 0.0
  %3309 = vmatpush1.msra.mxu0 0.0
  %3310 = vmatprep.subr.mxu0 0.0
  %3311 = vmatpush1.msra.mxu0 0.0
  %3312 = vmatprep.subr.mxu0 0.0
  %3313 = vmatpush1.msra.mxu0 0.0
  %3314 = vmatprep.subr.mxu0 0.0
  %3315 = vmatpush1.msra.mxu0 0.0
  %3316 = vmatprep.subr.mxu0 0.0
  %3317 = vmatpush1.msra.mxu0 0.0
  %3318 = vmatprep.subr.mxu0 0.0
  %3319 = vmatpush1.msra.mxu0 0.0
  %3320 = vmatprep.subr.mxu0 0.0
  %3321 = vmatpush1.msra.mxu0 0.0
  %3322 = vmatprep.subr.mxu0 0.0
  %3323 = vmatpush1.msra.mxu0 0.0
  %3324 = vmatprep.subr.mxu0 0.0
  %3325 = vmatpush1.msra.mxu0 0.0
  %3326 = vmatprep.mubr.f32.mxu0 0.0
  %3327 = vmatmul.mubr.f32.gmra.mrb[0].mxu0 %v3260
  %v3328 = vpop.f32.mrb[0].mxu0
  %v3329 = vadd.f32 0.0, %v3328
  %v3330 = vpop.f32.mrb[0].mxu0
  %3331 = vdwg.mxu0
  %3332 = vrot.lane.b32.xlu0 %v2071, 40
  %v3333 = vpop.permute.xlu0 %3332
  %v3336 = vsel %vm212, %v3255, 0
  %3338 = vmatprep.subr.mxu0 0.0
  %3339 = vmatpush1.msra.mxu0 %v3333
  %3340 = vmatprep.subr.mxu0 0.0
  %3341 = vmatpush1.msra.mxu0 0.0
  %3342 = vmatprep.subr.mxu0 0.0
  %3343 = vmatpush1.msra.mxu0 0.0
  %3344 = vmatprep.subr.mxu0 0.0
  %3345 = vmatpush1.msra.mxu0 0.0
  %3346 = vmatprep.subr.mxu0 0.0
  %3347 = vmatpush1.msra.mxu0 0.0
  %3348 = vmatprep.subr.mxu0 0.0
  %3349 = vmatpush1.msra.mxu0 0.0
  %3350 = vmatprep.subr.mxu0 0.0
  %3351 = vmatpush1.msra.mxu0 0.0
  %3352 = vmatprep.subr.mxu0 0.0
  %3353 = vmatpush1.msra.mxu0 0.0
  %3354 = vmatprep.subr.mxu0 0.0
  %3355 = vmatpush1.msra.mxu0 0.0
  %3356 = vmatprep.subr.mxu0 0.0
  %3357 = vmatpush1.msra.mxu0 0.0
  %3358 = vmatprep.subr.mxu0 0.0
  %3359 = vmatpush1.msra.mxu0 0.0
  %3360 = vmatprep.subr.mxu0 0.0
  %3361 = vmatpush1.msra.mxu0 0.0
  %3362 = vmatprep.subr.mxu0 0.0
  %3363 = vmatpush1.msra.mxu0 0.0
  %3364 = vmatprep.subr.mxu0 0.0
  %3365 = vmatpush1.msra.mxu0 0.0
  %3366 = vmatprep.subr.mxu0 0.0
  %3367 = vmatpush1.msra.mxu0 0.0
  %3368 = vmatprep.subr.mxu0 0.0
  %3369 = vmatpush1.msra.mxu0 0.0
  %3370 = vmatprep.subr.mxu0 0.0
  %3371 = vmatpush1.msra.mxu0 0.0
  %3372 = vmatprep.subr.mxu0 0.0
  %3373 = vmatpush1.msra.mxu0 0.0
  %3374 = vmatprep.subr.mxu0 0.0
  %3375 = vmatpush1.msra.mxu0 0.0
  %3376 = vmatprep.subr.mxu0 0.0
  %3377 = vmatpush1.msra.mxu0 0.0
  %3378 = vmatprep.subr.mxu0 0.0
  %3379 = vmatpush1.msra.mxu0 0.0
  %3380 = vmatprep.subr.mxu0 0.0
  %3381 = vmatpush1.msra.mxu0 0.0
  %3382 = vmatprep.subr.mxu0 0.0
  %3383 = vmatpush1.msra.mxu0 0.0
  %3384 = vmatprep.subr.mxu0 0.0
  %3385 = vmatpush1.msra.mxu0 0.0
  %3386 = vmatprep.subr.mxu0 0.0
  %3387 = vmatpush1.msra.mxu0 0.0
  %3388 = vmatprep.subr.mxu0 0.0
  %3389 = vmatpush1.msra.mxu0 0.0
  %3390 = vmatprep.subr.mxu0 0.0
  %3391 = vmatpush1.msra.mxu0 0.0
  %3392 = vmatprep.subr.mxu0 0.0
  %3393 = vmatpush1.msra.mxu0 0.0
  %3394 = vmatprep.subr.mxu0 0.0
  %3395 = vmatpush1.msra.mxu0 0.0
  %3396 = vmatprep.subr.mxu0 0.0
  %3397 = vmatpush1.msra.mxu0 0.0
  %3398 = vmatprep.subr.mxu0 0.0
  %3399 = vmatpush1.msra.mxu0 0.0
  %3400 = vmatprep.subr.mxu0 0.0
  %3401 = vmatpush1.msra.mxu0 0.0
  %3402 = vmatprep.mubr.f32.mxu0 0.0
  %3403 = vmatmul.mubr.f32.gmra.mrb[0].mxu0 %v3336
  %v3404 = vpop.f32.mrb[0].mxu0
  %v3405 = vadd.f32 0.0, %v3404
  %v3406 = vpop.f32.mrb[0].mxu0
  %3407 = vdwg.mxu0
  %3410 = vrot.lane.b32.xlu0 %v2661, 8
  %v3411 = vpop.permute.xlu0 %3410
  %3412 = vrot.lane.b32.xlu0 %v2737, 8
  %v3413 = vpop.permute.xlu0 %3412
  %3418 = vrot.lane.b32.xlu0 %v2995, 16
  %v3419 = vpop.permute.xlu0 %3418
  %3420 = vrot.lane.b32.xlu0 %v3071, 16
  %v3421 = vpop.permute.xlu0 %3420
  %3426 = vrot.lane.b32.xlu0 %v3329, 24
  %v3427 = vpop.permute.xlu0 %3426
  %3428 = vrot.lane.b32.xlu0 %v3405, 24
  %v3429 = vpop.permute.xlu0 %3428
  %v3432 = vsel %vm212, %v2327, %v3411
  %v3433 = vsel %vm212, %v2403, %v3413
  %v3434 = vsel %vm1582, %v3432, %v3419
  %v3435 = vsel %vm1582, %v3433, %v3421
  %v3436 = vsel %vm1585, %v3434, %v3427
  %v3437 = vsel %vm1585, %v3435, %v3429
  %s3438 = scalar_lea.vmem %s7, 32
  %v3439 = vld [vmem:[%s3438] sm:$0xff]
  %v3440 = vld [vmem:[%s3438 + $0x8] sm:$0xff]
  %v3441 = vld [vmem:[%s3438 + $0x10] sm:$0xff]
  %v3442 = vld [vmem:[%s3438 + $0x18] sm:$0xff]
  %s3443 = scalar_lea.vmem %s8, 1
  %v3444 = vld [vmem:[%s3443] sm:$0x1]
  %v3446 = vlaneseq
  %v3447 = vshrl.u32 %v3446, 7
  %v3448 = vsub.s32 0, %v3447
  %v3449 = vrot.slane %v3444, %v3448
  %v3452 = vsel %vm69, %v3436, 0
  %v3455 = vsel %vm69, %v3437, 0
  %3457 = vmatprep.subr.mxu0 0.0
  %3458 = vmatpush1.msra.mxu0 %v3439
  %3459 = vmatprep.subr.mxu0 0.0
  %3460 = vmatpush1.msra.mxu0 %v3440
  %3461 = vmatprep.subr.mxu0 0.0
  %3462 = vmatpush1.msra.mxu0 %v3441
  %3463 = vmatprep.subr.mxu0 0.0
  %3464 = vmatpush1.msra.mxu0 %v3442
  %3465 = vmatprep.subr.mxu0 0.0
  %3466 = vmatpush1.msra.mxu0 0.0
  %3467 = vmatprep.subr.mxu0 0.0
  %3468 = vmatpush1.msra.mxu0 0.0
  %3469 = vmatprep.subr.mxu0 0.0
  %3470 = vmatpush1.msra.mxu0 0.0
  %3471 = vmatprep.subr.mxu0 0.0
  %3472 = vmatpush1.msra.mxu0 0.0
  %3473 = vmatprep.subr.mxu0 0.0
  %3474 = vmatpush1.msra.mxu0 0.0
  %3475 = vmatprep.subr.mxu0 0.0
  %3476 = vmatpush1.msra.mxu0 0.0
  %3477 = vmatprep.subr.mxu0 0.0
  %3478 = vmatpush1.msra.mxu0 0.0
  %3479 = vmatprep.subr.mxu0 0.0
  %3480 = vmatpush1.msra.mxu0 0.0
  %3481 = vmatprep.subr.mxu0 0.0
  %3482 = vmatpush1.msra.mxu0 0.0
  %3483 = vmatprep.subr.mxu0 0.0
  %3484 = vmatpush1.msra.mxu0 0.0
  %3485 = vmatprep.subr.mxu0 0.0
  %3486 = vmatpush1.msra.mxu0 0.0
  %3487 = vmatprep.subr.mxu0 0.0
  %3488 = vmatpush1.msra.mxu0 0.0
  %3489 = vmatprep.subr.mxu0 0.0
  %3490 = vmatpush1.msra.mxu0 0.0
  %3491 = vmatprep.subr.mxu0 0.0
  %3492 = vmatpush1.msra.mxu0 0.0
  %3493 = vmatprep.subr.mxu0 0.0
  %3494 = vmatpush1.msra.mxu0 0.0
  %3495 = vmatprep.subr.mxu0 0.0
  %3496 = vmatpush1.msra.mxu0 0.0
  %3497 = vmatprep.subr.mxu0 0.0
  %3498 = vmatpush1.msra.mxu0 0.0
  %3499 = vmatprep.subr.mxu0 0.0
  %3500 = vmatpush1.msra.mxu0 0.0
  %3501 = vmatprep.subr.mxu0 0.0
  %3502 = vmatpush1.msra.mxu0 0.0
  %3503 = vmatprep.subr.mxu0 0.0
  %3504 = vmatpush1.msra.mxu0 0.0
  %3505 = vmatprep.subr.mxu0 0.0
  %3506 = vmatpush1.msra.mxu0 0.0
  %3507 = vmatprep.subr.mxu0 0.0
  %3508 = vmatpush1.msra.mxu0 0.0
  %3509 = vmatprep.subr.mxu0 0.0
  %3510 = vmatpush1.msra.mxu0 0.0
  %3511 = vmatprep.subr.mxu0 0.0
  %3512 = vmatpush1.msra.mxu0 0.0
  %3513 = vmatprep.subr.mxu0 0.0
  %3514 = vmatpush1.msra.mxu0 0.0
  %3515 = vmatprep.subr.mxu0 0.0
  %3516 = vmatpush1.msra.mxu0 0.0
  %3517 = vmatprep.subr.mxu0 0.0
  %3518 = vmatpush1.msra.mxu0 0.0
  %3519 = vmatprep.subr.mxu0 0.0
  %3520 = vmatpush1.msra.mxu0 0.0
  %3521 = vmatprep.mubr.f32.mxu0 0.0
  %3522 = vmatmul.mubr.f32.gmra.mrb[0].mxu0 %v3452
  %v3523 = vpop.f32.mrb[0].mxu0
  %v3524 = vadd.f32 %v3449, %v3523
  %v3525 = vpop.f32.mrb[0].mxu0
  %3526 = vmatprep.mubr.f32.mxu0 0.0
  %3527 = vmatmul.mubr.f32.gmra.mrb[0].mxu0 %v3455
  %v3528 = vpop.f32.mrb[0].mxu0
  %v3529 = vadd.f32 %v3449, %v3528
  %v3530 = vpop.f32.mrb[0].mxu0
  %3531 = vdwg.mxu0
  %v3532 = vadd.f32 %v3524, %v1978
  %v3533 = vadd.f32 %v3529, %v1979
  %s3534 = scalar_lea.vmem %s9, 1
  %v3535 = vld [vmem:[%s3534] sm:$0x1]
  %s3536 = scalar_lea.vmem %s10, 1
  %v3537 = vld [vmem:[%s3536] sm:$0x1]
  %v3538 = vsel %vm69, %v3532, 0.0
  %3539 = vadd.xlane.f32.xlu0 %v3538
  %v3540 = vpop.xlane.xlu0 %3539
  %v3541 = vsel %vm69, %v3533, 0.0
  %3542 = vadd.xlane.f32.xlu0 %v3541
  %v3543 = vpop.xlane.xlu0 %3542
  %v3544 = vmul.f32 %v3540, %v76
  %v3545 = vmul.f32 %v3543, %v76
  %v3546 = vsub.f32 %v3532, %v3544
  %v3547 = vsub.f32 %v3533, %v3545
  %v3548 = vmul.f32 %v3546, %v3546
  %v3549 = vmul.f32 %v3547, %v3547
  %v3550 = vsel %vm69, %v3548, 0.0
  %3551 = vadd.xlane.f32.xlu0 %v3550
  %v3552 = vpop.xlane.xlu0 %3551
  %v3553 = vsel %vm69, %v3549, 0.0
  %3554 = vadd.xlane.f32.xlu0 %v3553
  %v3555 = vpop.xlane.xlu0 %3554
  %v3556 = vmul.f32 %v3552, %v76
  %v3557 = vmul.f32 %v3555, %v76
  %v3558 = vadd.f32 %v3556, 1e-06
  %v3559 = vadd.f32 %v3557, 1e-06
  %v3560 = vrsqrt.pop %v3558
  %v3561 = vrsqrt.pop %v3559
  %v3562 = vmul.f32 %v3546, %v3560
  %v3563 = vmul.f32 %v3547, %v3561
  %v3565 = vlaneseq
  %v3566 = vshrl.u32 %v3565, 7
  %v3567 = vsub.s32 0, %v3566
  %v3568 = vrot.slane %v3535, %v3567
  %v3570 = vmul.f32 %v3562, %v3568
  %v3571 = vmul.f32 %v3563, %v3568
  %v3573 = vlaneseq
  %v3574 = vshrl.u32 %v3573, 7
  %v3575 = vsub.s32 0, %v3574
  %v3576 = vrot.slane %v3537, %v3575
  %v3578 = vadd.f32 %v3570, %v3576
  %v3579 = vadd.f32 %v3571, %v3576
  %s3580 = scalar_lea.vmem %s11, 32
  %v3581 = vld [vmem:[%s3580] sm:$0xff]
  %v3582 = vld [vmem:[%s3580 + $0x8] sm:$0xff]
  %v3583 = vld [vmem:[%s3580 + $0x10] sm:$0xff]
  %v3584 = vld [vmem:[%s3580 + $0x18] sm:$0xff]
  %s3585 = scalar_lea.vmem %s12, 1
  %v3586 = vld [vmem:[%s3585] sm:$0x1]
  %v3588 = vlaneseq
  %v3589 = vshrl.u32 %v3588, 7
  %v3590 = vsub.s32 0, %v3589
  %v3591 = vrot.slane %v3586, %v3590
  %v3594 = vsel %vm69, %v3578, 0
  %v3597 = vsel %vm69, %v3579, 0
  %3599 = vmatprep.subr.mxu0 0.0
  %3600 = vmatpush1.msra.mxu0 %v3581
  %3601 = vmatprep.subr.mxu0 0.0
  %3602 = vmatpush1.msra.mxu0 %v3582
  %3603 = vmatprep.subr.mxu0 0.0
  %3604 = vmatpush1.msra.mxu0 %v3583
  %3605 = vmatprep.subr.mxu0 0.0
  %3606 = vmatpush1.msra.mxu0 %v3584
  %3607 = vmatprep.subr.mxu0 0.0
  %3608 = vmatpush1.msra.mxu0 0.0
  %3609 = vmatprep.subr.mxu0 0.0
  %3610 = vmatpush1.msra.mxu0 0.0
  %3611 = vmatprep.subr.mxu0 0.0
  %3612 = vmatpush1.msra.mxu0 0.0
  %3613 = vmatprep.subr.mxu0 0.0
  %3614 = vmatpush1.msra.mxu0 0.0
  %3615 = vmatprep.subr.mxu0 0.0
  %3616 = vmatpush1.msra.mxu0 0.0
  %3617 = vmatprep.subr.mxu0 0.0
  %3618 = vmatpush1.msra.mxu0 0.0
  %3619 = vmatprep.subr.mxu0 0.0
  %3620 = vmatpush1.msra.mxu0 0.0
  %3621 = vmatprep.subr.mxu0 0.0
  %3622 = vmatpush1.msra.mxu0 0.0
  %3623 = vmatprep.subr.mxu0 0.0
  %3624 = vmatpush1.msra.mxu0 0.0
  %3625 = vmatprep.subr.mxu0 0.0
  %3626 = vmatpush1.msra.mxu0 0.0
  %3627 = vmatprep.subr.mxu0 0.0
  %3628 = vmatpush1.msra.mxu0 0.0
  %3629 = vmatprep.subr.mxu0 0.0
  %3630 = vmatpush1.msra.mxu0 0.0
  %3631 = vmatprep.subr.mxu0 0.0
  %3632 = vmatpush1.msra.mxu0 0.0
  %3633 = vmatprep.subr.mxu0 0.0
  %3634 = vmatpush1.msra.mxu0 0.0
  %3635 = vmatprep.subr.mxu0 0.0
  %3636 = vmatpush1.msra.mxu0 0.0
  %3637 = vmatprep.subr.mxu0 0.0
  %3638 = vmatpush1.msra.mxu0 0.0
  %3639 = vmatprep.subr.mxu0 0.0
  %3640 = vmatpush1.msra.mxu0 0.0
  %3641 = vmatprep.subr.mxu0 0.0
  %3642 = vmatpush1.msra.mxu0 0.0
  %3643 = vmatprep.subr.mxu0 0.0
  %3644 = vmatpush1.msra.mxu0 0.0
  %3645 = vmatprep.subr.mxu0 0.0
  %3646 = vmatpush1.msra.mxu0 0.0
  %3647 = vmatprep.subr.mxu0 0.0
  %3648 = vmatpush1.msra.mxu0 0.0
  %3649 = vmatprep.subr.mxu0 0.0
  %3650 = vmatpush1.msra.mxu0 0.0
  %3651 = vmatprep.subr.mxu0 0.0
  %3652 = vmatpush1.msra.mxu0 0.0
  %3653 = vmatprep.subr.mxu0 0.0
  %3654 = vmatpush1.msra.mxu0 0.0
  %3655 = vmatprep.subr.mxu0 0.0
  %3656 = vmatpush1.msra.mxu0 0.0
  %3657 = vmatprep.subr.mxu0 0.0
  %3658 = vmatpush1.msra.mxu0 0.0
  %3659 = vmatprep.subr.mxu0 0.0
  %3660 = vmatpush1.msra.mxu0 0.0
  %3661 = vmatprep.subr.mxu0 0.0
  %3662 = vmatpush1.msra.mxu0 0.0
  %3663 = vmatprep.mubr.f32.mxu0 0.0
  %3664 = vmatmul.mubr.f32.gmra.mrb[0].mxu0 %v3594
  %v3665 = vpop.f32.mrb[0].mxu0
  %v3666 = vadd.f32 %v3591, %v3665
  %v3667 = vpop.f32.mrb[0].mxu0
  %3668 = vmatprep.mubr.f32.mxu0 0.0
  %3669 = vmatmul.mubr.f32.gmra.mrb[0].mxu0 %v3597
  %v3670 = vpop.f32.mrb[0].mxu0
  %v3671 = vadd.f32 %v3591, %v3670
  %v3672 = vpop.f32.mrb[0].mxu0
  %3673 = vdwg.mxu0
  %v3674 = vmul.f32 %v3666, %v3666
  %v3675 = vmul.f32 %v3671, %v3671
  %v3676 = vmul.f32 %v3666, %v3674
  %v3677 = vmul.f32 %v3671, %v3675
  %v3678 = vmul.f32 %v3676, 0.044715
  %v3679 = vmul.f32 %v3677, 0.044715
  %v3680 = vadd.f32 %v3666, %v3678
  %v3681 = vadd.f32 %v3671, %v3679
  %v3682 = vmul.f32 %v3680, 0.7978846
  %v3683 = vmul.f32 %v3681, 0.7978846
  %v3684 = vtanh.pop %v3682
  %v3685 = vtanh.pop %v3683
  %v3686 = vadd.f32 %v3684, 1.0
  %v3687 = vadd.f32 %v3685, 1.0
  %v3688 = vmul.f32 %v3686, 0.5
  %v3689 = vmul.f32 %v3687, 0.5
  %v3690 = vmul.f32 %v3666, %v3688
  %v3691 = vmul.f32 %v3671, %v3689
  %s3692 = scalar_lea.vmem %s13, 128
  %v3693 = vld [vmem:[%s3692] sm:$0xff]
  %v3694 = vld [vmem:[%s3692 + $0x8] sm:$0xff]
  %v3695 = vld [vmem:[%s3692 + $0x10] sm:$0xff]
  %v3696 = vld [vmem:[%s3692 + $0x18] sm:$0xff]
  %v3697 = vld [vmem:[%s3692 + $0x20] sm:$0xff]
  %v3698 = vld [vmem:[%s3692 + $0x28] sm:$0xff]
  %v3699 = vld [vmem:[%s3692 + $0x30] sm:$0xff]
  %v3700 = vld [vmem:[%s3692 + $0x38] sm:$0xff]
  %v3701 = vld [vmem:[%s3692 + $0x40] sm:$0xff]
  %v3702 = vld [vmem:[%s3692 + $0x48] sm:$0xff]
  %v3703 = vld [vmem:[%s3692 + $0x50] sm:$0xff]
  %v3704 = vld [vmem:[%s3692 + $0x58] sm:$0xff]
  %v3705 = vld [vmem:[%s3692 + $0x60] sm:$0xff]
  %v3706 = vld [vmem:[%s3692 + $0x68] sm:$0xff]
  %v3707 = vld [vmem:[%s3692 + $0x70] sm:$0xff]
  %v3708 = vld [vmem:[%s3692 + $0x78] sm:$0xff]
  %s3709 = scalar_lea.vmem %s14, 1
  %v3710 = vld [vmem:[%s3709] sm:$0x1]
  %v3712 = vlaneseq
  %v3713 = vshrl.u32 %v3712, 7
  %v3714 = vsub.s32 0, %v3713
  %v3715 = vrot.slane %v3710, %v3714
  %3717 = vmatprep.subr.mxu0 0.0
  %3718 = vmatpush1.msra.mxu0 %v3693
  %3719 = vmatprep.subr.mxu0 0.0
  %3720 = vmatpush1.msra.mxu0 %v3694
  %3721 = vmatprep.subr.mxu0 0.0
  %3722 = vmatpush1.msra.mxu0 %v3695
  %3723 = vmatprep.subr.mxu0 0.0
  %3724 = vmatpush1.msra.mxu0 %v3696
  %3725 = vmatprep.subr.mxu0 0.0
  %3726 = vmatpush1.msra.mxu0 %v3697
  %3727 = vmatprep.subr.mxu0 0.0
  %3728 = vmatpush1.msra.mxu0 %v3698
  %3729 = vmatprep.subr.mxu0 0.0
  %3730 = vmatpush1.msra.mxu0 %v3699
  %3731 = vmatprep.subr.mxu0 0.0
  %3732 = vmatpush1.msra.mxu0 %v3700
  %3733 = vmatprep.subr.mxu0 0.0
  %3734 = vmatpush1.msra.mxu0 %v3701
  %3735 = vmatprep.subr.mxu0 0.0
  %3736 = vmatpush1.msra.mxu0 %v3702
  %3737 = vmatprep.subr.mxu0 0.0
  %3738 = vmatpush1.msra.mxu0 %v3703
  %3739 = vmatprep.subr.mxu0 0.0
  %3740 = vmatpush1.msra.mxu0 %v3704
  %3741 = vmatprep.subr.mxu0 0.0
  %3742 = vmatpush1.msra.mxu0 %v3705
  %3743 = vmatprep.subr.mxu0 0.0
  %3744 = vmatpush1.msra.mxu0 %v3706
  %3745 = vmatprep.subr.mxu0 0.0
  %3746 = vmatpush1.msra.mxu0 %v3707
  %3747 = vmatprep.subr.mxu0 0.0
  %3748 = vmatpush1.msra.mxu0 %v3708
  %3749 = vmatprep.subr.mxu0 0.0
  %3750 = vmatpush1.msra.mxu0 0.0
  %3751 = vmatprep.subr.mxu0 0.0
  %3752 = vmatpush1.msra.mxu0 0.0
  %3753 = vmatprep.subr.mxu0 0.0
  %3754 = vmatpush1.msra.mxu0 0.0
  %3755 = vmatprep.subr.mxu0 0.0
  %3756 = vmatpush1.msra.mxu0 0.0
  %3757 = vmatprep.subr.mxu0 0.0
  %3758 = vmatpush1.msra.mxu0 0.0
  %3759 = vmatprep.subr.mxu0 0.0
  %3760 = vmatpush1.msra.mxu0 0.0
  %3761 = vmatprep.subr.mxu0 0.0
  %3762 = vmatpush1.msra.mxu0 0.0
  %3763 = vmatprep.subr.mxu0 0.0
  %3764 = vmatpush1.msra.mxu0 0.0
  %3765 = vmatprep.subr.mxu0 0.0
  %3766 = vmatpush1.msra.mxu0 0.0
  %3767 = vmatprep.subr.mxu0 0.0
  %3768 = vmatpush1.msra.mxu0 0.0
  %3769 = vmatprep.subr.mxu0 0.0
  %3770 = vmatpush1.msra.mxu0 0.0
  %3771 = vmatprep.subr.mxu0 0.0
  %3772 = vmatpush1.msra.mxu0 0.0
  %3773 = vmatprep.subr.mxu0 0.0
  %3774 = vmatpush1.msra.mxu0 0.0
  %3775 = vmatprep.subr.mxu0 0.0
  %3776 = vmatpush1.msra.mxu0 0.0
  %3777 = vmatprep.subr.mxu0 0.0
  %3778 = vmatpush1.msra.mxu0 0.0
  %3779 = vmatprep.subr.mxu0 0.0
  %3780 = vmatpush1.msra.mxu0 0.0
  %3781 = vmatprep.mubr.f32.mxu0 0.0
  %3782 = vmatmul.mubr.f32.gmra.mrb[0].mxu0 %v3690
  %v3783 = vpop.f32.mrb[0].mxu0
  %v3784 = vadd.f32 %v3715, %v3783
  %v3785 = vpop.f32.mrb[0].mxu0
  %3786 = vmatprep.mubr.f32.mxu0 0.0
  %3787 = vmatmul.mubr.f32.gmra.mrb[0].mxu0 %v3691
  %v3788 = vpop.f32.mrb[0].mxu0
  %v3789 = vadd.f32 %v3715, %v3788
  %v3790 = vpop.f32.mrb[0].mxu0
  %3791 = vdwg.mxu0
  %v3792 = vadd.f32 %v3784, %v3578
  %v3793 = vadd.f32 %v3789, %v3579
  %s3794 = scalar_lea.vmem %s15, 1
  %v3795 = vld [vmem:[%s3794] sm:$0x1]
  %s3796 = scalar_lea.vmem %s16, 1
  %v3797 = vld [vmem:[%s3796] sm:$0x1]
  %v3798 = vsel %vm69, %v3792, 0.0
  %3799 = vadd.xlane.f32.xlu0 %v3798
  %v3800 = vpop.xlane.xlu0 %3799
  %v3801 = vsel %vm69, %v3793, 0.0
  %3802 = vadd.xlane.f32.xlu0 %v3801
  %v3803 = vpop.xlane.xlu0 %3802
  %v3804 = vmul.f32 %v3800, %v76
  %v3805 = vmul.f32 %v3803, %v76
  %v3806 = vsub.f32 %v3792, %v3804
  %v3807 = vsub.f32 %v3793, %v3805
  %v3808 = vmul.f32 %v3806, %v3806
  %v3809 = vmul.f32 %v3807, %v3807
  %v3810 = vsel %vm69, %v3808, 0.0
  %3811 = vadd.xlane.f32.xlu0 %v3810
  %v3812 = vpop.xlane.xlu0 %3811
  %v3813 = vsel %vm69, %v3809, 0.0
  %3814 = vadd.xlane.f32.xlu0 %v3813
  %v3815 = vpop.xlane.xlu0 %3814
  %v3816 = vmul.f32 %v3812, %v76
  %v3817 = vmul.f32 %v3815, %v76
  %v3818 = vadd.f32 %v3816, 1e-06
  %v3819 = vadd.f32 %v3817, 1e-06
  %v3820 = vrsqrt.pop %v3818
  %v3821 = vrsqrt.pop %v3819
  %v3822 = vmul.f32 %v3806, %v3820
  %v3823 = vmul.f32 %v3807, %v3821
  %v3825 = vlaneseq
  %v3826 = vshrl.u32 %v3825, 7
  %v3827 = vsub.s32 0, %v3826
  %v3828 = vrot.slane %v3795, %v3827
  %v3830 = vmul.f32 %v3822, %v3828
  %v3831 = vmul.f32 %v3823, %v3828
  %v3833 = vlaneseq
  %v3834 = vshrl.u32 %v3833, 7
  %v3835 = vsub.s32 0, %v3834
  %v3836 = vrot.slane %v3797, %v3835
  %v3838 = vadd.f32 %v3830, %v3836
  %v3839 = vadd.f32 %v3831, %v3836
  %v3840 = vld [vmem:[%s17] sm:$0xff]
  %v3841 = vld [vmem:[%s17 + $0x8] sm:$0xff]
  %v3842 = vld [vmem:[%s17 + $0x10] sm:$0xff]
  %v3843 = vld [vmem:[%s17 + $0x18] sm:$0xff]
  %v3844 = vld [vmem:[%s18] sm:$0x1]
  %v3846 = vlaneseq
  %v3847 = vshrl.u32 %v3846, 7
  %v3848 = vsub.s32 0, %v3847
  %v3849 = vrot.slane %v3844, %v3848
  %v3852 = vsel %vm69, %v3838, 0
  %v3855 = vsel %vm69, %v3839, 0
  %3857 = vmatprep.subr.mxu0 0.0
  %3858 = vmatpush1.msra.mxu0 %v3840
  %3859 = vmatprep.subr.mxu0 0.0
  %3860 = vmatpush1.msra.mxu0 %v3841
  %3861 = vmatprep.subr.mxu0 0.0
  %3862 = vmatpush1.msra.mxu0 %v3842
  %3863 = vmatprep.subr.mxu0 0.0
  %3864 = vmatpush1.msra.mxu0 %v3843
  %3865 = vmatprep.subr.mxu0 0.0
  %3866 = vmatpush1.msra.mxu0 0.0
  %3867 = vmatprep.subr.mxu0 0.0
  %3868 = vmatpush1.msra.mxu0 0.0
  %3869 = vmatprep.subr.mxu0 0.0
  %3870 = vmatpush1.msra.mxu0 0.0
  %3871 = vmatprep.subr.mxu0 0.0
  %3872 = vmatpush1.msra.mxu0 0.0
  %3873 = vmatprep.subr.mxu0 0.0
  %3874 = vmatpush1.msra.mxu0 0.0
  %3875 = vmatprep.subr.mxu0 0.0
  %3876 = vmatpush1.msra.mxu0 0.0
  %3877 = vmatprep.subr.mxu0 0.0
  %3878 = vmatpush1.msra.mxu0 0.0
  %3879 = vmatprep.subr.mxu0 0.0
  %3880 = vmatpush1.msra.mxu0 0.0
  %3881 = vmatprep.subr.mxu0 0.0
  %3882 = vmatpush1.msra.mxu0 0.0
  %3883 = vmatprep.subr.mxu0 0.0
  %3884 = vmatpush1.msra.mxu0 0.0
  %3885 = vmatprep.subr.mxu0 0.0
  %3886 = vmatpush1.msra.mxu0 0.0
  %3887 = vmatprep.subr.mxu0 0.0
  %3888 = vmatpush1.msra.mxu0 0.0
  %3889 = vmatprep.subr.mxu0 0.0
  %3890 = vmatpush1.msra.mxu0 0.0
  %3891 = vmatprep.subr.mxu0 0.0
  %3892 = vmatpush1.msra.mxu0 0.0
  %3893 = vmatprep.subr.mxu0 0.0
  %3894 = vmatpush1.msra.mxu0 0.0
  %3895 = vmatprep.subr.mxu0 0.0
  %3896 = vmatpush1.msra.mxu0 0.0
  %3897 = vmatprep.subr.mxu0 0.0
  %3898 = vmatpush1.msra.mxu0 0.0
  %3899 = vmatprep.subr.mxu0 0.0
  %3900 = vmatpush1.msra.mxu0 0.0
  %3901 = vmatprep.subr.mxu0 0.0
  %3902 = vmatpush1.msra.mxu0 0.0
  %3903 = vmatprep.subr.mxu0 0.0
  %3904 = vmatpush1.msra.mxu0 0.0
  %3905 = vmatprep.subr.mxu0 0.0
  %3906 = vmatpush1.msra.mxu0 0.0
  %3907 = vmatprep.subr.mxu0 0.0
  %3908 = vmatpush1.msra.mxu0 0.0
  %3909 = vmatprep.subr.mxu0 0.0
  %3910 = vmatpush1.msra.mxu0 0.0
  %3911 = vmatprep.subr.mxu0 0.0
  %3912 = vmatpush1.msra.mxu0 0.0
  %3913 = vmatprep.subr.mxu0 0.0
  %3914 = vmatpush1.msra.mxu0 0.0
  %3915 = vmatprep.subr.mxu0 0.0
  %3916 = vmatpush1.msra.mxu0 0.0
  %3917 = vmatprep.subr.mxu0 0.0
  %3918 = vmatpush1.msra.mxu0 0.0
  %3919 = vmatprep.subr.mxu0 0.0
  %3920 = vmatpush1.msra.mxu0 0.0
  %3921 = vmatprep.mubr.f32.mxu0 0.0
  %3922 = vmatmul.mubr.f32.gmra.mrb[0].mxu0 %v3852
  %v3923 = vpop.f32.mrb[0].mxu0
  %v3924 = vadd.f32 %v3849, %v3923
  %v3925 = vpop.f32.mrb[0].mxu0
  %3926 = vmatprep.mubr.f32.mxu0 0.0
  %3927 = vmatmul.mubr.f32.gmra.mrb[0].mxu0 %v3855
  %v3928 = vpop.f32.mrb[0].mxu0
  %v3929 = vadd.f32 %v3849, %v3928
  %v3930 = vpop.f32.mrb[0].mxu0
  %3931 = vdwg.mxu0
  %3932 = vst [vmem:[%s19] sm:$0xff] %v3924
  %3933 = vst [vmem:[%s19 + $0x8] sm:$0xff] %v3929
  // Predicated region
  $region78: #{bert4rec_forward.1} parent=0 // pred_check
    _
  $region79: #{bert4rec_forward.1} parent=0 // pred_check_branch
    %3935 = sbr.rel (0) target = $region81
  $region80: #{bert4rec_forward.1} parent=0 // pred_region
    _
  $region81: #{bert4rec_forward.1} parent=0 // pred_fallthru
    _
  // Predicated region
  $region82: #{bert4rec_forward.1} parent=0 // pred_check
    _
  $region83: #{bert4rec_forward.1} parent=0 // pred_check_branch
    %3937 = sbr.rel (0) target = $region85
  $region84: #{bert4rec_forward.1} parent=0 // pred_region
    _
  $region85: #{bert4rec_forward.1} parent=0 // pred_fallthru
    _

</llo_original>
